<compile_context>
chip_gen: v6e
topology: v6e:2x2x1
jax: 0.10.0
libtpu: 0.0.40
codegen_flags: <defaults>
</compile_context>

<pallas_src>
import functools
import math

import jax
import jax.numpy as jnp
from jax.experimental import pallas as pl
from jax.experimental.pallas import tpu as pltpu

# --- small roberta-like config -------------------------------------------
VOCAB_SIZE   = 100        # len_tokenizer (resize_token_embeddings target)
HIDDEN       = 32
N_LAYERS     = 2
N_HEADS      = 4
HEAD_DIM     = HIDDEN // N_HEADS
INTERMEDIATE = 64
MAX_POS      = 64
PAD_ID       = 1          # roberta padding_idx
LN_EPS       = 1e-5


# --------------------------- in-kernel helpers -----------------------------
def _layernorm(x, g, b):
    """LayerNorm with f32 statistics (v5e VPU/EUP have no bf16)."""
    x = x.astype(jnp.float32)
    mean = jnp.mean(x, axis=-1, keepdims=True)
    xc = x - mean
    var = jnp.mean(xc * xc, axis=-1, keepdims=True)
    return xc * jax.lax.rsqrt(var + LN_EPS) * g + b


def _gelu(x):
    # TODO(synk): tanh approximation of GELU (HF roberta-base uses exact erf GELU).
    c = 0.7978845608028654
    return 0.5 * x * (1.0 + jnp.tanh(c * (x + 0.044715 * x * x * x)))


# --------------------------- fused encoder kernel --------------------------
def _encoder_kernel(x_ref, bias_ref, emb_g_ref, emb_b_ref,
                    wqkv_ref, bqkv_ref, wo_ref, bo_ref,
                    ln1_g_ref, ln1_b_ref,
                    wi_ref, bi_ref, wo2_ref, bo2_ref,
                    ln2_g_ref, ln2_b_ref,
                    out_ref, ctx_ref, *, batch, seq):
    """One grid step == one transformer layer on the resident [M, HIDDEN] slab."""
    layer = pl.program_id(0)

    # Layer-0 prologue: embedding LayerNorm. out_ref (constant block index
    # across the layer axis) carries the hidden state between layers.
    @pl.when(layer == 0)
    def _():
        out_ref[...] = _layernorm(x_ref[...], emb_g_ref[...],
                                  emb_b_ref[...]).astype(out_ref.dtype)

    h = out_ref[...].astype(jnp.float32)              # (M, HIDDEN)

    # --- fused QKV projection: single (M, H) @ (H, 3H) MXU pass ---
    qkv = jnp.dot(h, wqkv_ref[0],
                  preferred_element_type=jnp.float32) + bqkv_ref[0]
    q = qkv[:, 0 * HIDDEN:1 * HIDDEN]
    k = qkv[:, 1 * HIDDEN:2 * HIDDEN]
    v = qkv[:, 2 * HIDDEN:3 * HIDDEN]

    bias = bias_ref[...]                              # (batch, seq) additive mask
    scale = 1.0 / math.sqrt(HEAD_DIM)

    # --- attention: per-head (static, unrolled) batched einsums; heads are
    #     written back into a lane-contiguous [M, HIDDEN] VMEM ctx scratch ---
    for hd in range(N_HEADS):
        c0 = hd * HEAD_DIM
        qh = q[:, c0:c0 + HEAD_DIM].reshape(batch, seq, HEAD_DIM)
        kh = k[:, c0:c0 + HEAD_DIM].reshape(batch, seq, HEAD_DIM)
        vh = v[:, c0:c0 + HEAD_DIM].reshape(batch, seq, HEAD_DIM)
        s = jnp.einsum('bqd,bkd->bqk', qh, kh,
                       preferred_element_type=jnp.float32)
        s = s * scale + bias[:, None, :]
        s = s - jnp.max(s, axis=-1, keepdims=True)
        p = jnp.exp(s)
        p = p * pl.reciprocal(jnp.sum(p, axis=-1, keepdims=True), approx=True)
        ch = jnp.einsum('bqk,bkd->bqd', p, vh,
                        preferred_element_type=jnp.float32)
        ctx_ref[:, c0:c0 + HEAD_DIM] = ch.reshape(batch * seq, HEAD_DIM)

    # --- output projection + residual + LN (epilogue, stays in VMEM) ---
    attn_out = jnp.dot(ctx_ref[...], wo_ref[0],
                       preferred_element_type=jnp.float32) + bo_ref[0]
    h = _layernorm(attn_out + h, ln1_g_ref[0], ln1_b_ref[0])

    # --- feed-forward + residual + LN ---
    inter = _gelu(jnp.dot(h, wi_ref[0],
                          preferred_element_type=jnp.float32) + bi_ref[0])
    ffn = jnp.dot(inter, wo2_ref[0],
                  preferred_element_type=jnp.float32) + bo2_ref[0]
    out_ref[...] = _layernorm(ffn + h, ln2_g_ref[0],
                              ln2_b_ref[0]).astype(out_ref.dtype)


def _encoder_stack(emb, attn_bias, params, batch, seq):
    M = batch * seq
    kernel = functools.partial(_encoder_kernel, batch=batch, seq=seq)
    const2 = lambda l: (0, 0)
    layered = lambda l: (l, 0, 0)
    return pl.pallas_call(
        kernel,
        out_shape=jax.ShapeDtypeStruct((M, HIDDEN), jnp.float32),
        grid=(N_LAYERS,),
        in_specs=[
            pl.BlockSpec((M, HIDDEN), const2),                    # embeddings
            pl.BlockSpec((batch, seq), const2),                   # attn bias
            pl.BlockSpec((1, HIDDEN), const2),                    # emb LN gamma
            pl.BlockSpec((1, HIDDEN), const2),                    # emb LN beta
            pl.BlockSpec((1, HIDDEN, 3 * HIDDEN), layered),       # wqkv
            pl.BlockSpec((1, 1, 3 * HIDDEN), layered),            # bqkv
            pl.BlockSpec((1, HIDDEN, HIDDEN), layered),           # wo
            pl.BlockSpec((1, 1, HIDDEN), layered),                # bo
            pl.BlockSpec((1, 1, HIDDEN), layered),                # ln1 gamma
            pl.BlockSpec((1, 1, HIDDEN), layered),                # ln1 beta
            pl.BlockSpec((1, HIDDEN, INTERMEDIATE), layered),     # wi
            pl.BlockSpec((1, 1, INTERMEDIATE), layered),          # bi
            pl.BlockSpec((1, INTERMEDIATE, HIDDEN), layered),     # wo2
            pl.BlockSpec((1, 1, HIDDEN), layered),                # bo2
            pl.BlockSpec((1, 1, HIDDEN), layered),                # ln2 gamma
            pl.BlockSpec((1, 1, HIDDEN), layered),                # ln2 beta
        ],
        out_specs=pl.BlockSpec((M, HIDDEN), const2),
        scratch_shapes=[pltpu.VMEM((M, HIDDEN), jnp.float32)],    # ctx assembly
        compiler_params=pltpu.CompilerParams(
            dimension_semantics=("arbitrary",)),                  # sequential over layers
    )(emb, attn_bias, params["emb_ln_g"], params["emb_ln_b"],
      params["wqkv"], params["bqkv"], params["wo"], params["bo"],
      params["ln1_g"], params["ln1_b"],
      params["wi"], params["bi"], params["wo2"], params["bo2"],
      params["ln2_g"], params["ln2_b"])


# --------------------------- parameters -----------------------------------
def init_params(key):
    def nrm(k, shape):
        return 0.02 * jax.random.normal(k, shape, dtype=jnp.float32)

    keys = jax.random.split(key, 8)
    return {
        "word_emb": nrm(keys[0], (VOCAB_SIZE, HIDDEN)),
        "pos_emb":  nrm(keys[1], (MAX_POS, HIDDEN)),
        "type_emb": nrm(keys[2], (1, HIDDEN)),
        "emb_ln_g": jnp.ones((1, HIDDEN), jnp.float32),
        "emb_ln_b": jnp.zeros((1, HIDDEN), jnp.float32),
        "pooler_w": nrm(keys[3], (HIDDEN, HIDDEN)),
        "pooler_b": jnp.zeros((HIDDEN,), jnp.float32),
        # Per-layer weights stacked on a leading layer axis so a single
        # pallas_call walks them with a grid over layers.
        "wqkv": nrm(keys[4], (N_LAYERS, HIDDEN, 3 * HIDDEN)),
        "bqkv": jnp.zeros((N_LAYERS, 1, 3 * HIDDEN), jnp.float32),
        "wo":   nrm(keys[5], (N_LAYERS, HIDDEN, HIDDEN)),
        "bo":   jnp.zeros((N_LAYERS, 1, HIDDEN), jnp.float32),
        "ln1_g": jnp.ones((N_LAYERS, 1, HIDDEN), jnp.float32),
        "ln1_b": jnp.zeros((N_LAYERS, 1, HIDDEN), jnp.float32),
        "wi":   nrm(keys[6], (N_LAYERS, HIDDEN, INTERMEDIATE)),
        "bi":   jnp.zeros((N_LAYERS, 1, INTERMEDIATE), jnp.float32),
        "wo2":  nrm(keys[7], (N_LAYERS, INTERMEDIATE, HIDDEN)),
        "bo2":  jnp.zeros((N_LAYERS, 1, HIDDEN), jnp.float32),
        "ln2_g": jnp.ones((N_LAYERS, 1, HIDDEN), jnp.float32),
        "ln2_b": jnp.zeros((N_LAYERS, 1, HIDDEN), jnp.float32),
    }


# --------------------------- forward pass ---------------------------------
def base_encoder_forward(params, input_ids, attention_mask):
    B, S = input_ids.shape

    # RoBERTa-style position ids (offset by padding_idx, pads stay at pad_id).
    mask_i = (input_ids != PAD_ID).astype(jnp.int32)
    position_ids = jnp.cumsum(mask_i, axis=1) * mask_i + PAD_ID

    # Embedding gathers are glue (plain JAX); the encoder stack is one kernel.
    emb = (params["word_emb"][input_ids]
           + params["pos_emb"][position_ids]
           + params["type_emb"][jnp.zeros_like(input_ids)])
    emb = emb.reshape(B * S, HIDDEN).astype(jnp.float32)

    attn_bias = (1.0 - attention_mask.astype(jnp.float32)) * -1e9   # (B, S)

    h = _encoder_stack(emb, attn_bias, params, B, S)
    last_hidden_state = h.reshape(B, S, HIDDEN)

    # Pooler: a (B, HIDDEN)=(2, 32) matmul — kernel launch overhead would
    # dwarf the compute, so it stays in plain JAX (per perf review).
    cls = last_hidden_state[:, 0, :]
    pooler_output = jnp.tanh(cls @ params["pooler_w"] + params["pooler_b"])
    return last_hidden_state, pooler_output


# --------------------------- main ------------------------------------------
if __name__ == "__main__":
    key = jax.random.PRNGKey(0)
    pkey, ikey = jax.random.split(key)
    params = init_params(pkey)

    B, S = 2, 8
    input_ids = jax.random.randint(ikey, (B, S), 2, VOCAB_SIZE, dtype=jnp.int32)
    attention_mask = jnp.ones((B, S), dtype=jnp.int32)
    # pad the tail of the second sequence
    input_ids = input_ids.at[1, 6:].set(PAD_ID)
    attention_mask = attention_mask.at[1, 6:].set(0)

    fwd = jax.jit(base_encoder_forward)
    last_hidden, pooled = fwd(params, input_ids, attention_mask)
    jax.block_until_ready((last_hidden, pooled))

    assert last_hidden.shape == (B, S, HIDDEN)
    assert pooled.shape == (B, HIDDEN)
    assert bool(jnp.all(jnp.isfinite(last_hidden)))
    assert bool(jnp.all(jnp.isfinite(pooled)))
    print("KERNEL_OK")
</pallas_src>

<mosaic_0001>
module attributes {stable_mosaic.version = 11 : i64} {
  func.func @_encoder_kernel(%arg0: i32, %arg1: memref<16x32xf32, #tpu.memory_space<vmem>>, %arg2: memref<2x8xf32, #tpu.memory_space<vmem>>, %arg3: memref<1x32xf32, #tpu.memory_space<vmem>>, %arg4: memref<1x32xf32, #tpu.memory_space<vmem>>, %arg5: memref<1x32x96xf32, #tpu.memory_space<vmem>>, %arg6: memref<1x1x96xf32, #tpu.memory_space<vmem>>, %arg7: memref<1x32x32xf32, #tpu.memory_space<vmem>>, %arg8: memref<1x1x32xf32, #tpu.memory_space<vmem>>, %arg9: memref<1x1x32xf32, #tpu.memory_space<vmem>>, %arg10: memref<1x1x32xf32, #tpu.memory_space<vmem>>, %arg11: memref<1x32x64xf32, #tpu.memory_space<vmem>>, %arg12: memref<1x1x64xf32, #tpu.memory_space<vmem>>, %arg13: memref<1x64x32xf32, #tpu.memory_space<vmem>>, %arg14: memref<1x1x32xf32, #tpu.memory_space<vmem>>, %arg15: memref<1x1x32xf32, #tpu.memory_space<vmem>>, %arg16: memref<1x1x32xf32, #tpu.memory_space<vmem>>, %arg17: memref<16x32xf32, #tpu.memory_space<vmem>>, %arg18: memref<16x32xf32, #tpu.memory_space<vmem>>) attributes {dimension_semantics = [#tpu.dimension_semantics<arbitrary>], iteration_bounds = array<i64: 2>, scalar_prefetch = 0 : i64, scratch_operands = 1 : i64, tpu.core_type = #tpu.core_type<tc>, window_params = [{pipeline_mode = #tpu.pipeline_mode<synchronous>, transform_indices = @transform_0, window_bounds = array<i64: 16, 32>}, {pipeline_mode = #tpu.pipeline_mode<synchronous>, transform_indices = @transform_1, window_bounds = array<i64: 2, 8>}, {pipeline_mode = #tpu.pipeline_mode<synchronous>, transform_indices = @transform_2, window_bounds = array<i64: 1, 32>}, {pipeline_mode = #tpu.pipeline_mode<synchronous>, transform_indices = @transform_3, window_bounds = array<i64: 1, 32>}, {transform_indices = @transform_4, window_bounds = array<i64: 1, 32, 96>}, {transform_indices = @transform_5, window_bounds = array<i64: 1, 1, 96>}, {transform_indices = @transform_6, window_bounds = array<i64: 1, 32, 32>}, {transform_indices = @transform_7, window_bounds = array<i64: 1, 1, 32>}, {transform_indices = @transform_8, window_bounds = array<i64: 1, 1, 32>}, {transform_indices = @transform_9, window_bounds = array<i64: 1, 1, 32>}, {transform_indices = @transform_10, window_bounds = array<i64: 1, 32, 64>}, {transform_indices = @transform_11, window_bounds = array<i64: 1, 1, 64>}, {transform_indices = @transform_12, window_bounds = array<i64: 1, 64, 32>}, {transform_indices = @transform_13, window_bounds = array<i64: 1, 1, 32>}, {transform_indices = @transform_14, window_bounds = array<i64: 1, 1, 32>}, {transform_indices = @transform_15, window_bounds = array<i64: 1, 1, 32>}, {pipeline_mode = #tpu.pipeline_mode<synchronous>, transform_indices = @transform_16, window_bounds = array<i64: 16, 32>}]} {
    %c0_i32 = arith.constant 0 : i32
    %0 = arith.cmpi eq, %arg0, %c0_i32 : i32
    %1 = arith.extui %0 : i1 to i32
    %c0_i32_0 = arith.constant 0 : i32
    %2 = arith.cmpi ne, %1, %c0_i32_0 : i32
    scf.if %2 {
      %c0_86 = arith.constant 0 : index
      %c0_87 = arith.constant 0 : index
      %201 = vector.load %arg1[%c0_86, %c0_87] : memref<16x32xf32, #tpu.memory_space<vmem>>, vector<16x32xf32>
      %c0_88 = arith.constant 0 : index
      %c0_89 = arith.constant 0 : index
      %202 = vector.load %arg3[%c0_88, %c0_89] : memref<1x32xf32, #tpu.memory_space<vmem>>, vector<1x32xf32>
      %c0_90 = arith.constant 0 : index
      %c0_91 = arith.constant 0 : index
      %203 = vector.load %arg4[%c0_90, %c0_91] : memref<1x32xf32, #tpu.memory_space<vmem>>, vector<1x32xf32>
      %cst_92 = arith.constant dense<0.000000e+00> : vector<16xf32>
      %204 = vector.multi_reduction <add>, %201, %cst_92 [1] : vector<16x32xf32> to vector<16xf32>
      %205 = vector.shape_cast %204 : vector<16xf32> to vector<16x1xf32>
      %cst_93 = arith.constant 3.200000e+01 : f32
      %206 = vector.broadcast %cst_93 : f32 to vector<16x1xf32>
      %207 = arith.divf %205, %206 : vector<16x1xf32>
      %208 = vector.broadcast %207 : vector<16x1xf32> to vector<16x32xf32>
      %209 = arith.subf %201, %208 : vector<16x32xf32>
      %210 = arith.mulf %209, %209 : vector<16x32xf32>
      %cst_94 = arith.constant dense<0.000000e+00> : vector<16xf32>
      %211 = vector.multi_reduction <add>, %210, %cst_94 [1] : vector<16x32xf32> to vector<16xf32>
      %212 = vector.shape_cast %211 : vector<16xf32> to vector<16x1xf32>
      %cst_95 = arith.constant 3.200000e+01 : f32
      %213 = vector.broadcast %cst_95 : f32 to vector<16x1xf32>
      %214 = arith.divf %212, %213 : vector<16x1xf32>
      %cst_96 = arith.constant 9.99999974E-6 : f32
      %215 = vector.broadcast %cst_96 : f32 to vector<16x1xf32>
      %216 = arith.addf %214, %215 : vector<16x1xf32>
      %217 = math.rsqrt %216 : vector<16x1xf32>
      %218 = vector.broadcast %217 : vector<16x1xf32> to vector<16x32xf32>
      %219 = arith.mulf %209, %218 : vector<16x32xf32>
      %220 = vector.broadcast %202 : vector<1x32xf32> to vector<16x32xf32>
      %221 = arith.mulf %219, %220 : vector<16x32xf32>
      %222 = vector.broadcast %203 : vector<1x32xf32> to vector<16x32xf32>
      %223 = arith.addf %221, %222 : vector<16x32xf32>
      %c0_97 = arith.constant 0 : index
      %c0_98 = arith.constant 0 : index
      %224 = vector.load %arg17[%c0_97, %c0_98] : memref<16x32xf32, #tpu.memory_space<vmem>>, vector<16x32xf32>
      tpu.vector_store %arg17[%c0_97, %c0_98], %223 {strides = array<i32>} : memref<16x32xf32, #tpu.memory_space<vmem>>, vector<16x32xf32>,
    } else {
    }
    %c0 = arith.constant 0 : index
    %c0_1 = arith.constant 0 : index
    %3 = vector.load %arg17[%c0, %c0_1] : memref<16x32xf32, #tpu.memory_space<vmem>>, vector<16x32xf32>
    %c0_2 = arith.constant 0 : index
    %c0_3 = arith.constant 0 : index
    %c0_4 = arith.constant 0 : index
    %4 = vector.load %arg5[%c0_2, %c0_3, %c0_4] : memref<1x32x96xf32, #tpu.memory_space<vmem>>, vector<1x32x96xf32>
    %5 = vector.shape_cast %4 : vector<1x32x96xf32> to vector<32x96xf32>
    %cst = arith.constant dense<0.000000e+00> : vector<16x96xf32>
    %6 = tpu.matmul %3, %5, %cst {dimension_numbers = #tpu.dot_dimension_numbers<[1], [0], [0], [1], [0, 0, 1, 1], [], []>} : vector<16x32xf32>, vector<32x96xf32>, vector<16x96xf32> -> vector<16x96xf32>
    %c0_5 = arith.constant 0 : index
    %c0_6 = arith.constant 0 : index
    %c0_7 = arith.constant 0 : index
    %7 = vector.load %arg6[%c0_5, %c0_6, %c0_7] : memref<1x1x96xf32, #tpu.memory_space<vmem>>, vector<1x1x96xf32>
    %8 = vector.shape_cast %7 : vector<1x1x96xf32> to vector<1x96xf32>
    %9 = vector.broadcast %8 : vector<1x96xf32> to vector<16x96xf32>
    %10 = arith.addf %6, %9 : vector<16x96xf32>
    %11 = vector.extract_strided_slice %10 {offsets = [0, 0], sizes = [16, 32], strides = [1, 1]} : vector<16x96xf32> to vector<16x32xf32>
    %12 = vector.extract_strided_slice %10 {offsets = [0, 32], sizes = [16, 32], strides = [1, 1]} : vector<16x96xf32> to vector<16x32xf32>
    %13 = vector.extract_strided_slice %10 {offsets = [0, 64], sizes = [16, 32], strides = [1, 1]} : vector<16x96xf32> to vector<16x32xf32>
    %c0_8 = arith.constant 0 : index
    %c0_9 = arith.constant 0 : index
    %14 = vector.load %arg2[%c0_8, %c0_9] : memref<2x8xf32, #tpu.memory_space<vmem>>, vector<2x8xf32>
    %15 = vector.extract_strided_slice %11 {offsets = [0, 0], sizes = [16, 8], strides = [1, 1]} : vector<16x32xf32> to vector<16x8xf32>
    %16 = vector.shape_cast %15 : vector<16x8xf32> to vector<2x8x8xf32>
    %17 = vector.extract_strided_slice %12 {offsets = [0, 0], sizes = [16, 8], strides = [1, 1]} : vector<16x32xf32> to vector<16x8xf32>
    %18 = vector.shape_cast %17 : vector<16x8xf32> to vector<2x8x8xf32>
    %19 = vector.extract_strided_slice %13 {offsets = [0, 0], sizes = [16, 8], strides = [1, 1]} : vector<16x32xf32> to vector<16x8xf32>
    %20 = vector.shape_cast %19 : vector<16x8xf32> to vector<2x8x8xf32>
    "tpu.trace_start"() <{level = 10 : i32, message = "bqd,bkd->bqk"}> : () -> ()
    %cst_10 = arith.constant dense<0.000000e+00> : vector<2x8x8xf32>
    %21 = tpu.matmul %16, %18, %cst_10 {dimension_numbers = #tpu.dot_dimension_numbers<[2], [2], [1], [1], [0, 0, 0, 1, 1, 1], [0], [0]>} : vector<2x8x8xf32>, vector<2x8x8xf32>, vector<2x8x8xf32> -> vector<2x8x8xf32>
    "tpu.trace_stop"() : () -> ()
    %cst_11 = arith.constant 0.353553385 : f32
    %22 = vector.broadcast %cst_11 : f32 to vector<2x8x8xf32>
    %23 = arith.mulf %21, %22 : vector<2x8x8xf32>
    %24 = vector.shape_cast %14 : vector<2x8xf32> to vector<2x1x8xf32>
    %25 = vector.broadcast %24 : vector<2x1x8xf32> to vector<2x8x8xf32>
    %26 = arith.addf %23, %25 : vector<2x8x8xf32>
    %cst_12 = arith.constant dense<0xFF800000> : vector<2x8xf32>
    %27 = vector.multi_reduction <maximumf>, %26, %cst_12 [2] : vector<2x8x8xf32> to vector<2x8xf32>
    %28 = vector.shape_cast %27 : vector<2x8xf32> to vector<2x8x1xf32>
    %29 = vector.broadcast %28 : vector<2x8x1xf32> to vector<2x8x8xf32>
    %30 = arith.subf %26, %29 : vector<2x8x8xf32>
    %31 = math.exp %30 : vector<2x8x8xf32>
    %cst_13 = arith.constant dense<0.000000e+00> : vector<2x8xf32>
    %32 = vector.multi_reduction <add>, %31, %cst_13 [2] : vector<2x8x8xf32> to vector<2x8xf32>
    %33 = vector.shape_cast %32 : vector<2x8xf32> to vector<2x8x1xf32>
    %34 = tpu.reciprocal %33 {approx = true} : vector<2x8x1xf32> -> vector<2x8x1xf32>
    %35 = vector.broadcast %34 : vector<2x8x1xf32> to vector<2x8x8xf32>
    %36 = arith.mulf %31, %35 : vector<2x8x8xf32>
    "tpu.trace_start"() <{level = 10 : i32, message = "bqk,bkd->bqd"}> : () -> ()
    %cst_14 = arith.constant dense<0.000000e+00> : vector<2x8x8xf32>
    %37 = tpu.matmul %36, %20, %cst_14 {dimension_numbers = #tpu.dot_dimension_numbers<[2], [1], [1], [2], [0, 0, 0, 1, 1, 2], [0], [0]>} : vector<2x8x8xf32>, vector<2x8x8xf32>, vector<2x8x8xf32> -> vector<2x8x8xf32>
    "tpu.trace_stop"() : () -> ()
    %38 = vector.shape_cast %37 : vector<2x8x8xf32> to vector<16x8xf32>
    %c0_15 = arith.constant 0 : index
    %c0_16 = arith.constant 0 : index
    %39 = vector.load %arg18[%c0_15, %c0_16] : memref<16x32xf32, #tpu.memory_space<vmem>>, vector<16x8xf32>
    tpu.vector_store %arg18[%c0_15, %c0_16], %38 {strides = array<i32>} : memref<16x32xf32, #tpu.memory_space<vmem>>, vector<16x8xf32>,
    %40 = vector.extract_strided_slice %11 {offsets = [0, 8], sizes = [16, 8], strides = [1, 1]} : vector<16x32xf32> to vector<16x8xf32>
    %41 = vector.shape_cast %40 : vector<16x8xf32> to vector<2x8x8xf32>
    %42 = vector.extract_strided_slice %12 {offsets = [0, 8], sizes = [16, 8], strides = [1, 1]} : vector<16x32xf32> to vector<16x8xf32>
    %43 = vector.shape_cast %42 : vector<16x8xf32> to vector<2x8x8xf32>
    %44 = vector.extract_strided_slice %13 {offsets = [0, 8], sizes = [16, 8], strides = [1, 1]} : vector<16x32xf32> to vector<16x8xf32>
    %45 = vector.shape_cast %44 : vector<16x8xf32> to vector<2x8x8xf32>
    "tpu.trace_start"() <{level = 10 : i32, message = "bqd,bkd->bqk"}> : () -> ()
    %cst_17 = arith.constant dense<0.000000e+00> : vector<2x8x8xf32>
    %46 = tpu.matmul %41, %43, %cst_17 {dimension_numbers = #tpu.dot_dimension_numbers<[2], [2], [1], [1], [0, 0, 0, 1, 1, 1], [0], [0]>} : vector<2x8x8xf32>, vector<2x8x8xf32>, vector<2x8x8xf32> -> vector<2x8x8xf32>
    "tpu.trace_stop"() : () -> ()
    %cst_18 = arith.constant 0.353553385 : f32
    %47 = vector.broadcast %cst_18 : f32 to vector<2x8x8xf32>
    %48 = arith.mulf %46, %47 : vector<2x8x8xf32>
    %49 = vector.shape_cast %14 : vector<2x8xf32> to vector<2x1x8xf32>
    %50 = vector.broadcast %49 : vector<2x1x8xf32> to vector<2x8x8xf32>
    %51 = arith.addf %48, %50 : vector<2x8x8xf32>
    %cst_19 = arith.constant dense<0xFF800000> : vector<2x8xf32>
    %52 = vector.multi_reduction <maximumf>, %51, %cst_19 [2] : vector<2x8x8xf32> to vector<2x8xf32>
    %53 = vector.shape_cast %52 : vector<2x8xf32> to vector<2x8x1xf32>
    %54 = vector.broadcast %53 : vector<2x8x1xf32> to vector<2x8x8xf32>
    %55 = arith.subf %51, %54 : vector<2x8x8xf32>
    %56 = math.exp %55 : vector<2x8x8xf32>
    %cst_20 = arith.constant dense<0.000000e+00> : vector<2x8xf32>
    %57 = vector.multi_reduction <add>, %56, %cst_20 [2] : vector<2x8x8xf32> to vector<2x8xf32>
    %58 = vector.shape_cast %57 : vector<2x8xf32> to vector<2x8x1xf32>
    %59 = tpu.reciprocal %58 {approx = true} : vector<2x8x1xf32> -> vector<2x8x1xf32>
    %60 = vector.broadcast %59 : vector<2x8x1xf32> to vector<2x8x8xf32>
    %61 = arith.mulf %56, %60 : vector<2x8x8xf32>
    "tpu.trace_start"() <{level = 10 : i32, message = "bqk,bkd->bqd"}> : () -> ()
    %cst_21 = arith.constant dense<0.000000e+00> : vector<2x8x8xf32>
    %62 = tpu.matmul %61, %45, %cst_21 {dimension_numbers = #tpu.dot_dimension_numbers<[2], [1], [1], [2], [0, 0, 0, 1, 1, 2], [0], [0]>} : vector<2x8x8xf32>, vector<2x8x8xf32>, vector<2x8x8xf32> -> vector<2x8x8xf32>
    "tpu.trace_stop"() : () -> ()
    %63 = vector.shape_cast %62 : vector<2x8x8xf32> to vector<16x8xf32>
    %c0_22 = arith.constant 0 : index
    %c8 = arith.constant 8 : index
    %64 = vector.load %arg18[%c0_22, %c8] : memref<16x32xf32, #tpu.memory_space<vmem>>, vector<16x8xf32>
    tpu.vector_store %arg18[%c0_22, %c8], %63 {strides = array<i32>} : memref<16x32xf32, #tpu.memory_space<vmem>>, vector<16x8xf32>,
    %65 = vector.extract_strided_slice %11 {offsets = [0, 16], sizes = [16, 8], strides = [1, 1]} : vector<16x32xf32> to vector<16x8xf32>
    %66 = vector.shape_cast %65 : vector<16x8xf32> to vector<2x8x8xf32>
    %67 = vector.extract_strided_slice %12 {offsets = [0, 16], sizes = [16, 8], strides = [1, 1]} : vector<16x32xf32> to vector<16x8xf32>
    %68 = vector.shape_cast %67 : vector<16x8xf32> to vector<2x8x8xf32>
    %69 = vector.extract_strided_slice %13 {offsets = [0, 16], sizes = [16, 8], strides = [1, 1]} : vector<16x32xf32> to vector<16x8xf32>
    %70 = vector.shape_cast %69 : vector<16x8xf32> to vector<2x8x8xf32>
    "tpu.trace_start"() <{level = 10 : i32, message = "bqd,bkd->bqk"}> : () -> ()
    %cst_23 = arith.constant dense<0.000000e+00> : vector<2x8x8xf32>
    %71 = tpu.matmul %66, %68, %cst_23 {dimension_numbers = #tpu.dot_dimension_numbers<[2], [2], [1], [1], [0, 0, 0, 1, 1, 1], [0], [0]>} : vector<2x8x8xf32>, vector<2x8x8xf32>, vector<2x8x8xf32> -> vector<2x8x8xf32>
    "tpu.trace_stop"() : () -> ()
    %cst_24 = arith.constant 0.353553385 : f32
    %72 = vector.broadcast %cst_24 : f32 to vector<2x8x8xf32>
    %73 = arith.mulf %71, %72 : vector<2x8x8xf32>
    %74 = vector.shape_cast %14 : vector<2x8xf32> to vector<2x1x8xf32>
    %75 = vector.broadcast %74 : vector<2x1x8xf32> to vector<2x8x8xf32>
    %76 = arith.addf %73, %75 : vector<2x8x8xf32>
    %cst_25 = arith.constant dense<0xFF800000> : vector<2x8xf32>
    %77 = vector.multi_reduction <maximumf>, %76, %cst_25 [2] : vector<2x8x8xf32> to vector<2x8xf32>
    %78 = vector.shape_cast %77 : vector<2x8xf32> to vector<2x8x1xf32>
    %79 = vector.broadcast %78 : vector<2x8x1xf32> to vector<2x8x8xf32>
    %80 = arith.subf %76, %79 : vector<2x8x8xf32>
    %81 = math.exp %80 : vector<2x8x8xf32>
    %cst_26 = arith.constant dense<0.000000e+00> : vector<2x8xf32>
    %82 = vector.multi_reduction <add>, %81, %cst_26 [2] : vector<2x8x8xf32> to vector<2x8xf32>
    %83 = vector.shape_cast %82 : vector<2x8xf32> to vector<2x8x1xf32>
    %84 = tpu.reciprocal %83 {approx = true} : vector<2x8x1xf32> -> vector<2x8x1xf32>
    %85 = vector.broadcast %84 : vector<2x8x1xf32> to vector<2x8x8xf32>
    %86 = arith.mulf %81, %85 : vector<2x8x8xf32>
    "tpu.trace_start"() <{level = 10 : i32, message = "bqk,bkd->bqd"}> : () -> ()
    %cst_27 = arith.constant dense<0.000000e+00> : vector<2x8x8xf32>
    %87 = tpu.matmul %86, %70, %cst_27 {dimension_numbers = #tpu.dot_dimension_numbers<[2], [1], [1], [2], [0, 0, 0, 1, 1, 2], [0], [0]>} : vector<2x8x8xf32>, vector<2x8x8xf32>, vector<2x8x8xf32> -> vector<2x8x8xf32>
    "tpu.trace_stop"() : () -> ()
    %88 = vector.shape_cast %87 : vector<2x8x8xf32> to vector<16x8xf32>
    %c0_28 = arith.constant 0 : index
    %c16 = arith.constant 16 : index
    %89 = vector.load %arg18[%c0_28, %c16] : memref<16x32xf32, #tpu.memory_space<vmem>>, vector<16x8xf32>
    tpu.vector_store %arg18[%c0_28, %c16], %88 {strides = array<i32>} : memref<16x32xf32, #tpu.memory_space<vmem>>, vector<16x8xf32>,
    %90 = vector.extract_strided_slice %11 {offsets = [0, 24], sizes = [16, 8], strides = [1, 1]} : vector<16x32xf32> to vector<16x8xf32>
    %91 = vector.shape_cast %90 : vector<16x8xf32> to vector<2x8x8xf32>
    %92 = vector.extract_strided_slice %12 {offsets = [0, 24], sizes = [16, 8], strides = [1, 1]} : vector<16x32xf32> to vector<16x8xf32>
    %93 = vector.shape_cast %92 : vector<16x8xf32> to vector<2x8x8xf32>
    %94 = vector.extract_strided_slice %13 {offsets = [0, 24], sizes = [16, 8], strides = [1, 1]} : vector<16x32xf32> to vector<16x8xf32>
    %95 = vector.shape_cast %94 : vector<16x8xf32> to vector<2x8x8xf32>
    "tpu.trace_start"() <{level = 10 : i32, message = "bqd,bkd->bqk"}> : () -> ()
    %cst_29 = arith.constant dense<0.000000e+00> : vector<2x8x8xf32>
    %96 = tpu.matmul %91, %93, %cst_29 {dimension_numbers = #tpu.dot_dimension_numbers<[2], [2], [1], [1], [0, 0, 0, 1, 1, 1], [0], [0]>} : vector<2x8x8xf32>, vector<2x8x8xf32>, vector<2x8x8xf32> -> vector<2x8x8xf32>
    "tpu.trace_stop"() : () -> ()
    %cst_30 = arith.constant 0.353553385 : f32
    %97 = vector.broadcast %cst_30 : f32 to vector<2x8x8xf32>
    %98 = arith.mulf %96, %97 : vector<2x8x8xf32>
    %99 = vector.shape_cast %14 : vector<2x8xf32> to vector<2x1x8xf32>
    %100 = vector.broadcast %99 : vector<2x1x8xf32> to vector<2x8x8xf32>
    %101 = arith.addf %98, %100 : vector<2x8x8xf32>
    %cst_31 = arith.constant dense<0xFF800000> : vector<2x8xf32>
    %102 = vector.multi_reduction <maximumf>, %101, %cst_31 [2] : vector<2x8x8xf32> to vector<2x8xf32>
    %103 = vector.shape_cast %102 : vector<2x8xf32> to vector<2x8x1xf32>
    %104 = vector.broadcast %103 : vector<2x8x1xf32> to vector<2x8x8xf32>
    %105 = arith.subf %101, %104 : vector<2x8x8xf32>
    %106 = math.exp %105 : vector<2x8x8xf32>
    %cst_32 = arith.constant dense<0.000000e+00> : vector<2x8xf32>
    %107 = vector.multi_reduction <add>, %106, %cst_32 [2] : vector<2x8x8xf32> to vector<2x8xf32>
    %108 = vector.shape_cast %107 : vector<2x8xf32> to vector<2x8x1xf32>
    %109 = tpu.reciprocal %108 {approx = true} : vector<2x8x1xf32> -> vector<2x8x1xf32>
    %110 = vector.broadcast %109 : vector<2x8x1xf32> to vector<2x8x8xf32>
    %111 = arith.mulf %106, %110 : vector<2x8x8xf32>
    "tpu.trace_start"() <{level = 10 : i32, message = "bqk,bkd->bqd"}> : () -> ()
    %cst_33 = arith.constant dense<0.000000e+00> : vector<2x8x8xf32>
    %112 = tpu.matmul %111, %95, %cst_33 {dimension_numbers = #tpu.dot_dimension_numbers<[2], [1], [1], [2], [0, 0, 0, 1, 1, 2], [0], [0]>} : vector<2x8x8xf32>, vector<2x8x8xf32>, vector<2x8x8xf32> -> vector<2x8x8xf32>
    "tpu.trace_stop"() : () -> ()
    %113 = vector.shape_cast %112 : vector<2x8x8xf32> to vector<16x8xf32>
    %c0_34 = arith.constant 0 : index
    %c24 = arith.constant 24 : index
    %114 = vector.load %arg18[%c0_34, %c24] : memref<16x32xf32, #tpu.memory_space<vmem>>, vector<16x8xf32>
    tpu.vector_store %arg18[%c0_34, %c24], %113 {strides = array<i32>} : memref<16x32xf32, #tpu.memory_space<vmem>>, vector<16x8xf32>,
    %c0_35 = arith.constant 0 : index
    %c0_36 = arith.constant 0 : index
    %115 = vector.load %arg18[%c0_35, %c0_36] : memref<16x32xf32, #tpu.memory_space<vmem>>, vector<16x32xf32>
    %c0_37 = arith.constant 0 : index
    %c0_38 = arith.constant 0 : index
    %c0_39 = arith.constant 0 : index
    %116 = vector.load %arg7[%c0_37, %c0_38, %c0_39] : memref<1x32x32xf32, #tpu.memory_space<vmem>>, vector<1x32x32xf32>
    %117 = vector.shape_cast %116 : vector<1x32x32xf32> to vector<32x32xf32>
    %cst_40 = arith.constant dense<0.000000e+00> : vector<16x32xf32>
    %118 = tpu.matmul %115, %117, %cst_40 {dimension_numbers = #tpu.dot_dimension_numbers<[1], [0], [0], [1], [0, 0, 1, 1], [], []>} : vector<16x32xf32>, vector<32x32xf32>, vector<16x32xf32> -> vector<16x32xf32>
    %c0_41 = arith.constant 0 : index
    %c0_42 = arith.constant 0 : index
    %c0_43 = arith.constant 0 : index
    %119 = vector.load %arg8[%c0_41, %c0_42, %c0_43] : memref<1x1x32xf32, #tpu.memory_space<vmem>>, vector<1x1x32xf32>
    %120 = vector.shape_cast %119 : vector<1x1x32xf32> to vector<1x32xf32>
    %121 = vector.broadcast %120 : vector<1x32xf32> to vector<16x32xf32>
    %122 = arith.addf %118, %121 : vector<16x32xf32>
    %123 = arith.addf %122, %3 : vector<16x32xf32>
    %c0_44 = arith.constant 0 : index
    %c0_45 = arith.constant 0 : index
    %c0_46 = arith.constant 0 : index
    %124 = vector.load %arg9[%c0_44, %c0_45, %c0_46] : memref<1x1x32xf32, #tpu.memory_space<vmem>>, vector<1x1x32xf32>
    %125 = vector.shape_cast %124 : vector<1x1x32xf32> to vector<1x32xf32>
    %c0_47 = arith.constant 0 : index
    %c0_48 = arith.constant 0 : index
    %c0_49 = arith.constant 0 : index
    %126 = vector.load %arg10[%c0_47, %c0_48, %c0_49] : memref<1x1x32xf32, #tpu.memory_space<vmem>>, vector<1x1x32xf32>
    %127 = vector.shape_cast %126 : vector<1x1x32xf32> to vector<1x32xf32>
    %cst_50 = arith.constant dense<0.000000e+00> : vector<16xf32>
    %128 = vector.multi_reduction <add>, %123, %cst_50 [1] : vector<16x32xf32> to vector<16xf32>
    %129 = vector.shape_cast %128 : vector<16xf32> to vector<16x1xf32>
    %cst_51 = arith.constant 3.200000e+01 : f32
    %130 = vector.broadcast %cst_51 : f32 to vector<16x1xf32>
    %131 = arith.divf %129, %130 : vector<16x1xf32>
    %132 = vector.broadcast %131 : vector<16x1xf32> to vector<16x32xf32>
    %133 = arith.subf %123, %132 : vector<16x32xf32>
    %134 = arith.mulf %133, %133 : vector<16x32xf32>
    %cst_52 = arith.constant dense<0.000000e+00> : vector<16xf32>
    %135 = vector.multi_reduction <add>, %134, %cst_52 [1] : vector<16x32xf32> to vector<16xf32>
    %136 = vector.shape_cast %135 : vector<16xf32> to vector<16x1xf32>
    %cst_53 = arith.constant 3.200000e+01 : f32
    %137 = vector.broadcast %cst_53 : f32 to vector<16x1xf32>
    %138 = arith.divf %136, %137 : vector<16x1xf32>
    %cst_54 = arith.constant 9.99999974E-6 : f32
    %139 = vector.broadcast %cst_54 : f32 to vector<16x1xf32>
    %140 = arith.addf %138, %139 : vector<16x1xf32>
    %141 = math.rsqrt %140 : vector<16x1xf32>
    %142 = vector.broadcast %141 : vector<16x1xf32> to vector<16x32xf32>
    %143 = arith.mulf %133, %142 : vector<16x32xf32>
    %144 = vector.broadcast %125 : vector<1x32xf32> to vector<16x32xf32>
    %145 = arith.mulf %143, %144 : vector<16x32xf32>
    %146 = vector.broadcast %127 : vector<1x32xf32> to vector<16x32xf32>
    %147 = arith.addf %145, %146 : vector<16x32xf32>
    %c0_55 = arith.constant 0 : index
    %c0_56 = arith.constant 0 : index
    %c0_57 = arith.constant 0 : index
    %148 = vector.load %arg11[%c0_55, %c0_56, %c0_57] : memref<1x32x64xf32, #tpu.memory_space<vmem>>, vector<1x32x64xf32>
    %149 = vector.shape_cast %148 : vector<1x32x64xf32> to vector<32x64xf32>
    %cst_58 = arith.constant dense<0.000000e+00> : vector<16x64xf32>
    %150 = tpu.matmul %147, %149, %cst_58 {dimension_numbers = #tpu.dot_dimension_numbers<[1], [0], [0], [1], [0, 0, 1, 1], [], []>} : vector<16x32xf32>, vector<32x64xf32>, vector<16x64xf32> -> vector<16x64xf32>
    %c0_59 = arith.constant 0 : index
    %c0_60 = arith.constant 0 : index
    %c0_61 = arith.constant 0 : index
    %151 = vector.load %arg12[%c0_59, %c0_60, %c0_61] : memref<1x1x64xf32, #tpu.memory_space<vmem>>, vector<1x1x64xf32>
    %152 = vector.shape_cast %151 : vector<1x1x64xf32> to vector<1x64xf32>
    %153 = vector.broadcast %152 : vector<1x64xf32> to vector<16x64xf32>
    %154 = arith.addf %150, %153 : vector<16x64xf32>
    %cst_62 = arith.constant 5.000000e-01 : f32
    %155 = vector.broadcast %cst_62 : f32 to vector<16x64xf32>
    %156 = arith.mulf %155, %154 : vector<16x64xf32>
    %cst_63 = arith.constant 4.471500e-02 : f32
    %157 = vector.broadcast %cst_63 : f32 to vector<16x64xf32>
    %158 = arith.mulf %157, %154 : vector<16x64xf32>
    %159 = arith.mulf %158, %154 : vector<16x64xf32>
    %160 = arith.mulf %159, %154 : vector<16x64xf32>
    %161 = arith.addf %154, %160 : vector<16x64xf32>
    %cst_64 = arith.constant 0.797884583 : f32
    %162 = vector.broadcast %cst_64 : f32 to vector<16x64xf32>
    %163 = arith.mulf %162, %161 : vector<16x64xf32>
    %164 = math.tanh %163 : vector<16x64xf32>
    %cst_65 = arith.constant 1.000000e+00 : f32
    %165 = vector.broadcast %cst_65 : f32 to vector<16x64xf32>
    %166 = arith.addf %165, %164 : vector<16x64xf32>
    %167 = arith.mulf %156, %166 : vector<16x64xf32>
    %c0_66 = arith.constant 0 : index
    %c0_67 = arith.constant 0 : index
    %c0_68 = arith.constant 0 : index
    %168 = vector.load %arg13[%c0_66, %c0_67, %c0_68] : memref<1x64x32xf32, #tpu.memory_space<vmem>>, vector<1x64x32xf32>
    %169 = vector.shape_cast %168 : vector<1x64x32xf32> to vector<64x32xf32>
    %cst_69 = arith.constant dense<0.000000e+00> : vector<16x32xf32>
    %170 = tpu.matmul %167, %169, %cst_69 {dimension_numbers = #tpu.dot_dimension_numbers<[1], [0], [0], [1], [0, 0, 1, 1], [], []>} : vector<16x64xf32>, vector<64x32xf32>, vector<16x32xf32> -> vector<16x32xf32>
    %c0_70 = arith.constant 0 : index
    %c0_71 = arith.constant 0 : index
    %c0_72 = arith.constant 0 : index
    %171 = vector.load %arg14[%c0_70, %c0_71, %c0_72] : memref<1x1x32xf32, #tpu.memory_space<vmem>>, vector<1x1x32xf32>
    %172 = vector.shape_cast %171 : vector<1x1x32xf32> to vector<1x32xf32>
    %173 = vector.broadcast %172 : vector<1x32xf32> to vector<16x32xf32>
    %174 = arith.addf %170, %173 : vector<16x32xf32>
    %175 = arith.addf %174, %147 : vector<16x32xf32>
    %c0_73 = arith.constant 0 : index
    %c0_74 = arith.constant 0 : index
    %c0_75 = arith.constant 0 : index
    %176 = vector.load %arg15[%c0_73, %c0_74, %c0_75] : memref<1x1x32xf32, #tpu.memory_space<vmem>>, vector<1x1x32xf32>
    %177 = vector.shape_cast %176 : vector<1x1x32xf32> to vector<1x32xf32>
    %c0_76 = arith.constant 0 : index
    %c0_77 = arith.constant 0 : index
    %c0_78 = arith.constant 0 : index
    %178 = vector.load %arg16[%c0_76, %c0_77, %c0_78] : memref<1x1x32xf32, #tpu.memory_space<vmem>>, vector<1x1x32xf32>
    %179 = vector.shape_cast %178 : vector<1x1x32xf32> to vector<1x32xf32>
    %cst_79 = arith.constant dense<0.000000e+00> : vector<16xf32>
    %180 = vector.multi_reduction <add>, %175, %cst_79 [1] : vector<16x32xf32> to vector<16xf32>
    %181 = vector.shape_cast %180 : vector<16xf32> to vector<16x1xf32>
    %cst_80 = arith.constant 3.200000e+01 : f32
    %182 = vector.broadcast %cst_80 : f32 to vector<16x1xf32>
    %183 = arith.divf %181, %182 : vector<16x1xf32>
    %184 = vector.broadcast %183 : vector<16x1xf32> to vector<16x32xf32>
    %185 = arith.subf %175, %184 : vector<16x32xf32>
    %186 = arith.mulf %185, %185 : vector<16x32xf32>
    %cst_81 = arith.constant dense<0.000000e+00> : vector<16xf32>
    %187 = vector.multi_reduction <add>, %186, %cst_81 [1] : vector<16x32xf32> to vector<16xf32>
    %188 = vector.shape_cast %187 : vector<16xf32> to vector<16x1xf32>
    %cst_82 = arith.constant 3.200000e+01 : f32
    %189 = vector.broadcast %cst_82 : f32 to vector<16x1xf32>
    %190 = arith.divf %188, %189 : vector<16x1xf32>
    %cst_83 = arith.constant 9.99999974E-6 : f32
    %191 = vector.broadcast %cst_83 : f32 to vector<16x1xf32>
    %192 = arith.addf %190, %191 : vector<16x1xf32>
    %193 = math.rsqrt %192 : vector<16x1xf32>
    %194 = vector.broadcast %193 : vector<16x1xf32> to vector<16x32xf32>
    %195 = arith.mulf %185, %194 : vector<16x32xf32>
    %196 = vector.broadcast %177 : vector<1x32xf32> to vector<16x32xf32>
    %197 = arith.mulf %195, %196 : vector<16x32xf32>
    %198 = vector.broadcast %179 : vector<1x32xf32> to vector<16x32xf32>
    %199 = arith.addf %197, %198 : vector<16x32xf32>
    %c0_84 = arith.constant 0 : index
    %c0_85 = arith.constant 0 : index
    %200 = vector.load %arg17[%c0_84, %c0_85] : memref<16x32xf32, #tpu.memory_space<vmem>>, vector<16x32xf32>
    tpu.vector_store %arg17[%c0_84, %c0_85], %199 {strides = array<i32>} : memref<16x32xf32, #tpu.memory_space<vmem>>, vector<16x32xf32>,
    return
  }
  func.func @transform_0(%arg0: i32) -> (i32, i32) {
    %c0_i32 = arith.constant 0 : i32
    %c0_i32_0 = arith.constant 0 : i32
    %c0_i32_1 = arith.constant 0 : i32
    return %c0_i32, %c0_i32_0 : i32, i32
  }
  func.func @transform_1(%arg0: i32) -> (i32, i32) {
    %c0_i32 = arith.constant 0 : i32
    %c0_i32_0 = arith.constant 0 : i32
    %c0_i32_1 = arith.constant 0 : i32
    return %c0_i32, %c0_i32_0 : i32, i32
  }
  func.func @transform_2(%arg0: i32) -> (i32, i32) {
    %c0_i32 = arith.constant 0 : i32
    %c0_i32_0 = arith.constant 0 : i32
    %c0_i32_1 = arith.constant 0 : i32
    return %c0_i32, %c0_i32_0 : i32, i32
  }
  func.func @transform_3(%arg0: i32) -> (i32, i32) {
    %c0_i32 = arith.constant 0 : i32
    %c0_i32_0 = arith.constant 0 : i32
    %c0_i32_1 = arith.constant 0 : i32
    return %c0_i32, %c0_i32_0 : i32, i32
  }
  func.func @transform_4(%arg0: i32) -> (i32, i32, i32) {
    %c0_i32 = arith.constant 0 : i32
    %c0_i32_0 = arith.constant 0 : i32
    %c0_i32_1 = arith.constant 0 : i32
    return %arg0, %c0_i32, %c0_i32_0 : i32, i32, i32
  }
  func.func @transform_5(%arg0: i32) -> (i32, i32, i32) {
    %c0_i32 = arith.constant 0 : i32
    %c0_i32_0 = arith.constant 0 : i32
    %c0_i32_1 = arith.constant 0 : i32
    return %arg0, %c0_i32, %c0_i32_0 : i32, i32, i32
  }
  func.func @transform_6(%arg0: i32) -> (i32, i32, i32) {
    %c0_i32 = arith.constant 0 : i32
    %c0_i32_0 = arith.constant 0 : i32
    %c0_i32_1 = arith.constant 0 : i32
    return %arg0, %c0_i32, %c0_i32_0 : i32, i32, i32
  }
  func.func @transform_7(%arg0: i32) -> (i32, i32, i32) {
    %c0_i32 = arith.constant 0 : i32
    %c0_i32_0 = arith.constant 0 : i32
    %c0_i32_1 = arith.constant 0 : i32
    return %arg0, %c0_i32, %c0_i32_0 : i32, i32, i32
  }
  func.func @transform_8(%arg0: i32) -> (i32, i32, i32) {
    %c0_i32 = arith.constant 0 : i32
    %c0_i32_0 = arith.constant 0 : i32
    %c0_i32_1 = arith.constant 0 : i32
    return %arg0, %c0_i32, %c0_i32_0 : i32, i32, i32
  }
  func.func @transform_9(%arg0: i32) -> (i32, i32, i32) {
    %c0_i32 = arith.constant 0 : i32
    %c0_i32_0 = arith.constant 0 : i32
    %c0_i32_1 = arith.constant 0 : i32
    return %arg0, %c0_i32, %c0_i32_0 : i32, i32, i32
  }
  func.func @transform_10(%arg0: i32) -> (i32, i32, i32) {
    %c0_i32 = arith.constant 0 : i32
    %c0_i32_0 = arith.constant 0 : i32
    %c0_i32_1 = arith.constant 0 : i32
    return %arg0, %c0_i32, %c0_i32_0 : i32, i32, i32
  }
  func.func @transform_11(%arg0: i32) -> (i32, i32, i32) {
    %c0_i32 = arith.constant 0 : i32
    %c0_i32_0 = arith.constant 0 : i32
    %c0_i32_1 = arith.constant 0 : i32
    return %arg0, %c0_i32, %c0_i32_0 : i32, i32, i32
  }
  func.func @transform_12(%arg0: i32) -> (i32, i32, i32) {
    %c0_i32 = arith.constant 0 : i32
    %c0_i32_0 = arith.constant 0 : i32
    %c0_i32_1 = arith.constant 0 : i32
    return %arg0, %c0_i32, %c0_i32_0 : i32, i32, i32
  }
  func.func @transform_13(%arg0: i32) -> (i32, i32, i32) {
    %c0_i32 = arith.constant 0 : i32
    %c0_i32_0 = arith.constant 0 : i32
    %c0_i32_1 = arith.constant 0 : i32
    return %arg0, %c0_i32, %c0_i32_0 : i32, i32, i32
  }
  func.func @transform_14(%arg0: i32) -> (i32, i32, i32) {
    %c0_i32 = arith.constant 0 : i32
    %c0_i32_0 = arith.constant 0 : i32
    %c0_i32_1 = arith.constant 0 : i32
    return %arg0, %c0_i32, %c0_i32_0 : i32, i32, i32
  }
  func.func @transform_15(%arg0: i32) -> (i32, i32, i32) {
    %c0_i32 = arith.constant 0 : i32
    %c0_i32_0 = arith.constant 0 : i32
    %c0_i32_1 = arith.constant 0 : i32
    return %arg0, %c0_i32, %c0_i32_0 : i32, i32, i32
  }
  func.func @transform_16(%arg0: i32) -> (i32, i32) {
    %c0_i32 = arith.constant 0 : i32
    %c0_i32_0 = arith.constant 0 : i32
    %c0_i32_1 = arith.constant 0 : i32
    return %c0_i32, %c0_i32_0 : i32, i32
  }
}

</mosaic_0001>

<llo_original>
// kernel: base_encoder_forward.1
$region0: #{base_encoder_forward.1}
  #allocation0 [shape = 'u32[]', space=smem, size = 0x4, offset = 0x4, fixed_abs, tag = 'smem constant byte address 0x4 - core index']
  #allocation1 [shape = 'u32[144,128]{1,0:T(1,128)}', space=vmem, size = 0x12000, scoped, tag = 'internal scratch']
  #allocation2 [shape = 'f32[16,32]{1,0:T(8,128)}', space=vmem, size = 0x2000, scoped, tag = 'scratch operand']
  %s0 = inlined_call_operand.vmem [shape: f32[16,32], index: 0, kind: input, shape index: {}]
  %s1 = inlined_call_operand.vmem [shape: f32[2,8], index: 1, kind: input, shape index: {}]
  %s2 = inlined_call_operand.vmem [shape: f32[1,32], index: 2, kind: input, shape index: {}]
  %s3 = inlined_call_operand.vmem [shape: f32[1,32], index: 3, kind: input, shape index: {}]
  %s4 = inlined_call_operand.vmem [shape: f32[2,32,96], index: 4, kind: input, shape index: {}]
  %s5 = inlined_call_operand.vmem [shape: f32[2,1,96], index: 5, kind: input, shape index: {}]
  %s6 = inlined_call_operand.vmem [shape: f32[2,32,32], index: 6, kind: input, shape index: {}]
  %s7 = inlined_call_operand.vmem [shape: f32[2,1,32], index: 7, kind: input, shape index: {}]
  %s8 = inlined_call_operand.vmem [shape: f32[2,1,32], index: 8, kind: input, shape index: {}]
  %s9 = inlined_call_operand.vmem [shape: f32[2,1,32], index: 9, kind: input, shape index: {}]
  %s10 = inlined_call_operand.vmem [shape: f32[2,32,64], index: 10, kind: input, shape index: {}]
  %s11 = inlined_call_operand.vmem [shape: f32[2,1,64], index: 11, kind: input, shape index: {}]
  %s12 = inlined_call_operand.vmem [shape: f32[2,64,32], index: 12, kind: input, shape index: {}]
  %s13 = inlined_call_operand.vmem [shape: f32[2,1,32], index: 13, kind: input, shape index: {}]
  %s14 = inlined_call_operand.vmem [shape: f32[2,1,32], index: 14, kind: input, shape index: {}]
  %s15 = inlined_call_operand.vmem [shape: f32[2,1,32], index: 15, kind: input, shape index: {}]
  %s16 = inlined_call_operand.vmem [shape: f32[16,32], index: 16, kind: output, shape index: {}]
  %s17 = sld [smem:[#allocation0]]
  $region101: #{base_encoder_forward.1} parent=0
    _
  %s19 = ssub.s32 1, %s17
  %s20 = scalar_select 0, %s19, %s17
  loop: start=0, step=1, limit=4
  $region2: #{base_encoder_forward.1} parent=0 // loop_pre_header
    _
  $region3: #{base_encoder_forward.1} parent=0 // loop_header
    %s22 = sphi 0, %s26
    %p23 = scmp.ge.s32.totalorder %s22, 4
    %s30 = sphi 0, %s30
    %s32 = sphi 0, %s30
    %s33 = sphi 0, %s32
    %s47 = sphi 0, %s33
    %s51 = sphi 0, %s51
    %s53 = sphi 0, %s51
    %s54 = sphi 0, %s53
    %s68 = sphi 0, %s54
    %s72 = sphi 0, %s72
    %s74 = sphi 0, %s72
    %s75 = sphi 0, %s74
    %s89 = sphi 0, %s75
    %s93 = sphi 0, %s93
    %s95 = sphi 0, %s93
    %s96 = sphi 0, %s95
    %s110 = sphi 0, %s96
    %s116 = sphi 0, %s118
    %s119 = sphi 0, %s116
    %s120 = sphi 0, %s119
    %s136 = sphi 0, %s120
    %s142 = sphi 0, %s144
    %s145 = sphi 0, %s142
    %s146 = sphi 0, %s145
    %s162 = sphi 0, %s146
    %s168 = sphi 0, %s170
    %s171 = sphi 0, %s168
    %s172 = sphi 0, %s171
    %s188 = sphi 0, %s172
    %s194 = sphi 0, %s196
    %s197 = sphi 0, %s194
    %s198 = sphi 0, %s197
    %s214 = sphi 0, %s198
    %s220 = sphi 0, %s222
    %s223 = sphi 0, %s220
    %s224 = sphi 0, %s223
    %s240 = sphi 0, %s224
    %s246 = sphi 0, %s248
    %s249 = sphi 0, %s246
    %s250 = sphi 0, %s249
    %s266 = sphi 0, %s250
    %s272 = sphi 0, %s274
    %s275 = sphi 0, %s272
    %s276 = sphi 0, %s275
    %s292 = sphi 0, %s276
    %s298 = sphi 0, %s300
    %s301 = sphi 0, %s298
    %s302 = sphi 0, %s301
    %s318 = sphi 0, %s302
    %s324 = sphi 0, %s326
    %s327 = sphi 0, %s324
    %s328 = sphi 0, %s327
    %s344 = sphi 0, %s328
    %s350 = sphi 0, %s352
    %s353 = sphi 0, %s350
    %s354 = sphi 0, %s353
    %s370 = sphi 0, %s354
    %s376 = sphi 0, %s378
    %s379 = sphi 0, %s376
    %s380 = sphi 0, %s379
    %s396 = sphi 0, %s380
    %s402 = sphi 0, %s404
    %s405 = sphi 0, %s402
    %s406 = sphi 0, %s405
    %s422 = sphi 0, %s406
    %s426 = sphi 0, %s426
    %s428 = sphi 0, %s426
    %s429 = sphi 0, %s428
    %s443 = sphi 0, %s429
  $region4: #{base_encoder_forward.1} parent=0 // loop_header_branch
    %25 = sbr.rel (%p23) target = $region8
  $region5: #{base_encoder_forward.1} parent=0 // loop_body
    %s27 = ssub.s32 %s22, 1
    %s28 = ssub.s32 %s22, 2
    %s29 = sadd.s32 %s22, 1
    %s31 = sadd.s32 %s30, 1
    %p34 = scmp.eq.s32.totalorder %s22, 1
    %p35 = scmp.ne.s32.totalorder %s30, %s32
    %p36 = scmp.eq.s32.totalorder %s22, 0
    %p37 = por %p35, %p36
    %p38 = scmp.ne.s32.totalorder %s30, %s32
    %p39 = scmp.eq.s32.totalorder %s27, 1
    %p40 = por %p38, %p39
    %p41 = scmp.ne.s32.totalorder %s32, %s33
    %p42 = scmp.eq.s32.totalorder %s27, 0
    %p43 = por %p41, %p42
    %p44 = scmp.ne.s32.totalorder %s32, %s33
    %p45 = scmp.eq.s32.totalorder %s28, 1
    %p46 = por %p44, %p45
    %p48 = scmp.ne.s32.totalorder %s33, %s47
    %p49 = scmp.eq.s32.totalorder %s28, 0
    %p50 = por %p48, %p49
    %s52 = sadd.s32 %s51, 1
    %p55 = scmp.eq.s32.totalorder %s22, 1
    %p56 = scmp.ne.s32.totalorder %s51, %s53
    %p57 = scmp.eq.s32.totalorder %s22, 0
    %p58 = por %p56, %p57
    %p59 = scmp.ne.s32.totalorder %s51, %s53
    %p60 = scmp.eq.s32.totalorder %s27, 1
    %p61 = por %p59, %p60
    %p62 = scmp.ne.s32.totalorder %s53, %s54
    %p63 = scmp.eq.s32.totalorder %s27, 0
    %p64 = por %p62, %p63
    %p65 = scmp.ne.s32.totalorder %s53, %s54
    %p66 = scmp.eq.s32.totalorder %s28, 1
    %p67 = por %p65, %p66
    %p69 = scmp.ne.s32.totalorder %s54, %s68
    %p70 = scmp.eq.s32.totalorder %s28, 0
    %p71 = por %p69, %p70
    %s73 = sadd.s32 %s72, 1
    %p76 = scmp.eq.s32.totalorder %s22, 1
    %p77 = scmp.ne.s32.totalorder %s72, %s74
    %p78 = scmp.eq.s32.totalorder %s22, 0
    %p79 = por %p77, %p78
    %p80 = scmp.ne.s32.totalorder %s72, %s74
    %p81 = scmp.eq.s32.totalorder %s27, 1
    %p82 = por %p80, %p81
    %p83 = scmp.ne.s32.totalorder %s74, %s75
    %p84 = scmp.eq.s32.totalorder %s27, 0
    %p85 = por %p83, %p84
    %p86 = scmp.ne.s32.totalorder %s74, %s75
    %p87 = scmp.eq.s32.totalorder %s28, 1
    %p88 = por %p86, %p87
    %p90 = scmp.ne.s32.totalorder %s75, %s89
    %p91 = scmp.eq.s32.totalorder %s28, 0
    %p92 = por %p90, %p91
    %s94 = sadd.s32 %s93, 1
    %p97 = scmp.eq.s32.totalorder %s22, 1
    %p98 = scmp.ne.s32.totalorder %s93, %s95
    %p99 = scmp.eq.s32.totalorder %s22, 0
    %p100 = por %p98, %p99
    %p101 = scmp.ne.s32.totalorder %s93, %s95
    %p102 = scmp.eq.s32.totalorder %s27, 1
    %p103 = por %p101, %p102
    %p104 = scmp.ne.s32.totalorder %s95, %s96
    %p105 = scmp.eq.s32.totalorder %s27, 0
    %p106 = por %p104, %p105
    %p107 = scmp.ne.s32.totalorder %s95, %s96
    %p108 = scmp.eq.s32.totalorder %s28, 1
    %p109 = por %p107, %p108
    %p111 = scmp.ne.s32.totalorder %s96, %s110
    %p112 = scmp.eq.s32.totalorder %s28, 0
    %p113 = por %p111, %p112
    %s114 = ssub.s32 %s22, %s29
    %p115 = scmp.eq.s32.totalorder %s114, 0
    %s117 = sadd.s32 %s116, 1
    %s118 = scalar_select %p115, %s116, %s117
    %p121 = pneg %p115
    %p122 = scmp.eq.s32.totalorder %s22, 1
    %p123 = por %p121, %p122
    %p124 = scmp.ne.s32.totalorder %s116, %s119
    %p125 = scmp.eq.s32.totalorder %s22, 0
    %p126 = por %p124, %p125
    %p127 = scmp.ne.s32.totalorder %s116, %s119
    %p128 = scmp.eq.s32.totalorder %s27, 1
    %p129 = por %p127, %p128
    %p130 = scmp.ne.s32.totalorder %s119, %s120
    %p131 = scmp.eq.s32.totalorder %s27, 0
    %p132 = por %p130, %p131
    %p133 = scmp.ne.s32.totalorder %s119, %s120
    %p134 = scmp.eq.s32.totalorder %s28, 1
    %p135 = por %p133, %p134
    %p137 = scmp.ne.s32.totalorder %s120, %s136
    %p138 = scmp.eq.s32.totalorder %s28, 0
    %p139 = por %p137, %p138
    %s140 = ssub.s32 %s22, %s29
    %p141 = scmp.eq.s32.totalorder %s140, 0
    %s143 = sadd.s32 %s142, 1
    %s144 = scalar_select %p141, %s142, %s143
    %p147 = pneg %p141
    %p148 = scmp.eq.s32.totalorder %s22, 1
    %p149 = por %p147, %p148
    %p150 = scmp.ne.s32.totalorder %s142, %s145
    %p151 = scmp.eq.s32.totalorder %s22, 0
    %p152 = por %p150, %p151
    %p153 = scmp.ne.s32.totalorder %s142, %s145
    %p154 = scmp.eq.s32.totalorder %s27, 1
    %p155 = por %p153, %p154
    %p156 = scmp.ne.s32.totalorder %s145, %s146
    %p157 = scmp.eq.s32.totalorder %s27, 0
    %p158 = por %p156, %p157
    %p159 = scmp.ne.s32.totalorder %s145, %s146
    %p160 = scmp.eq.s32.totalorder %s28, 1
    %p161 = por %p159, %p160
    %p163 = scmp.ne.s32.totalorder %s146, %s162
    %p164 = scmp.eq.s32.totalorder %s28, 0
    %p165 = por %p163, %p164
    %s166 = ssub.s32 %s22, %s29
    %p167 = scmp.eq.s32.totalorder %s166, 0
    %s169 = sadd.s32 %s168, 1
    %s170 = scalar_select %p167, %s168, %s169
    %p173 = pneg %p167
    %p174 = scmp.eq.s32.totalorder %s22, 1
    %p175 = por %p173, %p174
    %p176 = scmp.ne.s32.totalorder %s168, %s171
    %p177 = scmp.eq.s32.totalorder %s22, 0
    %p178 = por %p176, %p177
    %p179 = scmp.ne.s32.totalorder %s168, %s171
    %p180 = scmp.eq.s32.totalorder %s27, 1
    %p181 = por %p179, %p180
    %p182 = scmp.ne.s32.totalorder %s171, %s172
    %p183 = scmp.eq.s32.totalorder %s27, 0
    %p184 = por %p182, %p183
    %p185 = scmp.ne.s32.totalorder %s171, %s172
    %p186 = scmp.eq.s32.totalorder %s28, 1
    %p187 = por %p185, %p186
    %p189 = scmp.ne.s32.totalorder %s172, %s188
    %p190 = scmp.eq.s32.totalorder %s28, 0
    %p191 = por %p189, %p190
    %s192 = ssub.s32 %s22, %s29
    %p193 = scmp.eq.s32.totalorder %s192, 0
    %s195 = sadd.s32 %s194, 1
    %s196 = scalar_select %p193, %s194, %s195
    %p199 = pneg %p193
    %p200 = scmp.eq.s32.totalorder %s22, 1
    %p201 = por %p199, %p200
    %p202 = scmp.ne.s32.totalorder %s194, %s197
    %p203 = scmp.eq.s32.totalorder %s22, 0
    %p204 = por %p202, %p203
    %p205 = scmp.ne.s32.totalorder %s194, %s197
    %p206 = scmp.eq.s32.totalorder %s27, 1
    %p207 = por %p205, %p206
    %p208 = scmp.ne.s32.totalorder %s197, %s198
    %p209 = scmp.eq.s32.totalorder %s27, 0
    %p210 = por %p208, %p209
    %p211 = scmp.ne.s32.totalorder %s197, %s198
    %p212 = scmp.eq.s32.totalorder %s28, 1
    %p213 = por %p211, %p212
    %p215 = scmp.ne.s32.totalorder %s198, %s214
    %p216 = scmp.eq.s32.totalorder %s28, 0
    %p217 = por %p215, %p216
    %s218 = ssub.s32 %s22, %s29
    %p219 = scmp.eq.s32.totalorder %s218, 0
    %s221 = sadd.s32 %s220, 1
    %s222 = scalar_select %p219, %s220, %s221
    %p225 = pneg %p219
    %p226 = scmp.eq.s32.totalorder %s22, 1
    %p227 = por %p225, %p226
    %p228 = scmp.ne.s32.totalorder %s220, %s223
    %p229 = scmp.eq.s32.totalorder %s22, 0
    %p230 = por %p228, %p229
    %p231 = scmp.ne.s32.totalorder %s220, %s223
    %p232 = scmp.eq.s32.totalorder %s27, 1
    %p233 = por %p231, %p232
    %p234 = scmp.ne.s32.totalorder %s223, %s224
    %p235 = scmp.eq.s32.totalorder %s27, 0
    %p236 = por %p234, %p235
    %p237 = scmp.ne.s32.totalorder %s223, %s224
    %p238 = scmp.eq.s32.totalorder %s28, 1
    %p239 = por %p237, %p238
    %p241 = scmp.ne.s32.totalorder %s224, %s240
    %p242 = scmp.eq.s32.totalorder %s28, 0
    %p243 = por %p241, %p242
    %s244 = ssub.s32 %s22, %s29
    %p245 = scmp.eq.s32.totalorder %s244, 0
    %s247 = sadd.s32 %s246, 1
    %s248 = scalar_select %p245, %s246, %s247
    %p251 = pneg %p245
    %p252 = scmp.eq.s32.totalorder %s22, 1
    %p253 = por %p251, %p252
    %p254 = scmp.ne.s32.totalorder %s246, %s249
    %p255 = scmp.eq.s32.totalorder %s22, 0
    %p256 = por %p254, %p255
    %p257 = scmp.ne.s32.totalorder %s246, %s249
    %p258 = scmp.eq.s32.totalorder %s27, 1
    %p259 = por %p257, %p258
    %p260 = scmp.ne.s32.totalorder %s249, %s250
    %p261 = scmp.eq.s32.totalorder %s27, 0
    %p262 = por %p260, %p261
    %p263 = scmp.ne.s32.totalorder %s249, %s250
    %p264 = scmp.eq.s32.totalorder %s28, 1
    %p265 = por %p263, %p264
    %p267 = scmp.ne.s32.totalorder %s250, %s266
    %p268 = scmp.eq.s32.totalorder %s28, 0
    %p269 = por %p267, %p268
    %s270 = ssub.s32 %s22, %s29
    %p271 = scmp.eq.s32.totalorder %s270, 0
    %s273 = sadd.s32 %s272, 1
    %s274 = scalar_select %p271, %s272, %s273
    %p277 = pneg %p271
    %p278 = scmp.eq.s32.totalorder %s22, 1
    %p279 = por %p277, %p278
    %p280 = scmp.ne.s32.totalorder %s272, %s275
    %p281 = scmp.eq.s32.totalorder %s22, 0
    %p282 = por %p280, %p281
    %p283 = scmp.ne.s32.totalorder %s272, %s275
    %p284 = scmp.eq.s32.totalorder %s27, 1
    %p285 = por %p283, %p284
    %p286 = scmp.ne.s32.totalorder %s275, %s276
    %p287 = scmp.eq.s32.totalorder %s27, 0
    %p288 = por %p286, %p287
    %p289 = scmp.ne.s32.totalorder %s275, %s276
    %p290 = scmp.eq.s32.totalorder %s28, 1
    %p291 = por %p289, %p290
    %p293 = scmp.ne.s32.totalorder %s276, %s292
    %p294 = scmp.eq.s32.totalorder %s28, 0
    %p295 = por %p293, %p294
    %s296 = ssub.s32 %s22, %s29
    %p297 = scmp.eq.s32.totalorder %s296, 0
    %s299 = sadd.s32 %s298, 1
    %s300 = scalar_select %p297, %s298, %s299
    %p303 = pneg %p297
    %p304 = scmp.eq.s32.totalorder %s22, 1
    %p305 = por %p303, %p304
    %p306 = scmp.ne.s32.totalorder %s298, %s301
    %p307 = scmp.eq.s32.totalorder %s22, 0
    %p308 = por %p306, %p307
    %p309 = scmp.ne.s32.totalorder %s298, %s301
    %p310 = scmp.eq.s32.totalorder %s27, 1
    %p311 = por %p309, %p310
    %p312 = scmp.ne.s32.totalorder %s301, %s302
    %p313 = scmp.eq.s32.totalorder %s27, 0
    %p314 = por %p312, %p313
    %p315 = scmp.ne.s32.totalorder %s301, %s302
    %p316 = scmp.eq.s32.totalorder %s28, 1
    %p317 = por %p315, %p316
    %p319 = scmp.ne.s32.totalorder %s302, %s318
    %p320 = scmp.eq.s32.totalorder %s28, 0
    %p321 = por %p319, %p320
    %s322 = ssub.s32 %s22, %s29
    %p323 = scmp.eq.s32.totalorder %s322, 0
    %s325 = sadd.s32 %s324, 1
    %s326 = scalar_select %p323, %s324, %s325
    %p329 = pneg %p323
    %p330 = scmp.eq.s32.totalorder %s22, 1
    %p331 = por %p329, %p330
    %p332 = scmp.ne.s32.totalorder %s324, %s327
    %p333 = scmp.eq.s32.totalorder %s22, 0
    %p334 = por %p332, %p333
    %p335 = scmp.ne.s32.totalorder %s324, %s327
    %p336 = scmp.eq.s32.totalorder %s27, 1
    %p337 = por %p335, %p336
    %p338 = scmp.ne.s32.totalorder %s327, %s328
    %p339 = scmp.eq.s32.totalorder %s27, 0
    %p340 = por %p338, %p339
    %p341 = scmp.ne.s32.totalorder %s327, %s328
    %p342 = scmp.eq.s32.totalorder %s28, 1
    %p343 = por %p341, %p342
    %p345 = scmp.ne.s32.totalorder %s328, %s344
    %p346 = scmp.eq.s32.totalorder %s28, 0
    %p347 = por %p345, %p346
    %s348 = ssub.s32 %s22, %s29
    %p349 = scmp.eq.s32.totalorder %s348, 0
    %s351 = sadd.s32 %s350, 1
    %s352 = scalar_select %p349, %s350, %s351
    %p355 = pneg %p349
    %p356 = scmp.eq.s32.totalorder %s22, 1
    %p357 = por %p355, %p356
    %p358 = scmp.ne.s32.totalorder %s350, %s353
    %p359 = scmp.eq.s32.totalorder %s22, 0
    %p360 = por %p358, %p359
    %p361 = scmp.ne.s32.totalorder %s350, %s353
    %p362 = scmp.eq.s32.totalorder %s27, 1
    %p363 = por %p361, %p362
    %p364 = scmp.ne.s32.totalorder %s353, %s354
    %p365 = scmp.eq.s32.totalorder %s27, 0
    %p366 = por %p364, %p365
    %p367 = scmp.ne.s32.totalorder %s353, %s354
    %p368 = scmp.eq.s32.totalorder %s28, 1
    %p369 = por %p367, %p368
    %p371 = scmp.ne.s32.totalorder %s354, %s370
    %p372 = scmp.eq.s32.totalorder %s28, 0
    %p373 = por %p371, %p372
    %s374 = ssub.s32 %s22, %s29
    %p375 = scmp.eq.s32.totalorder %s374, 0
    %s377 = sadd.s32 %s376, 1
    %s378 = scalar_select %p375, %s376, %s377
    %p381 = pneg %p375
    %p382 = scmp.eq.s32.totalorder %s22, 1
    %p383 = por %p381, %p382
    %p384 = scmp.ne.s32.totalorder %s376, %s379
    %p385 = scmp.eq.s32.totalorder %s22, 0
    %p386 = por %p384, %p385
    %p387 = scmp.ne.s32.totalorder %s376, %s379
    %p388 = scmp.eq.s32.totalorder %s27, 1
    %p389 = por %p387, %p388
    %p390 = scmp.ne.s32.totalorder %s379, %s380
    %p391 = scmp.eq.s32.totalorder %s27, 0
    %p392 = por %p390, %p391
    %p393 = scmp.ne.s32.totalorder %s379, %s380
    %p394 = scmp.eq.s32.totalorder %s28, 1
    %p395 = por %p393, %p394
    %p397 = scmp.ne.s32.totalorder %s380, %s396
    %p398 = scmp.eq.s32.totalorder %s28, 0
    %p399 = por %p397, %p398
    %s400 = ssub.s32 %s22, %s29
    %p401 = scmp.eq.s32.totalorder %s400, 0
    %s403 = sadd.s32 %s402, 1
    %s404 = scalar_select %p401, %s402, %s403
    %p407 = pneg %p401
    %p408 = scmp.eq.s32.totalorder %s22, 1
    %p409 = por %p407, %p408
    %p410 = scmp.ne.s32.totalorder %s402, %s405
    %p411 = scmp.eq.s32.totalorder %s22, 0
    %p412 = por %p410, %p411
    %p413 = scmp.ne.s32.totalorder %s402, %s405
    %p414 = scmp.eq.s32.totalorder %s27, 1
    %p415 = por %p413, %p414
    %p416 = scmp.ne.s32.totalorder %s405, %s406
    %p417 = scmp.eq.s32.totalorder %s27, 0
    %p418 = por %p416, %p417
    %p419 = scmp.ne.s32.totalorder %s405, %s406
    %p420 = scmp.eq.s32.totalorder %s28, 1
    %p421 = por %p419, %p420
    %p423 = scmp.ne.s32.totalorder %s406, %s422
    %p424 = scmp.eq.s32.totalorder %s28, 0
    %p425 = por %p423, %p424
    %s427 = sadd.s32 %s426, 1
    %p430 = scmp.eq.s32.totalorder %s22, 1
    %p431 = scmp.ne.s32.totalorder %s426, %s428
    %p432 = scmp.eq.s32.totalorder %s22, 0
    %p433 = por %p431, %p432
    %p434 = scmp.ne.s32.totalorder %s426, %s428
    %p435 = scmp.eq.s32.totalorder %s27, 1
    %p436 = por %p434, %p435
    %p437 = scmp.ne.s32.totalorder %s428, %s429
    %p438 = scmp.eq.s32.totalorder %s27, 0
    %p439 = por %p437, %p438
    %p440 = scmp.ne.s32.totalorder %s428, %s429
    %p441 = scmp.eq.s32.totalorder %s28, 1
    %p442 = por %p440, %p441
    %p444 = scmp.ne.s32.totalorder %s429, %s443
    %p445 = scmp.eq.s32.totalorder %s28, 0
    %p446 = por %p444, %p445
    %p447 = scmp.le.s32.totalorder 1, %s22
    %p448 = scmp.lt.s32.totalorder %s22, 3
    %p449 = pnand %p447, %p448
    %p450 = pneg %p449
    // Predicated region
    $region9: #{base_encoder_forward.1} parent=5 // pred_check
      _
    $region10: #{base_encoder_forward.1} parent=5 // pred_check_branch
      %452 = sbr.rel (%p449) target = $region12
    $region11: #{base_encoder_forward.1} parent=5 // pred_region
      %s453 = ssub.s32 %s22, 1
      // Predicated region
      $region13: #{base_encoder_forward.1} parent=11 // pred_check
        %p454 = pneg %p43
      $region14: #{base_encoder_forward.1} parent=11 // pred_check_branch
        %456 = sbr.rel (%p454) target = $region16
      $region15: #{base_encoder_forward.1} parent=11 // pred_region
        _
      $region16: #{base_encoder_forward.1} parent=11 // pred_fallthru
        _
      // Predicated region
      $region17: #{base_encoder_forward.1} parent=11 // pred_check
        %p457 = pneg %p64
      $region18: #{base_encoder_forward.1} parent=11 // pred_check_branch
        %459 = sbr.rel (%p457) target = $region20
      $region19: #{base_encoder_forward.1} parent=11 // pred_region
        _
      $region20: #{base_encoder_forward.1} parent=11 // pred_fallthru
        _
      // Predicated region
      $region21: #{base_encoder_forward.1} parent=11 // pred_check
        %p460 = pneg %p85
      $region22: #{base_encoder_forward.1} parent=11 // pred_check_branch
        %462 = sbr.rel (%p460) target = $region24
      $region23: #{base_encoder_forward.1} parent=11 // pred_region
        _
      $region24: #{base_encoder_forward.1} parent=11 // pred_fallthru
        _
      // Predicated region
      $region25: #{base_encoder_forward.1} parent=11 // pred_check
        %p463 = pneg %p106
      $region26: #{base_encoder_forward.1} parent=11 // pred_check_branch
        %465 = sbr.rel (%p463) target = $region28
      $region27: #{base_encoder_forward.1} parent=11 // pred_region
        _
      $region28: #{base_encoder_forward.1} parent=11 // pred_fallthru
        _
    $region12: #{base_encoder_forward.1} parent=5 // pred_fallthru
      _
    %p466 = scmp.lt.s32.totalorder %s22, 2
    // Predicated region
    $region29: #{base_encoder_forward.1} parent=5 // pred_check
      %p467 = pneg %p466
    $region30: #{base_encoder_forward.1} parent=5 // pred_check_branch
      %469 = sbr.rel (%p467) target = $region32
    $region31: #{base_encoder_forward.1} parent=5 // pred_region
      // Predicated region
      $region33: #{base_encoder_forward.1} parent=31 // pred_check
        %p470 = pneg %p126
      $region34: #{base_encoder_forward.1} parent=31 // pred_check_branch
        %472 = sbr.rel (%p470) target = $region36
      $region35: #{base_encoder_forward.1} parent=31 // pred_region
        %p473 = scmp.lt.s32.totalorder %s22, 1
        %s474 = scalar_select %p473, %s22, 1
        %s475 = smul.addr %s474, 4
        %s476 = smul.addr %s475, 8
        %s477 = scalar_lea.vmem %s4, %s476
      $region36: #{base_encoder_forward.1} parent=31 // pred_fallthru
        _
      // Predicated region
      $region37: #{base_encoder_forward.1} parent=31 // pred_check
        %p478 = pneg %p152
      $region38: #{base_encoder_forward.1} parent=31 // pred_check_branch
        %480 = sbr.rel (%p478) target = $region40
      $region39: #{base_encoder_forward.1} parent=31 // pred_region
        %p481 = scmp.lt.s32.totalorder %s22, 1
        %s482 = scalar_select %p481, %s22, 1
        %s483 = scalar_lea.vmem %s5, %s482
      $region40: #{base_encoder_forward.1} parent=31 // pred_fallthru
        _
      // Predicated region
      $region41: #{base_encoder_forward.1} parent=31 // pred_check
        %p484 = pneg %p178
      $region42: #{base_encoder_forward.1} parent=31 // pred_check_branch
        %486 = sbr.rel (%p484) target = $region44
      $region43: #{base_encoder_forward.1} parent=31 // pred_region
        %p487 = scmp.lt.s32.totalorder %s22, 1
        %s488 = scalar_select %p487, %s22, 1
        %s489 = smul.addr %s488, 4
        %s490 = smul.addr %s489, 8
        %s491 = scalar_lea.vmem %s6, %s490
      $region44: #{base_encoder_forward.1} parent=31 // pred_fallthru
        _
      // Predicated region
      $region45: #{base_encoder_forward.1} parent=31 // pred_check
        %p492 = pneg %p204
      $region46: #{base_encoder_forward.1} parent=31 // pred_check_branch
        %494 = sbr.rel (%p492) target = $region48
      $region47: #{base_encoder_forward.1} parent=31 // pred_region
        %p495 = scmp.lt.s32.totalorder %s22, 1
        %s496 = scalar_select %p495, %s22, 1
        %s497 = scalar_lea.vmem %s7, %s496
      $region48: #{base_encoder_forward.1} parent=31 // pred_fallthru
        _
      // Predicated region
      $region49: #{base_encoder_forward.1} parent=31 // pred_check
        %p498 = pneg %p230
      $region50: #{base_encoder_forward.1} parent=31 // pred_check_branch
        %500 = sbr.rel (%p498) target = $region52
      $region51: #{base_encoder_forward.1} parent=31 // pred_region
        %p501 = scmp.lt.s32.totalorder %s22, 1
        %s502 = scalar_select %p501, %s22, 1
        %s503 = scalar_lea.vmem %s8, %s502
      $region52: #{base_encoder_forward.1} parent=31 // pred_fallthru
        _
      // Predicated region
      $region53: #{base_encoder_forward.1} parent=31 // pred_check
        %p504 = pneg %p256
      $region54: #{base_encoder_forward.1} parent=31 // pred_check_branch
        %506 = sbr.rel (%p504) target = $region56
      $region55: #{base_encoder_forward.1} parent=31 // pred_region
        %p507 = scmp.lt.s32.totalorder %s22, 1
        %s508 = scalar_select %p507, %s22, 1
        %s509 = scalar_lea.vmem %s9, %s508
      $region56: #{base_encoder_forward.1} parent=31 // pred_fallthru
        _
      // Predicated region
      $region57: #{base_encoder_forward.1} parent=31 // pred_check
        %p510 = pneg %p282
      $region58: #{base_encoder_forward.1} parent=31 // pred_check_branch
        %512 = sbr.rel (%p510) target = $region60
      $region59: #{base_encoder_forward.1} parent=31 // pred_region
        %p513 = scmp.lt.s32.totalorder %s22, 1
        %s514 = scalar_select %p513, %s22, 1
        %s515 = smul.addr %s514, 4
        %s516 = smul.addr %s515, 8
        %s517 = scalar_lea.vmem %s10, %s516
      $region60: #{base_encoder_forward.1} parent=31 // pred_fallthru
        _
      // Predicated region
      $region61: #{base_encoder_forward.1} parent=31 // pred_check
        %p518 = pneg %p308
      $region62: #{base_encoder_forward.1} parent=31 // pred_check_branch
        %520 = sbr.rel (%p518) target = $region64
      $region63: #{base_encoder_forward.1} parent=31 // pred_region
        %p521 = scmp.lt.s32.totalorder %s22, 1
        %s522 = scalar_select %p521, %s22, 1
        %s523 = scalar_lea.vmem %s11, %s522
      $region64: #{base_encoder_forward.1} parent=31 // pred_fallthru
        _
      // Predicated region
      $region65: #{base_encoder_forward.1} parent=31 // pred_check
        %p524 = pneg %p334
      $region66: #{base_encoder_forward.1} parent=31 // pred_check_branch
        %526 = sbr.rel (%p524) target = $region68
      $region67: #{base_encoder_forward.1} parent=31 // pred_region
        %p527 = scmp.lt.s32.totalorder %s22, 1
        %s528 = scalar_select %p527, %s22, 1
        %s529 = smul.addr %s528, 8
        %s530 = smul.addr %s529, 8
        %s531 = scalar_lea.vmem %s12, %s530
      $region68: #{base_encoder_forward.1} parent=31 // pred_fallthru
        _
      // Predicated region
      $region69: #{base_encoder_forward.1} parent=31 // pred_check
        %p532 = pneg %p360
      $region70: #{base_encoder_forward.1} parent=31 // pred_check_branch
        %534 = sbr.rel (%p532) target = $region72
      $region71: #{base_encoder_forward.1} parent=31 // pred_region
        %p535 = scmp.lt.s32.totalorder %s22, 1
        %s536 = scalar_select %p535, %s22, 1
        %s537 = scalar_lea.vmem %s13, %s536
      $region72: #{base_encoder_forward.1} parent=31 // pred_fallthru
        _
      // Predicated region
      $region73: #{base_encoder_forward.1} parent=31 // pred_check
        %p538 = pneg %p386
      $region74: #{base_encoder_forward.1} parent=31 // pred_check_branch
        %540 = sbr.rel (%p538) target = $region76
      $region75: #{base_encoder_forward.1} parent=31 // pred_region
        %p541 = scmp.lt.s32.totalorder %s22, 1
        %s542 = scalar_select %p541, %s22, 1
        %s543 = scalar_lea.vmem %s14, %s542
      $region76: #{base_encoder_forward.1} parent=31 // pred_fallthru
        _
      // Predicated region
      $region77: #{base_encoder_forward.1} parent=31 // pred_check
        %p544 = pneg %p412
      $region78: #{base_encoder_forward.1} parent=31 // pred_check_branch
        %546 = sbr.rel (%p544) target = $region80
      $region79: #{base_encoder_forward.1} parent=31 // pred_region
        %p547 = scmp.lt.s32.totalorder %s22, 1
        %s548 = scalar_select %p547, %s22, 1
        %s549 = scalar_lea.vmem %s15, %s548
      $region80: #{base_encoder_forward.1} parent=31 // pred_fallthru
        _
    $region32: #{base_encoder_forward.1} parent=5 // pred_fallthru
      _
    %p550 = scmp.le.s32.totalorder 1, %s22
    %p551 = scmp.lt.s32.totalorder %s22, 3
    %p552 = pnand %p550, %p551
    %p553 = pneg %p552
    // Predicated region
    $region81: #{base_encoder_forward.1} parent=5 // pred_check
      _
    $region82: #{base_encoder_forward.1} parent=5 // pred_check_branch
      %555 = sbr.rel (%p552) target = $region84
    $region83: #{base_encoder_forward.1} parent=5 // pred_region
      %s556 = ssub.s32 %s22, 1
      %p557 = pneg %p43
      %p558 = pneg %p40
      %p559 = pneg %p64
      %p560 = pneg %p61
      %p561 = pneg %p85
      %p562 = pneg %p82
      %p563 = pneg %p106
      %p564 = pneg %p103
      %p565 = scmp.lt.s32.totalorder %s27, 1
      %s566 = scalar_select %p565, %s27, 1
      %s567 = smul.addr %s566, 4
      %s568 = smul.addr %s567, 8
      %s569 = scalar_lea.vmem %s4, %s568
      %p570 = pneg %p132
      %p571 = pneg %p129
      %p572 = scmp.lt.s32.totalorder %s27, 1
      %s573 = scalar_select %p572, %s27, 1
      %s574 = scalar_lea.vmem %s5, %s573
      %p575 = pneg %p158
      %p576 = pneg %p155
      %p577 = scmp.lt.s32.totalorder %s27, 1
      %s578 = scalar_select %p577, %s27, 1
      %s579 = smul.addr %s578, 4
      %s580 = smul.addr %s579, 8
      %s581 = scalar_lea.vmem %s6, %s580
      %p582 = pneg %p184
      %p583 = pneg %p181
      %p584 = scmp.lt.s32.totalorder %s27, 1
      %s585 = scalar_select %p584, %s27, 1
      %s586 = scalar_lea.vmem %s7, %s585
      %p587 = pneg %p210
      %p588 = pneg %p207
      %p589 = scmp.lt.s32.totalorder %s27, 1
      %s590 = scalar_select %p589, %s27, 1
      %s591 = scalar_lea.vmem %s8, %s590
      %p592 = pneg %p236
      %p593 = pneg %p233
      %p594 = scmp.lt.s32.totalorder %s27, 1
      %s595 = scalar_select %p594, %s27, 1
      %s596 = scalar_lea.vmem %s9, %s595
      %p597 = pneg %p262
      %p598 = pneg %p259
      %p599 = scmp.lt.s32.totalorder %s27, 1
      %s600 = scalar_select %p599, %s27, 1
      %s601 = smul.addr %s600, 4
      %s602 = smul.addr %s601, 8
      %s603 = scalar_lea.vmem %s10, %s602
      %p604 = pneg %p288
      %p605 = pneg %p285
      %p606 = scmp.lt.s32.totalorder %s27, 1
      %s607 = scalar_select %p606, %s27, 1
      %s608 = scalar_lea.vmem %s11, %s607
      %p609 = pneg %p314
      %p610 = pneg %p311
      %p611 = scmp.lt.s32.totalorder %s27, 1
      %s612 = scalar_select %p611, %s27, 1
      %s613 = smul.addr %s612, 8
      %s614 = smul.addr %s613, 8
      %s615 = scalar_lea.vmem %s12, %s614
      %p616 = pneg %p340
      %p617 = pneg %p337
      %p618 = scmp.lt.s32.totalorder %s27, 1
      %s619 = scalar_select %p618, %s27, 1
      %s620 = scalar_lea.vmem %s13, %s619
      %p621 = pneg %p366
      %p622 = pneg %p363
      %p623 = scmp.lt.s32.totalorder %s27, 1
      %s624 = scalar_select %p623, %s27, 1
      %s625 = scalar_lea.vmem %s14, %s624
      %p626 = pneg %p392
      %p627 = pneg %p389
      %p628 = scmp.lt.s32.totalorder %s27, 1
      %s629 = scalar_select %p628, %s27, 1
      %s630 = scalar_lea.vmem %s15, %s629
      %p631 = pneg %p418
      %p632 = pneg %p415
      %p633 = pneg %p439
      %p634 = pneg %p436
      %p635 = scmp.lt.s32.totalorder %s27, 1
      %s636 = scalar_select %p635, %s27, 1
      %s637 = smul.addr %s636, 4
      %s638 = smul.addr %s637, 8
      %s639 = scalar_lea.vmem %s4, %s638
      %p640 = scmp.lt.s32.totalorder %s27, 1
      %s641 = scalar_select %p640, %s27, 1
      %s642 = scalar_lea.vmem %s5, %s641
      %p643 = scmp.lt.s32.totalorder %s27, 1
      %s644 = scalar_select %p643, %s27, 1
      %s645 = smul.addr %s644, 4
      %s646 = smul.addr %s645, 8
      %s647 = scalar_lea.vmem %s6, %s646
      %p648 = scmp.lt.s32.totalorder %s27, 1
      %s649 = scalar_select %p648, %s27, 1
      %s650 = scalar_lea.vmem %s7, %s649
      %p651 = scmp.lt.s32.totalorder %s27, 1
      %s652 = scalar_select %p651, %s27, 1
      %s653 = scalar_lea.vmem %s8, %s652
      %p654 = scmp.lt.s32.totalorder %s27, 1
      %s655 = scalar_select %p654, %s27, 1
      %s656 = scalar_lea.vmem %s9, %s655
      %p657 = scmp.lt.s32.totalorder %s27, 1
      %s658 = scalar_select %p657, %s27, 1
      %s659 = smul.addr %s658, 4
      %s660 = smul.addr %s659, 8
      %s661 = scalar_lea.vmem %s10, %s660
      %p662 = scmp.lt.s32.totalorder %s27, 1
      %s663 = scalar_select %p662, %s27, 1
      %s664 = scalar_lea.vmem %s11, %s663
      %p665 = scmp.lt.s32.totalorder %s27, 1
      %s666 = scalar_select %p665, %s27, 1
      %s667 = smul.addr %s666, 8
      %s668 = smul.addr %s667, 8
      %s669 = scalar_lea.vmem %s12, %s668
      %p670 = scmp.lt.s32.totalorder %s27, 1
      %s671 = scalar_select %p670, %s27, 1
      %s672 = scalar_lea.vmem %s13, %s671
      %p673 = scmp.lt.s32.totalorder %s27, 1
      %s674 = scalar_select %p673, %s27, 1
      %s675 = scalar_lea.vmem %s14, %s674
      %p676 = scmp.lt.s32.totalorder %s27, 1
      %s677 = scalar_select %p676, %s27, 1
      %s678 = scalar_lea.vmem %s15, %s677
      %p679 = scmp.eq.s32.totalorder %s27, 0
      // Predicated region
      $region85: #{base_encoder_forward.1} parent=83 // pred_check
        %p680 = pneg %p679
      $region86: #{base_encoder_forward.1} parent=83 // pred_check_branch
        %682 = sbr.rel (%p680) target = $region88
      $region87: #{base_encoder_forward.1} parent=83 // pred_region
        %v683 = vld [vmem:[%s0] sm:$0xff]
        %v684 = vld [vmem:[%s0 + $0x8] sm:$0xff]
        %v685 = vld [vmem:[%s2] sm:$0x1]
        %v686 = vld [vmem:[%s3] sm:$0x1]
        %vm687 = vcmask 261120
        %v688 = vsel %vm687, %v683, 0.0
        %689 = vadd.xlane.f32.xlu0 %v688
        %v690 = vpop.xlane.xlu0 %689
        %v691 = vsel %vm687, %v684, 0.0
        %692 = vadd.xlane.f32.xlu0 %v691
        %v693 = vpop.xlane.xlu0 %692
        %v694 = vrcp.pop 32.0
        %v695 = vmul.f32 %v690, %v694
        %v696 = vmul.f32 %v693, %v694
        %v697 = vsub.f32 %v683, %v695
        %v698 = vsub.f32 %v684, %v696
        %v699 = vmul.f32 %v697, %v697
        %v700 = vmul.f32 %v698, %v698
        %v701 = vsel %vm687, %v699, 0.0
        %702 = vadd.xlane.f32.xlu0 %v701
        %v703 = vpop.xlane.xlu0 %702
        %v704 = vsel %vm687, %v700, 0.0
        %705 = vadd.xlane.f32.xlu0 %v704
        %v706 = vpop.xlane.xlu0 %705
        %v707 = vmul.f32 %v703, %v694
        %v708 = vmul.f32 %v706, %v694
        %v709 = vadd.f32 %v707, 1e-05
        %v710 = vadd.f32 %v708, 1e-05
        %v711 = vrsqrt.pop %v709
        %v712 = vrsqrt.pop %v710
        %v713 = vmul.f32 %v697, %v711
        %v714 = vmul.f32 %v698, %v712
        %v716 = vlaneseq
        %v717 = vshrl.u32 %v716, 7
        %v718 = vsub.s32 0, %v717
        %v719 = vrot.slane %v685, %v718
        %v721 = vmul.f32 %v713, %v719
        %v722 = vmul.f32 %v714, %v719
        %v724 = vlaneseq
        %v725 = vshrl.u32 %v724, 7
        %v726 = vsub.s32 0, %v725
        %v727 = vrot.slane %v686, %v726
        %v729 = vadd.f32 %v721, %v727
        %v730 = vadd.f32 %v722, %v727
        %731 = vst.msk [vmem:[%s16] sm:$0xff] %vm687, %v729
        %732 = vst.msk [vmem:[%s16 + $0x8] sm:$0xff] %vm687, %v730
      $region88: #{base_encoder_forward.1} parent=83 // pred_fallthru
        _
      %v733 = vld [vmem:[%s16] sm:$0xff]
      %v734 = vld [vmem:[%s16 + $0x8] sm:$0xff]
      %v735 = vld [vmem:[%s639] sm:$0xff]
      %v736 = vld [vmem:[%s639 + $0x8] sm:$0xff]
      %v737 = vld [vmem:[%s639 + $0x10] sm:$0xff]
      %v738 = vld [vmem:[%s639 + $0x18] sm:$0xff]
      %v739 = vld [vmem:[%s642] sm:$0x1]
      %v741 = vlaneseq
      %v742 = vshrl.u32 %v741, 7
      %v743 = vsub.s32 0, %v742
      %v744 = vrot.slane %v739, %v743
      %vm746 = vcmask 261120
      %v748 = vsel %vm746, %v733, 0
      %v751 = vsel %vm746, %v734, 0
      %753 = vmatprep.subr.mxu0 0.0
      %754 = vmatpush1.msra.mxu0 0.0
      %755 = vmatprep.subr.mxu0 0.0
      %756 = vmatpush1.msra.mxu0 0.0
      %757 = vmatprep.subr.mxu0 0.0
      %758 = vmatpush1.msra.mxu0 0.0
      %759 = vmatprep.subr.mxu0 0.0
      %760 = vmatpush1.msra.mxu0 0.0
      %761 = vmatprep.subr.mxu0 0.0
      %762 = vmatpush1.msra.mxu0 0.0
      %763 = vmatprep.subr.mxu0 0.0
      %764 = vmatpush1.msra.mxu0 0.0
      %765 = vmatprep.subr.mxu0 0.0
      %766 = vmatpush1.msra.mxu0 0.0
      %767 = vmatprep.subr.mxu0 0.0
      %768 = vmatpush1.msra.mxu0 0.0
      %769 = vmatprep.subr.mxu0 0.0
      %770 = vmatpush1.msra.mxu0 0.0
      %771 = vmatprep.subr.mxu0 0.0
      %772 = vmatpush1.msra.mxu0 0.0
      %773 = vmatprep.subr.mxu0 0.0
      %774 = vmatpush1.msra.mxu0 0.0
      %775 = vmatprep.subr.mxu0 0.0
      %776 = vmatpush1.msra.mxu0 0.0
      %777 = vmatprep.subr.mxu0 0.0
      %778 = vmatpush1.msra.mxu0 %v738
      %779 = vmatprep.subr.mxu0 0.0
      %780 = vmatpush1.msra.mxu0 %v737
      %781 = vmatprep.subr.mxu0 0.0
      %782 = vmatpush1.msra.mxu0 %v736
      %783 = vmatprep.subr.mxu0 0.0
      %784 = vmatpush1.msra.mxu0 %v735
      %785 = vmatprep.subr.mxu0 0.0
      %786 = vmatpush2.msra.mxu0 0.0
      %787 = vmatprep.subr.mxu0 0.0
      %788 = vmatpush2.msra.mxu0 0.0
      %789 = vmatprep.subr.mxu0 0.0
      %790 = vmatpush2.msra.mxu0 0.0
      %791 = vmatprep.subr.mxu0 0.0
      %792 = vmatpush2.msra.mxu0 0.0
      %793 = vmatprep.subr.mxu0 0.0
      %794 = vmatpush2.msra.mxu0 0.0
      %795 = vmatprep.subr.mxu0 0.0
      %796 = vmatpush2.msra.mxu0 0.0
      %797 = vmatprep.subr.mxu0 0.0
      %798 = vmatpush2.msra.mxu0 0.0
      %799 = vmatprep.subr.mxu0 0.0
      %800 = vmatpush2.msra.mxu0 0.0
      %801 = vmatprep.subr.mxu0 0.0
      %802 = vmatpush2.msra.mxu0 0.0
      %803 = vmatprep.subr.mxu0 0.0
      %804 = vmatpush2.msra.mxu0 0.0
      %805 = vmatprep.subr.mxu0 0.0
      %806 = vmatpush2.msra.mxu0 0.0
      %807 = vmatprep.subr.mxu0 0.0
      %808 = vmatpush2.msra.mxu0 0.0
      %809 = vmatprep.subr.mxu0 0.0
      %810 = vmatpush2.msra.mxu0 0.0
      %811 = vmatprep.subr.mxu0 0.0
      %812 = vmatpush2.msra.mxu0 0.0
      %813 = vmatprep.subr.mxu0 0.0
      %814 = vmatpush2.msra.mxu0 0.0
      %815 = vmatprep.subr.mxu0 0.0
      %816 = vmatpush2.msra.mxu0 0.0
      %817 = vmatprep.mubr.f32.mxu0 0.0
      %818 = vmatmul.mubr.f32.gmra.mxu0 %v748
      %v819 = vpop.f32.mrf.mxu0
      %v820 = vadd.f32 %v744, %v819
      %v821 = vpop.f32.mrf.mxu0
      %822 = vmatprep.mubr.f32.mxu0 0.0
      %823 = vmatmul.mubr.f32.gmra.mxu0 %v751
      %v824 = vpop.f32.mrf.mxu0
      %v825 = vadd.f32 %v744, %v824
      %v826 = vpop.f32.mrf.mxu0
      %827 = vdwg.mxu0
      %v828 = vld [vmem:[%s1] sm:$0x3]
      %830 = vrot.lane.b32.xlu0 %v820, 96
      %v831 = vpop.permute.xlu0 %830
      %vm832 = vcmask 64512
      %v833 = vsel %vm832, %v820, 0
      %v835 = vsel %vm832, %v831, 0
      %837 = vmatprep.subr.mxu0 0.0
      %838 = vmatpush1.xpose.msra.mxu0 0.0
      %839 = vmatprep.subr.mxu0 0.0
      %840 = vmatpush1.xpose.msra.mxu0 0.0
      %841 = vmatprep.subr.mxu0 0.0
      %842 = vmatpush1.xpose.msra.mxu0 0.0
      %843 = vmatprep.subr.mxu0 0.0
      %844 = vmatpush1.xpose.msra.mxu0 0.0
      %845 = vmatprep.subr.mxu0 0.0
      %846 = vmatpush1.xpose.msra.mxu0 0.0
      %847 = vmatprep.subr.mxu0 0.0
      %848 = vmatpush1.xpose.msra.mxu0 0.0
      %849 = vmatprep.subr.mxu0 0.0
      %850 = vmatpush1.xpose.msra.mxu0 0.0
      %851 = vmatprep.subr.mxu0 0.0
      %852 = vmatpush1.xpose.msra.mxu0 0.0
      %853 = vmatprep.subr.mxu0 0.0
      %854 = vmatpush1.xpose.msra.mxu0 0.0
      %855 = vmatprep.subr.mxu0 0.0
      %856 = vmatpush1.xpose.msra.mxu0 0.0
      %857 = vmatprep.subr.mxu0 0.0
      %858 = vmatpush1.xpose.msra.mxu0 0.0
      %859 = vmatprep.subr.mxu0 0.0
      %860 = vmatpush1.xpose.msra.mxu0 0.0
      %861 = vmatprep.subr.mxu0 0.0
      %862 = vmatpush1.xpose.msra.mxu0 0.0
      %863 = vmatprep.subr.mxu0 0.0
      %864 = vmatpush1.xpose.msra.mxu0 0.0
      %865 = vmatprep.subr.mxu0 0.0
      %866 = vmatpush1.xpose.msra.mxu0 0.0
      %867 = vmatprep.subr.mxu0 0.0
      %868 = vmatpush1.xpose.msra.mxu0 %v835
      %869 = vmatprep.subr.mxu0 0.0
      %870 = vmatpush2.xpose.msra.mxu0 0.0
      %871 = vmatprep.subr.mxu0 0.0
      %872 = vmatpush2.xpose.msra.mxu0 0.0
      %873 = vmatprep.subr.mxu0 0.0
      %874 = vmatpush2.xpose.msra.mxu0 0.0
      %875 = vmatprep.subr.mxu0 0.0
      %876 = vmatpush2.xpose.msra.mxu0 0.0
      %877 = vmatprep.subr.mxu0 0.0
      %878 = vmatpush2.xpose.msra.mxu0 0.0
      %879 = vmatprep.subr.mxu0 0.0
      %880 = vmatpush2.xpose.msra.mxu0 0.0
      %881 = vmatprep.subr.mxu0 0.0
      %882 = vmatpush2.xpose.msra.mxu0 0.0
      %883 = vmatprep.subr.mxu0 0.0
      %884 = vmatpush2.xpose.msra.mxu0 0.0
      %885 = vmatprep.subr.mxu0 0.0
      %886 = vmatpush2.xpose.msra.mxu0 0.0
      %887 = vmatprep.subr.mxu0 0.0
      %888 = vmatpush2.xpose.msra.mxu0 0.0
      %889 = vmatprep.subr.mxu0 0.0
      %890 = vmatpush2.xpose.msra.mxu0 0.0
      %891 = vmatprep.subr.mxu0 0.0
      %892 = vmatpush2.xpose.msra.mxu0 0.0
      %893 = vmatprep.subr.mxu0 0.0
      %894 = vmatpush2.xpose.msra.mxu0 0.0
      %895 = vmatprep.subr.mxu0 0.0
      %896 = vmatpush2.xpose.msra.mxu0 0.0
      %897 = vmatprep.subr.mxu0 0.0
      %898 = vmatpush2.xpose.msra.mxu0 0.0
      %899 = vmatprep.subr.mxu0 0.0
      %900 = vmatpush2.xpose.msra.mxu0 0.0
      %901 = vmatprep.mubr.f32.mxu0 0.0
      %902 = vmatmul.mubr.f32.gmra.mxu0 %v833
      %v903 = vpop.f32.mrf.mxu0
      %v904 = vadd.f32 0.0, %v903
      %v905 = vpop.f32.mrf.mxu0
      %906 = vdwg.mxu0
      %908 = vrot.lane.b32.xlu0 %v825, 96
      %v909 = vpop.permute.xlu0 %908
      %v910 = vsel %vm832, %v825, 0
      %v912 = vsel %vm832, %v909, 0
      %914 = vmatprep.subr.mxu0 0.0
      %915 = vmatpush1.xpose.msra.mxu0 0.0
      %916 = vmatprep.subr.mxu0 0.0
      %917 = vmatpush1.xpose.msra.mxu0 0.0
      %918 = vmatprep.subr.mxu0 0.0
      %919 = vmatpush1.xpose.msra.mxu0 0.0
      %920 = vmatprep.subr.mxu0 0.0
      %921 = vmatpush1.xpose.msra.mxu0 0.0
      %922 = vmatprep.subr.mxu0 0.0
      %923 = vmatpush1.xpose.msra.mxu0 0.0
      %924 = vmatprep.subr.mxu0 0.0
      %925 = vmatpush1.xpose.msra.mxu0 0.0
      %926 = vmatprep.subr.mxu0 0.0
      %927 = vmatpush1.xpose.msra.mxu0 0.0
      %928 = vmatprep.subr.mxu0 0.0
      %929 = vmatpush1.xpose.msra.mxu0 0.0
      %930 = vmatprep.subr.mxu0 0.0
      %931 = vmatpush1.xpose.msra.mxu0 0.0
      %932 = vmatprep.subr.mxu0 0.0
      %933 = vmatpush1.xpose.msra.mxu0 0.0
      %934 = vmatprep.subr.mxu0 0.0
      %935 = vmatpush1.xpose.msra.mxu0 0.0
      %936 = vmatprep.subr.mxu0 0.0
      %937 = vmatpush1.xpose.msra.mxu0 0.0
      %938 = vmatprep.subr.mxu0 0.0
      %939 = vmatpush1.xpose.msra.mxu0 0.0
      %940 = vmatprep.subr.mxu0 0.0
      %941 = vmatpush1.xpose.msra.mxu0 0.0
      %942 = vmatprep.subr.mxu0 0.0
      %943 = vmatpush1.xpose.msra.mxu0 0.0
      %944 = vmatprep.subr.mxu0 0.0
      %945 = vmatpush1.xpose.msra.mxu0 %v912
      %946 = vmatprep.subr.mxu0 0.0
      %947 = vmatpush2.xpose.msra.mxu0 0.0
      %948 = vmatprep.subr.mxu0 0.0
      %949 = vmatpush2.xpose.msra.mxu0 0.0
      %950 = vmatprep.subr.mxu0 0.0
      %951 = vmatpush2.xpose.msra.mxu0 0.0
      %952 = vmatprep.subr.mxu0 0.0
      %953 = vmatpush2.xpose.msra.mxu0 0.0
      %954 = vmatprep.subr.mxu0 0.0
      %955 = vmatpush2.xpose.msra.mxu0 0.0
      %956 = vmatprep.subr.mxu0 0.0
      %957 = vmatpush2.xpose.msra.mxu0 0.0
      %958 = vmatprep.subr.mxu0 0.0
      %959 = vmatpush2.xpose.msra.mxu0 0.0
      %960 = vmatprep.subr.mxu0 0.0
      %961 = vmatpush2.xpose.msra.mxu0 0.0
      %962 = vmatprep.subr.mxu0 0.0
      %963 = vmatpush2.xpose.msra.mxu0 0.0
      %964 = vmatprep.subr.mxu0 0.0
      %965 = vmatpush2.xpose.msra.mxu0 0.0
      %966 = vmatprep.subr.mxu0 0.0
      %967 = vmatpush2.xpose.msra.mxu0 0.0
      %968 = vmatprep.subr.mxu0 0.0
      %969 = vmatpush2.xpose.msra.mxu0 0.0
      %970 = vmatprep.subr.mxu0 0.0
      %971 = vmatpush2.xpose.msra.mxu0 0.0
      %972 = vmatprep.subr.mxu0 0.0
      %973 = vmatpush2.xpose.msra.mxu0 0.0
      %974 = vmatprep.subr.mxu0 0.0
      %975 = vmatpush2.xpose.msra.mxu0 0.0
      %976 = vmatprep.subr.mxu0 0.0
      %977 = vmatpush2.xpose.msra.mxu0 0.0
      %978 = vmatprep.mubr.f32.mxu0 0.0
      %979 = vmatmul.mubr.f32.gmra.mxu0 %v910
      %v980 = vpop.f32.mrf.mxu0
      %v981 = vadd.f32 0.0, %v980
      %v982 = vpop.f32.mrf.mxu0
      %983 = vdwg.mxu0
      %v984 = vmul.f32 %v904, 0.35355338
      %v985 = vmul.f32 %v981, 0.35355338
      %v988 = vunpack.c.l.s4 1966171168
      %v989 = vunpack.c.0.s8 %v988
      %v990 = vlaneseq
      %v991 = vshrl.u32 %v990, 7
      %v992 = vsub.s32 %v989, %v991
      %v993 = vrot.slane %v828, %v992
      %v994 = vcombine.high %v993, %v993
      %v996 = vunpack.c.l.s4 1966171168
      %v997 = vunpack.c.0.s8 %v996
      %v998 = vlaneseq
      %v999 = vshrl.u32 %v998, 7
      %v1000 = vsub.s32 %v997, %v999
      %v1001 = vrot.slane %v993, %v1000
      %v1003 = vunpack.c.l.s4 1966171168
      %v1004 = vunpack.c.0.s8 %v1003
      %v1005 = vlaneseq
      %v1006 = vshrl.u32 %v1005, 7
      %v1007 = vsub.s32 %v1004, %v1006
      %v1008 = vrot.slane %v994, %v1007
      %v1009 = vlaneseq
      %v1010 = vshrl.u32 %v1009, 7
      %v1011 = vsub.s32 0, %v1010
      %v1012 = vrot.slane %v1001, %v1011
      %v1013 = vlaneseq
      %v1014 = vshrl.u32 %v1013, 7
      %v1015 = vsub.s32 0, %v1014
      %v1016 = vrot.slane %v1008, %v1015
      %v1019 = vadd.f32 %v984, %v1012
      %v1020 = vadd.f32 %v985, %v1016
      %v1021 = vsel %vm832, %v1019, -inf
      %1022 = vmax.xlane.f32.xlu0 %v1021
      %v1023 = vpop.xlane.xlu0 %1022
      %v1024 = vsel %vm832, %v1020, -inf
      %1025 = vmax.xlane.f32.xlu0 %v1024
      %v1026 = vpop.xlane.xlu0 %1025
      %v1027 = vsub.f32 %v1019, %v1023
      %v1028 = vsub.f32 %v1020, %v1026
      %v1029 = vmul.f32 %v1027, 1.442695
      %v1030 = vpow.pop %v1029
      %v1031 = vmul.f32 %v1028, 1.442695
      %v1032 = vpow.pop %v1031
      %v1033 = vsel %vm832, %v1030, 0.0
      %1034 = vadd.xlane.f32.xlu0 %v1033
      %v1035 = vpop.xlane.xlu0 %1034
      %v1036 = vsel %vm832, %v1032, 0.0
      %1037 = vadd.xlane.f32.xlu0 %v1036
      %v1038 = vpop.xlane.xlu0 %1037
      %v1039 = vrcp.pop %v1035
      %v1040 = vrcp.pop %v1038
      %v1041 = vmul.f32 %v1030, %v1039
      %v1042 = vmul.f32 %v1032, %v1040
      %1043 = vrot.lane.b32.xlu0 %v820, 64
      %v1044 = vpop.permute.xlu0 %1043
      %v1047 = vsel %vm832, %v1041, 0
      %1049 = vmatprep.subr.mxu0 0.0
      %1050 = vmatpush1.msra.mxu0 0.0
      %1051 = vmatprep.subr.mxu0 0.0
      %1052 = vmatpush1.msra.mxu0 0.0
      %1053 = vmatprep.subr.mxu0 0.0
      %1054 = vmatpush1.msra.mxu0 0.0
      %1055 = vmatprep.subr.mxu0 0.0
      %1056 = vmatpush1.msra.mxu0 0.0
      %1057 = vmatprep.subr.mxu0 0.0
      %1058 = vmatpush1.msra.mxu0 0.0
      %1059 = vmatprep.subr.mxu0 0.0
      %1060 = vmatpush1.msra.mxu0 0.0
      %1061 = vmatprep.subr.mxu0 0.0
      %1062 = vmatpush1.msra.mxu0 0.0
      %1063 = vmatprep.subr.mxu0 0.0
      %1064 = vmatpush1.msra.mxu0 0.0
      %1065 = vmatprep.subr.mxu0 0.0
      %1066 = vmatpush1.msra.mxu0 0.0
      %1067 = vmatprep.subr.mxu0 0.0
      %1068 = vmatpush1.msra.mxu0 0.0
      %1069 = vmatprep.subr.mxu0 0.0
      %1070 = vmatpush1.msra.mxu0 0.0
      %1071 = vmatprep.subr.mxu0 0.0
      %1072 = vmatpush1.msra.mxu0 0.0
      %1073 = vmatprep.subr.mxu0 0.0
      %1074 = vmatpush1.msra.mxu0 0.0
      %1075 = vmatprep.subr.mxu0 0.0
      %1076 = vmatpush1.msra.mxu0 0.0
      %1077 = vmatprep.subr.mxu0 0.0
      %1078 = vmatpush1.msra.mxu0 0.0
      %1079 = vmatprep.subr.mxu0 0.0
      %1080 = vmatpush1.msra.mxu0 %v1044
      %1081 = vmatprep.subr.mxu0 0.0
      %1082 = vmatpush2.msra.mxu0 0.0
      %1083 = vmatprep.subr.mxu0 0.0
      %1084 = vmatpush2.msra.mxu0 0.0
      %1085 = vmatprep.subr.mxu0 0.0
      %1086 = vmatpush2.msra.mxu0 0.0
      %1087 = vmatprep.subr.mxu0 0.0
      %1088 = vmatpush2.msra.mxu0 0.0
      %1089 = vmatprep.subr.mxu0 0.0
      %1090 = vmatpush2.msra.mxu0 0.0
      %1091 = vmatprep.subr.mxu0 0.0
      %1092 = vmatpush2.msra.mxu0 0.0
      %1093 = vmatprep.subr.mxu0 0.0
      %1094 = vmatpush2.msra.mxu0 0.0
      %1095 = vmatprep.subr.mxu0 0.0
      %1096 = vmatpush2.msra.mxu0 0.0
      %1097 = vmatprep.subr.mxu0 0.0
      %1098 = vmatpush2.msra.mxu0 0.0
      %1099 = vmatprep.subr.mxu0 0.0
      %1100 = vmatpush2.msra.mxu0 0.0
      %1101 = vmatprep.subr.mxu0 0.0
      %1102 = vmatpush2.msra.mxu0 0.0
      %1103 = vmatprep.subr.mxu0 0.0
      %1104 = vmatpush2.msra.mxu0 0.0
      %1105 = vmatprep.subr.mxu0 0.0
      %1106 = vmatpush2.msra.mxu0 0.0
      %1107 = vmatprep.subr.mxu0 0.0
      %1108 = vmatpush2.msra.mxu0 0.0
      %1109 = vmatprep.subr.mxu0 0.0
      %1110 = vmatpush2.msra.mxu0 0.0
      %1111 = vmatprep.subr.mxu0 0.0
      %1112 = vmatpush2.msra.mxu0 0.0
      %1113 = vmatprep.mubr.f32.mxu0 0.0
      %1114 = vmatmul.mubr.f32.gmra.mxu0 %v1047
      %v1115 = vpop.f32.mrf.mxu0
      %v1116 = vadd.f32 0.0, %v1115
      %v1117 = vpop.f32.mrf.mxu0
      %1118 = vdwg.mxu0
      %1119 = vrot.lane.b32.xlu0 %v825, 64
      %v1120 = vpop.permute.xlu0 %1119
      %v1123 = vsel %vm832, %v1042, 0
      %1125 = vmatprep.subr.mxu0 0.0
      %1126 = vmatpush1.msra.mxu0 0.0
      %1127 = vmatprep.subr.mxu0 0.0
      %1128 = vmatpush1.msra.mxu0 0.0
      %1129 = vmatprep.subr.mxu0 0.0
      %1130 = vmatpush1.msra.mxu0 0.0
      %1131 = vmatprep.subr.mxu0 0.0
      %1132 = vmatpush1.msra.mxu0 0.0
      %1133 = vmatprep.subr.mxu0 0.0
      %1134 = vmatpush1.msra.mxu0 0.0
      %1135 = vmatprep.subr.mxu0 0.0
      %1136 = vmatpush1.msra.mxu0 0.0
      %1137 = vmatprep.subr.mxu0 0.0
      %1138 = vmatpush1.msra.mxu0 0.0
      %1139 = vmatprep.subr.mxu0 0.0
      %1140 = vmatpush1.msra.mxu0 0.0
      %1141 = vmatprep.subr.mxu0 0.0
      %1142 = vmatpush1.msra.mxu0 0.0
      %1143 = vmatprep.subr.mxu0 0.0
      %1144 = vmatpush1.msra.mxu0 0.0
      %1145 = vmatprep.subr.mxu0 0.0
      %1146 = vmatpush1.msra.mxu0 0.0
      %1147 = vmatprep.subr.mxu0 0.0
      %1148 = vmatpush1.msra.mxu0 0.0
      %1149 = vmatprep.subr.mxu0 0.0
      %1150 = vmatpush1.msra.mxu0 0.0
      %1151 = vmatprep.subr.mxu0 0.0
      %1152 = vmatpush1.msra.mxu0 0.0
      %1153 = vmatprep.subr.mxu0 0.0
      %1154 = vmatpush1.msra.mxu0 0.0
      %1155 = vmatprep.subr.mxu0 0.0
      %1156 = vmatpush1.msra.mxu0 %v1120
      %1157 = vmatprep.subr.mxu0 0.0
      %1158 = vmatpush2.msra.mxu0 0.0
      %1159 = vmatprep.subr.mxu0 0.0
      %1160 = vmatpush2.msra.mxu0 0.0
      %1161 = vmatprep.subr.mxu0 0.0
      %1162 = vmatpush2.msra.mxu0 0.0
      %1163 = vmatprep.subr.mxu0 0.0
      %1164 = vmatpush2.msra.mxu0 0.0
      %1165 = vmatprep.subr.mxu0 0.0
      %1166 = vmatpush2.msra.mxu0 0.0
      %1167 = vmatprep.subr.mxu0 0.0
      %1168 = vmatpush2.msra.mxu0 0.0
      %1169 = vmatprep.subr.mxu0 0.0
      %1170 = vmatpush2.msra.mxu0 0.0
      %1171 = vmatprep.subr.mxu0 0.0
      %1172 = vmatpush2.msra.mxu0 0.0
      %1173 = vmatprep.subr.mxu0 0.0
      %1174 = vmatpush2.msra.mxu0 0.0
      %1175 = vmatprep.subr.mxu0 0.0
      %1176 = vmatpush2.msra.mxu0 0.0
      %1177 = vmatprep.subr.mxu0 0.0
      %1178 = vmatpush2.msra.mxu0 0.0
      %1179 = vmatprep.subr.mxu0 0.0
      %1180 = vmatpush2.msra.mxu0 0.0
      %1181 = vmatprep.subr.mxu0 0.0
      %1182 = vmatpush2.msra.mxu0 0.0
      %1183 = vmatprep.subr.mxu0 0.0
      %1184 = vmatpush2.msra.mxu0 0.0
      %1185 = vmatprep.subr.mxu0 0.0
      %1186 = vmatpush2.msra.mxu0 0.0
      %1187 = vmatprep.subr.mxu0 0.0
      %1188 = vmatpush2.msra.mxu0 0.0
      %1189 = vmatprep.mubr.f32.mxu0 0.0
      %1190 = vmatmul.mubr.f32.gmra.mxu0 %v1123
      %v1191 = vpop.f32.mrf.mxu0
      %v1192 = vadd.f32 0.0, %v1191
      %v1193 = vpop.f32.mrf.mxu0
      %1194 = vdwg.mxu0
      %1195 = vst.msk [vmem:[#allocation2] sm:$0xff] %vm832, %v1116
      %1196 = vst.msk [vmem:[#allocation2 + $0x8] sm:$0xff] %vm832, %v1192
      %1197 = vrot.lane.b32.xlu0 %v820, 120
      %v1198 = vpop.permute.xlu0 %1197
      %1199 = vrot.lane.b32.xlu0 %v820, 88
      %v1200 = vpop.permute.xlu0 %1199
      %v1201 = vsel %vm832, %v1198, 0
      %v1203 = vsel %vm832, %v1200, 0
      %1205 = vmatprep.subr.mxu0 0.0
      %1206 = vmatpush1.xpose.msra.mxu0 0.0
      %1207 = vmatprep.subr.mxu0 0.0
      %1208 = vmatpush1.xpose.msra.mxu0 0.0
      %1209 = vmatprep.subr.mxu0 0.0
      %1210 = vmatpush1.xpose.msra.mxu0 0.0
      %1211 = vmatprep.subr.mxu0 0.0
      %1212 = vmatpush1.xpose.msra.mxu0 0.0
      %1213 = vmatprep.subr.mxu0 0.0
      %1214 = vmatpush1.xpose.msra.mxu0 0.0
      %1215 = vmatprep.subr.mxu0 0.0
      %1216 = vmatpush1.xpose.msra.mxu0 0.0
      %1217 = vmatprep.subr.mxu0 0.0
      %1218 = vmatpush1.xpose.msra.mxu0 0.0
      %1219 = vmatprep.subr.mxu0 0.0
      %1220 = vmatpush1.xpose.msra.mxu0 0.0
      %1221 = vmatprep.subr.mxu0 0.0
      %1222 = vmatpush1.xpose.msra.mxu0 0.0
      %1223 = vmatprep.subr.mxu0 0.0
      %1224 = vmatpush1.xpose.msra.mxu0 0.0
      %1225 = vmatprep.subr.mxu0 0.0
      %1226 = vmatpush1.xpose.msra.mxu0 0.0
      %1227 = vmatprep.subr.mxu0 0.0
      %1228 = vmatpush1.xpose.msra.mxu0 0.0
      %1229 = vmatprep.subr.mxu0 0.0
      %1230 = vmatpush1.xpose.msra.mxu0 0.0
      %1231 = vmatprep.subr.mxu0 0.0
      %1232 = vmatpush1.xpose.msra.mxu0 0.0
      %1233 = vmatprep.subr.mxu0 0.0
      %1234 = vmatpush1.xpose.msra.mxu0 0.0
      %1235 = vmatprep.subr.mxu0 0.0
      %1236 = vmatpush1.xpose.msra.mxu0 %v1203
      %1237 = vmatprep.subr.mxu0 0.0
      %1238 = vmatpush2.xpose.msra.mxu0 0.0
      %1239 = vmatprep.subr.mxu0 0.0
      %1240 = vmatpush2.xpose.msra.mxu0 0.0
      %1241 = vmatprep.subr.mxu0 0.0
      %1242 = vmatpush2.xpose.msra.mxu0 0.0
      %1243 = vmatprep.subr.mxu0 0.0
      %1244 = vmatpush2.xpose.msra.mxu0 0.0
      %1245 = vmatprep.subr.mxu0 0.0
      %1246 = vmatpush2.xpose.msra.mxu0 0.0
      %1247 = vmatprep.subr.mxu0 0.0
      %1248 = vmatpush2.xpose.msra.mxu0 0.0
      %1249 = vmatprep.subr.mxu0 0.0
      %1250 = vmatpush2.xpose.msra.mxu0 0.0
      %1251 = vmatprep.subr.mxu0 0.0
      %1252 = vmatpush2.xpose.msra.mxu0 0.0
      %1253 = vmatprep.subr.mxu0 0.0
      %1254 = vmatpush2.xpose.msra.mxu0 0.0
      %1255 = vmatprep.subr.mxu0 0.0
      %1256 = vmatpush2.xpose.msra.mxu0 0.0
      %1257 = vmatprep.subr.mxu0 0.0
      %1258 = vmatpush2.xpose.msra.mxu0 0.0
      %1259 = vmatprep.subr.mxu0 0.0
      %1260 = vmatpush2.xpose.msra.mxu0 0.0
      %1261 = vmatprep.subr.mxu0 0.0
      %1262 = vmatpush2.xpose.msra.mxu0 0.0
      %1263 = vmatprep.subr.mxu0 0.0
      %1264 = vmatpush2.xpose.msra.mxu0 0.0
      %1265 = vmatprep.subr.mxu0 0.0
      %1266 = vmatpush2.xpose.msra.mxu0 0.0
      %1267 = vmatprep.subr.mxu0 0.0
      %1268 = vmatpush2.xpose.msra.mxu0 0.0
      %1269 = vmatprep.mubr.f32.mxu0 0.0
      %1270 = vmatmul.mubr.f32.gmra.mxu0 %v1201
      %v1271 = vpop.f32.mrf.mxu0
      %v1272 = vadd.f32 0.0, %v1271
      %v1273 = vpop.f32.mrf.mxu0
      %1274 = vdwg.mxu0
      %1275 = vrot.lane.b32.xlu0 %v825, 120
      %v1276 = vpop.permute.xlu0 %1275
      %1277 = vrot.lane.b32.xlu0 %v825, 88
      %v1278 = vpop.permute.xlu0 %1277
      %v1279 = vsel %vm832, %v1276, 0
      %v1281 = vsel %vm832, %v1278, 0
      %1283 = vmatprep.subr.mxu0 0.0
      %1284 = vmatpush1.xpose.msra.mxu0 0.0
      %1285 = vmatprep.subr.mxu0 0.0
      %1286 = vmatpush1.xpose.msra.mxu0 0.0
      %1287 = vmatprep.subr.mxu0 0.0
      %1288 = vmatpush1.xpose.msra.mxu0 0.0
      %1289 = vmatprep.subr.mxu0 0.0
      %1290 = vmatpush1.xpose.msra.mxu0 0.0
      %1291 = vmatprep.subr.mxu0 0.0
      %1292 = vmatpush1.xpose.msra.mxu0 0.0
      %1293 = vmatprep.subr.mxu0 0.0
      %1294 = vmatpush1.xpose.msra.mxu0 0.0
      %1295 = vmatprep.subr.mxu0 0.0
      %1296 = vmatpush1.xpose.msra.mxu0 0.0
      %1297 = vmatprep.subr.mxu0 0.0
      %1298 = vmatpush1.xpose.msra.mxu0 0.0
      %1299 = vmatprep.subr.mxu0 0.0
      %1300 = vmatpush1.xpose.msra.mxu0 0.0
      %1301 = vmatprep.subr.mxu0 0.0
      %1302 = vmatpush1.xpose.msra.mxu0 0.0
      %1303 = vmatprep.subr.mxu0 0.0
      %1304 = vmatpush1.xpose.msra.mxu0 0.0
      %1305 = vmatprep.subr.mxu0 0.0
      %1306 = vmatpush1.xpose.msra.mxu0 0.0
      %1307 = vmatprep.subr.mxu0 0.0
      %1308 = vmatpush1.xpose.msra.mxu0 0.0
      %1309 = vmatprep.subr.mxu0 0.0
      %1310 = vmatpush1.xpose.msra.mxu0 0.0
      %1311 = vmatprep.subr.mxu0 0.0
      %1312 = vmatpush1.xpose.msra.mxu0 0.0
      %1313 = vmatprep.subr.mxu0 0.0
      %1314 = vmatpush1.xpose.msra.mxu0 %v1281
      %1315 = vmatprep.subr.mxu0 0.0
      %1316 = vmatpush2.xpose.msra.mxu0 0.0
      %1317 = vmatprep.subr.mxu0 0.0
      %1318 = vmatpush2.xpose.msra.mxu0 0.0
      %1319 = vmatprep.subr.mxu0 0.0
      %1320 = vmatpush2.xpose.msra.mxu0 0.0
      %1321 = vmatprep.subr.mxu0 0.0
      %1322 = vmatpush2.xpose.msra.mxu0 0.0
      %1323 = vmatprep.subr.mxu0 0.0
      %1324 = vmatpush2.xpose.msra.mxu0 0.0
      %1325 = vmatprep.subr.mxu0 0.0
      %1326 = vmatpush2.xpose.msra.mxu0 0.0
      %1327 = vmatprep.subr.mxu0 0.0
      %1328 = vmatpush2.xpose.msra.mxu0 0.0
      %1329 = vmatprep.subr.mxu0 0.0
      %1330 = vmatpush2.xpose.msra.mxu0 0.0
      %1331 = vmatprep.subr.mxu0 0.0
      %1332 = vmatpush2.xpose.msra.mxu0 0.0
      %1333 = vmatprep.subr.mxu0 0.0
      %1334 = vmatpush2.xpose.msra.mxu0 0.0
      %1335 = vmatprep.subr.mxu0 0.0
      %1336 = vmatpush2.xpose.msra.mxu0 0.0
      %1337 = vmatprep.subr.mxu0 0.0
      %1338 = vmatpush2.xpose.msra.mxu0 0.0
      %1339 = vmatprep.subr.mxu0 0.0
      %1340 = vmatpush2.xpose.msra.mxu0 0.0
      %1341 = vmatprep.subr.mxu0 0.0
      %1342 = vmatpush2.xpose.msra.mxu0 0.0
      %1343 = vmatprep.subr.mxu0 0.0
      %1344 = vmatpush2.xpose.msra.mxu0 0.0
      %1345 = vmatprep.subr.mxu0 0.0
      %1346 = vmatpush2.xpose.msra.mxu0 0.0
      %1347 = vmatprep.mubr.f32.mxu0 0.0
      %1348 = vmatmul.mubr.f32.gmra.mxu0 %v1279
      %v1349 = vpop.f32.mrf.mxu0
      %v1350 = vadd.f32 0.0, %v1349
      %v1351 = vpop.f32.mrf.mxu0
      %1352 = vdwg.mxu0
      %v1353 = vmul.f32 %v1272, 0.35355338
      %v1354 = vmul.f32 %v1350, 0.35355338
      %v1355 = vadd.f32 %v1353, %v1012
      %v1356 = vadd.f32 %v1354, %v1016
      %v1357 = vsel %vm832, %v1355, -inf
      %1358 = vmax.xlane.f32.xlu0 %v1357
      %v1359 = vpop.xlane.xlu0 %1358
      %v1360 = vsel %vm832, %v1356, -inf
      %1361 = vmax.xlane.f32.xlu0 %v1360
      %v1362 = vpop.xlane.xlu0 %1361
      %v1363 = vsub.f32 %v1355, %v1359
      %v1364 = vsub.f32 %v1356, %v1362
      %v1365 = vmul.f32 %v1363, 1.442695
      %v1366 = vpow.pop %v1365
      %v1367 = vmul.f32 %v1364, 1.442695
      %v1368 = vpow.pop %v1367
      %v1369 = vsel %vm832, %v1366, 0.0
      %1370 = vadd.xlane.f32.xlu0 %v1369
      %v1371 = vpop.xlane.xlu0 %1370
      %v1372 = vsel %vm832, %v1368, 0.0
      %1373 = vadd.xlane.f32.xlu0 %v1372
      %v1374 = vpop.xlane.xlu0 %1373
      %v1375 = vrcp.pop %v1371
      %v1376 = vrcp.pop %v1374
      %v1377 = vmul.f32 %v1366, %v1375
      %v1378 = vmul.f32 %v1368, %v1376
      %1379 = vrot.lane.b32.xlu0 %v820, 56
      %v1380 = vpop.permute.xlu0 %1379
      %v1383 = vsel %vm832, %v1377, 0
      %1385 = vmatprep.subr.mxu0 0.0
      %1386 = vmatpush1.msra.mxu0 0.0
      %1387 = vmatprep.subr.mxu0 0.0
      %1388 = vmatpush1.msra.mxu0 0.0
      %1389 = vmatprep.subr.mxu0 0.0
      %1390 = vmatpush1.msra.mxu0 0.0
      %1391 = vmatprep.subr.mxu0 0.0
      %1392 = vmatpush1.msra.mxu0 0.0
      %1393 = vmatprep.subr.mxu0 0.0
      %1394 = vmatpush1.msra.mxu0 0.0
      %1395 = vmatprep.subr.mxu0 0.0
      %1396 = vmatpush1.msra.mxu0 0.0
      %1397 = vmatprep.subr.mxu0 0.0
      %1398 = vmatpush1.msra.mxu0 0.0
      %1399 = vmatprep.subr.mxu0 0.0
      %1400 = vmatpush1.msra.mxu0 0.0
      %1401 = vmatprep.subr.mxu0 0.0
      %1402 = vmatpush1.msra.mxu0 0.0
      %1403 = vmatprep.subr.mxu0 0.0
      %1404 = vmatpush1.msra.mxu0 0.0
      %1405 = vmatprep.subr.mxu0 0.0
      %1406 = vmatpush1.msra.mxu0 0.0
      %1407 = vmatprep.subr.mxu0 0.0
      %1408 = vmatpush1.msra.mxu0 0.0
      %1409 = vmatprep.subr.mxu0 0.0
      %1410 = vmatpush1.msra.mxu0 0.0
      %1411 = vmatprep.subr.mxu0 0.0
      %1412 = vmatpush1.msra.mxu0 0.0
      %1413 = vmatprep.subr.mxu0 0.0
      %1414 = vmatpush1.msra.mxu0 0.0
      %1415 = vmatprep.subr.mxu0 0.0
      %1416 = vmatpush1.msra.mxu0 %v1380
      %1417 = vmatprep.subr.mxu0 0.0
      %1418 = vmatpush2.msra.mxu0 0.0
      %1419 = vmatprep.subr.mxu0 0.0
      %1420 = vmatpush2.msra.mxu0 0.0
      %1421 = vmatprep.subr.mxu0 0.0
      %1422 = vmatpush2.msra.mxu0 0.0
      %1423 = vmatprep.subr.mxu0 0.0
      %1424 = vmatpush2.msra.mxu0 0.0
      %1425 = vmatprep.subr.mxu0 0.0
      %1426 = vmatpush2.msra.mxu0 0.0
      %1427 = vmatprep.subr.mxu0 0.0
      %1428 = vmatpush2.msra.mxu0 0.0
      %1429 = vmatprep.subr.mxu0 0.0
      %1430 = vmatpush2.msra.mxu0 0.0
      %1431 = vmatprep.subr.mxu0 0.0
      %1432 = vmatpush2.msra.mxu0 0.0
      %1433 = vmatprep.subr.mxu0 0.0
      %1434 = vmatpush2.msra.mxu0 0.0
      %1435 = vmatprep.subr.mxu0 0.0
      %1436 = vmatpush2.msra.mxu0 0.0
      %1437 = vmatprep.subr.mxu0 0.0
      %1438 = vmatpush2.msra.mxu0 0.0
      %1439 = vmatprep.subr.mxu0 0.0
      %1440 = vmatpush2.msra.mxu0 0.0
      %1441 = vmatprep.subr.mxu0 0.0
      %1442 = vmatpush2.msra.mxu0 0.0
      %1443 = vmatprep.subr.mxu0 0.0
      %1444 = vmatpush2.msra.mxu0 0.0
      %1445 = vmatprep.subr.mxu0 0.0
      %1446 = vmatpush2.msra.mxu0 0.0
      %1447 = vmatprep.subr.mxu0 0.0
      %1448 = vmatpush2.msra.mxu0 0.0
      %1449 = vmatprep.mubr.f32.mxu0 0.0
      %1450 = vmatmul.mubr.f32.gmra.mxu0 %v1383
      %v1451 = vpop.f32.mrf.mxu0
      %v1452 = vadd.f32 0.0, %v1451
      %v1453 = vpop.f32.mrf.mxu0
      %1454 = vdwg.mxu0
      %1455 = vrot.lane.b32.xlu0 %v825, 56
      %v1456 = vpop.permute.xlu0 %1455
      %v1459 = vsel %vm832, %v1378, 0
      %1461 = vmatprep.subr.mxu0 0.0
      %1462 = vmatpush1.msra.mxu0 0.0
      %1463 = vmatprep.subr.mxu0 0.0
      %1464 = vmatpush1.msra.mxu0 0.0
      %1465 = vmatprep.subr.mxu0 0.0
      %1466 = vmatpush1.msra.mxu0 0.0
      %1467 = vmatprep.subr.mxu0 0.0
      %1468 = vmatpush1.msra.mxu0 0.0
      %1469 = vmatprep.subr.mxu0 0.0
      %1470 = vmatpush1.msra.mxu0 0.0
      %1471 = vmatprep.subr.mxu0 0.0
      %1472 = vmatpush1.msra.mxu0 0.0
      %1473 = vmatprep.subr.mxu0 0.0
      %1474 = vmatpush1.msra.mxu0 0.0
      %1475 = vmatprep.subr.mxu0 0.0
      %1476 = vmatpush1.msra.mxu0 0.0
      %1477 = vmatprep.subr.mxu0 0.0
      %1478 = vmatpush1.msra.mxu0 0.0
      %1479 = vmatprep.subr.mxu0 0.0
      %1480 = vmatpush1.msra.mxu0 0.0
      %1481 = vmatprep.subr.mxu0 0.0
      %1482 = vmatpush1.msra.mxu0 0.0
      %1483 = vmatprep.subr.mxu0 0.0
      %1484 = vmatpush1.msra.mxu0 0.0
      %1485 = vmatprep.subr.mxu0 0.0
      %1486 = vmatpush1.msra.mxu0 0.0
      %1487 = vmatprep.subr.mxu0 0.0
      %1488 = vmatpush1.msra.mxu0 0.0
      %1489 = vmatprep.subr.mxu0 0.0
      %1490 = vmatpush1.msra.mxu0 0.0
      %1491 = vmatprep.subr.mxu0 0.0
      %1492 = vmatpush1.msra.mxu0 %v1456
      %1493 = vmatprep.subr.mxu0 0.0
      %1494 = vmatpush2.msra.mxu0 0.0
      %1495 = vmatprep.subr.mxu0 0.0
      %1496 = vmatpush2.msra.mxu0 0.0
      %1497 = vmatprep.subr.mxu0 0.0
      %1498 = vmatpush2.msra.mxu0 0.0
      %1499 = vmatprep.subr.mxu0 0.0
      %1500 = vmatpush2.msra.mxu0 0.0
      %1501 = vmatprep.subr.mxu0 0.0
      %1502 = vmatpush2.msra.mxu0 0.0
      %1503 = vmatprep.subr.mxu0 0.0
      %1504 = vmatpush2.msra.mxu0 0.0
      %1505 = vmatprep.subr.mxu0 0.0
      %1506 = vmatpush2.msra.mxu0 0.0
      %1507 = vmatprep.subr.mxu0 0.0
      %1508 = vmatpush2.msra.mxu0 0.0
      %1509 = vmatprep.subr.mxu0 0.0
      %1510 = vmatpush2.msra.mxu0 0.0
      %1511 = vmatprep.subr.mxu0 0.0
      %1512 = vmatpush2.msra.mxu0 0.0
      %1513 = vmatprep.subr.mxu0 0.0
      %1514 = vmatpush2.msra.mxu0 0.0
      %1515 = vmatprep.subr.mxu0 0.0
      %1516 = vmatpush2.msra.mxu0 0.0
      %1517 = vmatprep.subr.mxu0 0.0
      %1518 = vmatpush2.msra.mxu0 0.0
      %1519 = vmatprep.subr.mxu0 0.0
      %1520 = vmatpush2.msra.mxu0 0.0
      %1521 = vmatprep.subr.mxu0 0.0
      %1522 = vmatpush2.msra.mxu0 0.0
      %1523 = vmatprep.subr.mxu0 0.0
      %1524 = vmatpush2.msra.mxu0 0.0
      %1525 = vmatprep.mubr.f32.mxu0 0.0
      %1526 = vmatmul.mubr.f32.gmra.mxu0 %v1459
      %v1527 = vpop.f32.mrf.mxu0
      %v1528 = vadd.f32 0.0, %v1527
      %v1529 = vpop.f32.mrf.mxu0
      %1530 = vdwg.mxu0
      %1533 = vrot.lane.b32.xlu0 %v1452, 8
      %v1534 = vpop.permute.xlu0 %1533
      %1535 = vrot.lane.b32.xlu0 %v1528, 8
      %v1536 = vpop.permute.xlu0 %1535
      %vm1539 = vcmask 130112
      %1540 = vst.msk [vmem:[#allocation2] sm:$0xff] %vm1539, %v1534
      %1541 = vst.msk [vmem:[#allocation2 + $0x8] sm:$0xff] %vm1539, %v1536
      %1542 = vrot.lane.b32.xlu0 %v820, 112
      %v1543 = vpop.permute.xlu0 %1542
      %1544 = vrot.lane.b32.xlu0 %v820, 80
      %v1545 = vpop.permute.xlu0 %1544
      %v1546 = vsel %vm832, %v1543, 0
      %v1548 = vsel %vm832, %v1545, 0
      %1550 = vmatprep.subr.mxu0 0.0
      %1551 = vmatpush1.xpose.msra.mxu0 0.0
      %1552 = vmatprep.subr.mxu0 0.0
      %1553 = vmatpush1.xpose.msra.mxu0 0.0
      %1554 = vmatprep.subr.mxu0 0.0
      %1555 = vmatpush1.xpose.msra.mxu0 0.0
      %1556 = vmatprep.subr.mxu0 0.0
      %1557 = vmatpush1.xpose.msra.mxu0 0.0
      %1558 = vmatprep.subr.mxu0 0.0
      %1559 = vmatpush1.xpose.msra.mxu0 0.0
      %1560 = vmatprep.subr.mxu0 0.0
      %1561 = vmatpush1.xpose.msra.mxu0 0.0
      %1562 = vmatprep.subr.mxu0 0.0
      %1563 = vmatpush1.xpose.msra.mxu0 0.0
      %1564 = vmatprep.subr.mxu0 0.0
      %1565 = vmatpush1.xpose.msra.mxu0 0.0
      %1566 = vmatprep.subr.mxu0 0.0
      %1567 = vmatpush1.xpose.msra.mxu0 0.0
      %1568 = vmatprep.subr.mxu0 0.0
      %1569 = vmatpush1.xpose.msra.mxu0 0.0
      %1570 = vmatprep.subr.mxu0 0.0
      %1571 = vmatpush1.xpose.msra.mxu0 0.0
      %1572 = vmatprep.subr.mxu0 0.0
      %1573 = vmatpush1.xpose.msra.mxu0 0.0
      %1574 = vmatprep.subr.mxu0 0.0
      %1575 = vmatpush1.xpose.msra.mxu0 0.0
      %1576 = vmatprep.subr.mxu0 0.0
      %1577 = vmatpush1.xpose.msra.mxu0 0.0
      %1578 = vmatprep.subr.mxu0 0.0
      %1579 = vmatpush1.xpose.msra.mxu0 0.0
      %1580 = vmatprep.subr.mxu0 0.0
      %1581 = vmatpush1.xpose.msra.mxu0 %v1548
      %1582 = vmatprep.subr.mxu0 0.0
      %1583 = vmatpush2.xpose.msra.mxu0 0.0
      %1584 = vmatprep.subr.mxu0 0.0
      %1585 = vmatpush2.xpose.msra.mxu0 0.0
      %1586 = vmatprep.subr.mxu0 0.0
      %1587 = vmatpush2.xpose.msra.mxu0 0.0
      %1588 = vmatprep.subr.mxu0 0.0
      %1589 = vmatpush2.xpose.msra.mxu0 0.0
      %1590 = vmatprep.subr.mxu0 0.0
      %1591 = vmatpush2.xpose.msra.mxu0 0.0
      %1592 = vmatprep.subr.mxu0 0.0
      %1593 = vmatpush2.xpose.msra.mxu0 0.0
      %1594 = vmatprep.subr.mxu0 0.0
      %1595 = vmatpush2.xpose.msra.mxu0 0.0
      %1596 = vmatprep.subr.mxu0 0.0
      %1597 = vmatpush2.xpose.msra.mxu0 0.0
      %1598 = vmatprep.subr.mxu0 0.0
      %1599 = vmatpush2.xpose.msra.mxu0 0.0
      %1600 = vmatprep.subr.mxu0 0.0
      %1601 = vmatpush2.xpose.msra.mxu0 0.0
      %1602 = vmatprep.subr.mxu0 0.0
      %1603 = vmatpush2.xpose.msra.mxu0 0.0
      %1604 = vmatprep.subr.mxu0 0.0
      %1605 = vmatpush2.xpose.msra.mxu0 0.0
      %1606 = vmatprep.subr.mxu0 0.0
      %1607 = vmatpush2.xpose.msra.mxu0 0.0
      %1608 = vmatprep.subr.mxu0 0.0
      %1609 = vmatpush2.xpose.msra.mxu0 0.0
      %1610 = vmatprep.subr.mxu0 0.0
      %1611 = vmatpush2.xpose.msra.mxu0 0.0
      %1612 = vmatprep.subr.mxu0 0.0
      %1613 = vmatpush2.xpose.msra.mxu0 0.0
      %1614 = vmatprep.mubr.f32.mxu0 0.0
      %1615 = vmatmul.mubr.f32.gmra.mxu0 %v1546
      %v1616 = vpop.f32.mrf.mxu0
      %v1617 = vadd.f32 0.0, %v1616
      %v1618 = vpop.f32.mrf.mxu0
      %1619 = vdwg.mxu0
      %1620 = vrot.lane.b32.xlu0 %v825, 112
      %v1621 = vpop.permute.xlu0 %1620
      %1622 = vrot.lane.b32.xlu0 %v825, 80
      %v1623 = vpop.permute.xlu0 %1622
      %v1624 = vsel %vm832, %v1621, 0
      %v1626 = vsel %vm832, %v1623, 0
      %1628 = vmatprep.subr.mxu0 0.0
      %1629 = vmatpush1.xpose.msra.mxu0 0.0
      %1630 = vmatprep.subr.mxu0 0.0
      %1631 = vmatpush1.xpose.msra.mxu0 0.0
      %1632 = vmatprep.subr.mxu0 0.0
      %1633 = vmatpush1.xpose.msra.mxu0 0.0
      %1634 = vmatprep.subr.mxu0 0.0
      %1635 = vmatpush1.xpose.msra.mxu0 0.0
      %1636 = vmatprep.subr.mxu0 0.0
      %1637 = vmatpush1.xpose.msra.mxu0 0.0
      %1638 = vmatprep.subr.mxu0 0.0
      %1639 = vmatpush1.xpose.msra.mxu0 0.0
      %1640 = vmatprep.subr.mxu0 0.0
      %1641 = vmatpush1.xpose.msra.mxu0 0.0
      %1642 = vmatprep.subr.mxu0 0.0
      %1643 = vmatpush1.xpose.msra.mxu0 0.0
      %1644 = vmatprep.subr.mxu0 0.0
      %1645 = vmatpush1.xpose.msra.mxu0 0.0
      %1646 = vmatprep.subr.mxu0 0.0
      %1647 = vmatpush1.xpose.msra.mxu0 0.0
      %1648 = vmatprep.subr.mxu0 0.0
      %1649 = vmatpush1.xpose.msra.mxu0 0.0
      %1650 = vmatprep.subr.mxu0 0.0
      %1651 = vmatpush1.xpose.msra.mxu0 0.0
      %1652 = vmatprep.subr.mxu0 0.0
      %1653 = vmatpush1.xpose.msra.mxu0 0.0
      %1654 = vmatprep.subr.mxu0 0.0
      %1655 = vmatpush1.xpose.msra.mxu0 0.0
      %1656 = vmatprep.subr.mxu0 0.0
      %1657 = vmatpush1.xpose.msra.mxu0 0.0
      %1658 = vmatprep.subr.mxu0 0.0
      %1659 = vmatpush1.xpose.msra.mxu0 %v1626
      %1660 = vmatprep.subr.mxu0 0.0
      %1661 = vmatpush2.xpose.msra.mxu0 0.0
      %1662 = vmatprep.subr.mxu0 0.0
      %1663 = vmatpush2.xpose.msra.mxu0 0.0
      %1664 = vmatprep.subr.mxu0 0.0
      %1665 = vmatpush2.xpose.msra.mxu0 0.0
      %1666 = vmatprep.subr.mxu0 0.0
      %1667 = vmatpush2.xpose.msra.mxu0 0.0
      %1668 = vmatprep.subr.mxu0 0.0
      %1669 = vmatpush2.xpose.msra.mxu0 0.0
      %1670 = vmatprep.subr.mxu0 0.0
      %1671 = vmatpush2.xpose.msra.mxu0 0.0
      %1672 = vmatprep.subr.mxu0 0.0
      %1673 = vmatpush2.xpose.msra.mxu0 0.0
      %1674 = vmatprep.subr.mxu0 0.0
      %1675 = vmatpush2.xpose.msra.mxu0 0.0
      %1676 = vmatprep.subr.mxu0 0.0
      %1677 = vmatpush2.xpose.msra.mxu0 0.0
      %1678 = vmatprep.subr.mxu0 0.0
      %1679 = vmatpush2.xpose.msra.mxu0 0.0
      %1680 = vmatprep.subr.mxu0 0.0
      %1681 = vmatpush2.xpose.msra.mxu0 0.0
      %1682 = vmatprep.subr.mxu0 0.0
      %1683 = vmatpush2.xpose.msra.mxu0 0.0
      %1684 = vmatprep.subr.mxu0 0.0
      %1685 = vmatpush2.xpose.msra.mxu0 0.0
      %1686 = vmatprep.subr.mxu0 0.0
      %1687 = vmatpush2.xpose.msra.mxu0 0.0
      %1688 = vmatprep.subr.mxu0 0.0
      %1689 = vmatpush2.xpose.msra.mxu0 0.0
      %1690 = vmatprep.subr.mxu0 0.0
      %1691 = vmatpush2.xpose.msra.mxu0 0.0
      %1692 = vmatprep.mubr.f32.mxu0 0.0
      %1693 = vmatmul.mubr.f32.gmra.mxu0 %v1624
      %v1694 = vpop.f32.mrf.mxu0
      %v1695 = vadd.f32 0.0, %v1694
      %v1696 = vpop.f32.mrf.mxu0
      %1697 = vdwg.mxu0
      %v1698 = vmul.f32 %v1617, 0.35355338
      %v1699 = vmul.f32 %v1695, 0.35355338
      %v1700 = vadd.f32 %v1698, %v1012
      %v1701 = vadd.f32 %v1699, %v1016
      %v1702 = vsel %vm832, %v1700, -inf
      %1703 = vmax.xlane.f32.xlu0 %v1702
      %v1704 = vpop.xlane.xlu0 %1703
      %v1705 = vsel %vm832, %v1701, -inf
      %1706 = vmax.xlane.f32.xlu0 %v1705
      %v1707 = vpop.xlane.xlu0 %1706
      %v1708 = vsub.f32 %v1700, %v1704
      %v1709 = vsub.f32 %v1701, %v1707
      %v1710 = vmul.f32 %v1708, 1.442695
      %v1711 = vpow.pop %v1710
      %v1712 = vmul.f32 %v1709, 1.442695
      %v1713 = vpow.pop %v1712
      %v1714 = vsel %vm832, %v1711, 0.0
      %1715 = vadd.xlane.f32.xlu0 %v1714
      %v1716 = vpop.xlane.xlu0 %1715
      %v1717 = vsel %vm832, %v1713, 0.0
      %1718 = vadd.xlane.f32.xlu0 %v1717
      %v1719 = vpop.xlane.xlu0 %1718
      %v1720 = vrcp.pop %v1716
      %v1721 = vrcp.pop %v1719
      %v1722 = vmul.f32 %v1711, %v1720
      %v1723 = vmul.f32 %v1713, %v1721
      %1724 = vrot.lane.b32.xlu0 %v820, 48
      %v1725 = vpop.permute.xlu0 %1724
      %v1728 = vsel %vm832, %v1722, 0
      %1730 = vmatprep.subr.mxu0 0.0
      %1731 = vmatpush1.msra.mxu0 0.0
      %1732 = vmatprep.subr.mxu0 0.0
      %1733 = vmatpush1.msra.mxu0 0.0
      %1734 = vmatprep.subr.mxu0 0.0
      %1735 = vmatpush1.msra.mxu0 0.0
      %1736 = vmatprep.subr.mxu0 0.0
      %1737 = vmatpush1.msra.mxu0 0.0
      %1738 = vmatprep.subr.mxu0 0.0
      %1739 = vmatpush1.msra.mxu0 0.0
      %1740 = vmatprep.subr.mxu0 0.0
      %1741 = vmatpush1.msra.mxu0 0.0
      %1742 = vmatprep.subr.mxu0 0.0
      %1743 = vmatpush1.msra.mxu0 0.0
      %1744 = vmatprep.subr.mxu0 0.0
      %1745 = vmatpush1.msra.mxu0 0.0
      %1746 = vmatprep.subr.mxu0 0.0
      %1747 = vmatpush1.msra.mxu0 0.0
      %1748 = vmatprep.subr.mxu0 0.0
      %1749 = vmatpush1.msra.mxu0 0.0
      %1750 = vmatprep.subr.mxu0 0.0
      %1751 = vmatpush1.msra.mxu0 0.0
      %1752 = vmatprep.subr.mxu0 0.0
      %1753 = vmatpush1.msra.mxu0 0.0
      %1754 = vmatprep.subr.mxu0 0.0
      %1755 = vmatpush1.msra.mxu0 0.0
      %1756 = vmatprep.subr.mxu0 0.0
      %1757 = vmatpush1.msra.mxu0 0.0
      %1758 = vmatprep.subr.mxu0 0.0
      %1759 = vmatpush1.msra.mxu0 0.0
      %1760 = vmatprep.subr.mxu0 0.0
      %1761 = vmatpush1.msra.mxu0 %v1725
      %1762 = vmatprep.subr.mxu0 0.0
      %1763 = vmatpush2.msra.mxu0 0.0
      %1764 = vmatprep.subr.mxu0 0.0
      %1765 = vmatpush2.msra.mxu0 0.0
      %1766 = vmatprep.subr.mxu0 0.0
      %1767 = vmatpush2.msra.mxu0 0.0
      %1768 = vmatprep.subr.mxu0 0.0
      %1769 = vmatpush2.msra.mxu0 0.0
      %1770 = vmatprep.subr.mxu0 0.0
      %1771 = vmatpush2.msra.mxu0 0.0
      %1772 = vmatprep.subr.mxu0 0.0
      %1773 = vmatpush2.msra.mxu0 0.0
      %1774 = vmatprep.subr.mxu0 0.0
      %1775 = vmatpush2.msra.mxu0 0.0
      %1776 = vmatprep.subr.mxu0 0.0
      %1777 = vmatpush2.msra.mxu0 0.0
      %1778 = vmatprep.subr.mxu0 0.0
      %1779 = vmatpush2.msra.mxu0 0.0
      %1780 = vmatprep.subr.mxu0 0.0
      %1781 = vmatpush2.msra.mxu0 0.0
      %1782 = vmatprep.subr.mxu0 0.0
      %1783 = vmatpush2.msra.mxu0 0.0
      %1784 = vmatprep.subr.mxu0 0.0
      %1785 = vmatpush2.msra.mxu0 0.0
      %1786 = vmatprep.subr.mxu0 0.0
      %1787 = vmatpush2.msra.mxu0 0.0
      %1788 = vmatprep.subr.mxu0 0.0
      %1789 = vmatpush2.msra.mxu0 0.0
      %1790 = vmatprep.subr.mxu0 0.0
      %1791 = vmatpush2.msra.mxu0 0.0
      %1792 = vmatprep.subr.mxu0 0.0
      %1793 = vmatpush2.msra.mxu0 0.0
      %1794 = vmatprep.mubr.f32.mxu0 0.0
      %1795 = vmatmul.mubr.f32.gmra.mxu0 %v1728
      %v1796 = vpop.f32.mrf.mxu0
      %v1797 = vadd.f32 0.0, %v1796
      %v1798 = vpop.f32.mrf.mxu0
      %1799 = vdwg.mxu0
      %1800 = vrot.lane.b32.xlu0 %v825, 48
      %v1801 = vpop.permute.xlu0 %1800
      %v1804 = vsel %vm832, %v1723, 0
      %1806 = vmatprep.subr.mxu0 0.0
      %1807 = vmatpush1.msra.mxu0 0.0
      %1808 = vmatprep.subr.mxu0 0.0
      %1809 = vmatpush1.msra.mxu0 0.0
      %1810 = vmatprep.subr.mxu0 0.0
      %1811 = vmatpush1.msra.mxu0 0.0
      %1812 = vmatprep.subr.mxu0 0.0
      %1813 = vmatpush1.msra.mxu0 0.0
      %1814 = vmatprep.subr.mxu0 0.0
      %1815 = vmatpush1.msra.mxu0 0.0
      %1816 = vmatprep.subr.mxu0 0.0
      %1817 = vmatpush1.msra.mxu0 0.0
      %1818 = vmatprep.subr.mxu0 0.0
      %1819 = vmatpush1.msra.mxu0 0.0
      %1820 = vmatprep.subr.mxu0 0.0
      %1821 = vmatpush1.msra.mxu0 0.0
      %1822 = vmatprep.subr.mxu0 0.0
      %1823 = vmatpush1.msra.mxu0 0.0
      %1824 = vmatprep.subr.mxu0 0.0
      %1825 = vmatpush1.msra.mxu0 0.0
      %1826 = vmatprep.subr.mxu0 0.0
      %1827 = vmatpush1.msra.mxu0 0.0
      %1828 = vmatprep.subr.mxu0 0.0
      %1829 = vmatpush1.msra.mxu0 0.0
      %1830 = vmatprep.subr.mxu0 0.0
      %1831 = vmatpush1.msra.mxu0 0.0
      %1832 = vmatprep.subr.mxu0 0.0
      %1833 = vmatpush1.msra.mxu0 0.0
      %1834 = vmatprep.subr.mxu0 0.0
      %1835 = vmatpush1.msra.mxu0 0.0
      %1836 = vmatprep.subr.mxu0 0.0
      %1837 = vmatpush1.msra.mxu0 %v1801
      %1838 = vmatprep.subr.mxu0 0.0
      %1839 = vmatpush2.msra.mxu0 0.0
      %1840 = vmatprep.subr.mxu0 0.0
      %1841 = vmatpush2.msra.mxu0 0.0
      %1842 = vmatprep.subr.mxu0 0.0
      %1843 = vmatpush2.msra.mxu0 0.0
      %1844 = vmatprep.subr.mxu0 0.0
      %1845 = vmatpush2.msra.mxu0 0.0
      %1846 = vmatprep.subr.mxu0 0.0
      %1847 = vmatpush2.msra.mxu0 0.0
      %1848 = vmatprep.subr.mxu0 0.0
      %1849 = vmatpush2.msra.mxu0 0.0
      %1850 = vmatprep.subr.mxu0 0.0
      %1851 = vmatpush2.msra.mxu0 0.0
      %1852 = vmatprep.subr.mxu0 0.0
      %1853 = vmatpush2.msra.mxu0 0.0
      %1854 = vmatprep.subr.mxu0 0.0
      %1855 = vmatpush2.msra.mxu0 0.0
      %1856 = vmatprep.subr.mxu0 0.0
      %1857 = vmatpush2.msra.mxu0 0.0
      %1858 = vmatprep.subr.mxu0 0.0
      %1859 = vmatpush2.msra.mxu0 0.0
      %1860 = vmatprep.subr.mxu0 0.0
      %1861 = vmatpush2.msra.mxu0 0.0
      %1862 = vmatprep.subr.mxu0 0.0
      %1863 = vmatpush2.msra.mxu0 0.0
      %1864 = vmatprep.subr.mxu0 0.0
      %1865 = vmatpush2.msra.mxu0 0.0
      %1866 = vmatprep.subr.mxu0 0.0
      %1867 = vmatpush2.msra.mxu0 0.0
      %1868 = vmatprep.subr.mxu0 0.0
      %1869 = vmatpush2.msra.mxu0 0.0
      %1870 = vmatprep.mubr.f32.mxu0 0.0
      %1871 = vmatmul.mubr.f32.gmra.mxu0 %v1804
      %v1872 = vpop.f32.mrf.mxu0
      %v1873 = vadd.f32 0.0, %v1872
      %v1874 = vpop.f32.mrf.mxu0
      %1875 = vdwg.mxu0
      %1878 = vrot.lane.b32.xlu0 %v1797, 16
      %v1879 = vpop.permute.xlu0 %1878
      %1880 = vrot.lane.b32.xlu0 %v1873, 16
      %v1881 = vpop.permute.xlu0 %1880
      %vm1884 = vcmask 195712
      %1885 = vst.msk [vmem:[#allocation2] sm:$0xff] %vm1884, %v1879
      %1886 = vst.msk [vmem:[#allocation2 + $0x8] sm:$0xff] %vm1884, %v1881
      %1887 = vrot.lane.b32.xlu0 %v820, 104
      %v1888 = vpop.permute.xlu0 %1887
      %1889 = vrot.lane.b32.xlu0 %v820, 72
      %v1890 = vpop.permute.xlu0 %1889
      %v1891 = vsel %vm832, %v1888, 0
      %v1893 = vsel %vm832, %v1890, 0
      %1895 = vmatprep.subr.mxu0 0.0
      %1896 = vmatpush1.xpose.msra.mxu0 0.0
      %1897 = vmatprep.subr.mxu0 0.0
      %1898 = vmatpush1.xpose.msra.mxu0 0.0
      %1899 = vmatprep.subr.mxu0 0.0
      %1900 = vmatpush1.xpose.msra.mxu0 0.0
      %1901 = vmatprep.subr.mxu0 0.0
      %1902 = vmatpush1.xpose.msra.mxu0 0.0
      %1903 = vmatprep.subr.mxu0 0.0
      %1904 = vmatpush1.xpose.msra.mxu0 0.0
      %1905 = vmatprep.subr.mxu0 0.0
      %1906 = vmatpush1.xpose.msra.mxu0 0.0
      %1907 = vmatprep.subr.mxu0 0.0
      %1908 = vmatpush1.xpose.msra.mxu0 0.0
      %1909 = vmatprep.subr.mxu0 0.0
      %1910 = vmatpush1.xpose.msra.mxu0 0.0
      %1911 = vmatprep.subr.mxu0 0.0
      %1912 = vmatpush1.xpose.msra.mxu0 0.0
      %1913 = vmatprep.subr.mxu0 0.0
      %1914 = vmatpush1.xpose.msra.mxu0 0.0
      %1915 = vmatprep.subr.mxu0 0.0
      %1916 = vmatpush1.xpose.msra.mxu0 0.0
      %1917 = vmatprep.subr.mxu0 0.0
      %1918 = vmatpush1.xpose.msra.mxu0 0.0
      %1919 = vmatprep.subr.mxu0 0.0
      %1920 = vmatpush1.xpose.msra.mxu0 0.0
      %1921 = vmatprep.subr.mxu0 0.0
      %1922 = vmatpush1.xpose.msra.mxu0 0.0
      %1923 = vmatprep.subr.mxu0 0.0
      %1924 = vmatpush1.xpose.msra.mxu0 0.0
      %1925 = vmatprep.subr.mxu0 0.0
      %1926 = vmatpush1.xpose.msra.mxu0 %v1893
      %1927 = vmatprep.subr.mxu0 0.0
      %1928 = vmatpush2.xpose.msra.mxu0 0.0
      %1929 = vmatprep.subr.mxu0 0.0
      %1930 = vmatpush2.xpose.msra.mxu0 0.0
      %1931 = vmatprep.subr.mxu0 0.0
      %1932 = vmatpush2.xpose.msra.mxu0 0.0
      %1933 = vmatprep.subr.mxu0 0.0
      %1934 = vmatpush2.xpose.msra.mxu0 0.0
      %1935 = vmatprep.subr.mxu0 0.0
      %1936 = vmatpush2.xpose.msra.mxu0 0.0
      %1937 = vmatprep.subr.mxu0 0.0
      %1938 = vmatpush2.xpose.msra.mxu0 0.0
      %1939 = vmatprep.subr.mxu0 0.0
      %1940 = vmatpush2.xpose.msra.mxu0 0.0
      %1941 = vmatprep.subr.mxu0 0.0
      %1942 = vmatpush2.xpose.msra.mxu0 0.0
      %1943 = vmatprep.subr.mxu0 0.0
      %1944 = vmatpush2.xpose.msra.mxu0 0.0
      %1945 = vmatprep.subr.mxu0 0.0
      %1946 = vmatpush2.xpose.msra.mxu0 0.0
      %1947 = vmatprep.subr.mxu0 0.0
      %1948 = vmatpush2.xpose.msra.mxu0 0.0
      %1949 = vmatprep.subr.mxu0 0.0
      %1950 = vmatpush2.xpose.msra.mxu0 0.0
      %1951 = vmatprep.subr.mxu0 0.0
      %1952 = vmatpush2.xpose.msra.mxu0 0.0
      %1953 = vmatprep.subr.mxu0 0.0
      %1954 = vmatpush2.xpose.msra.mxu0 0.0
      %1955 = vmatprep.subr.mxu0 0.0
      %1956 = vmatpush2.xpose.msra.mxu0 0.0
      %1957 = vmatprep.subr.mxu0 0.0
      %1958 = vmatpush2.xpose.msra.mxu0 0.0
      %1959 = vmatprep.mubr.f32.mxu0 0.0
      %1960 = vmatmul.mubr.f32.gmra.mxu0 %v1891
      %v1961 = vpop.f32.mrf.mxu0
      %v1962 = vadd.f32 0.0, %v1961
      %v1963 = vpop.f32.mrf.mxu0
      %1964 = vdwg.mxu0
      %1965 = vrot.lane.b32.xlu0 %v825, 104
      %v1966 = vpop.permute.xlu0 %1965
      %1967 = vrot.lane.b32.xlu0 %v825, 72
      %v1968 = vpop.permute.xlu0 %1967
      %v1969 = vsel %vm832, %v1966, 0
      %v1971 = vsel %vm832, %v1968, 0
      %1973 = vmatprep.subr.mxu0 0.0
      %1974 = vmatpush1.xpose.msra.mxu0 0.0
      %1975 = vmatprep.subr.mxu0 0.0
      %1976 = vmatpush1.xpose.msra.mxu0 0.0
      %1977 = vmatprep.subr.mxu0 0.0
      %1978 = vmatpush1.xpose.msra.mxu0 0.0
      %1979 = vmatprep.subr.mxu0 0.0
      %1980 = vmatpush1.xpose.msra.mxu0 0.0
      %1981 = vmatprep.subr.mxu0 0.0
      %1982 = vmatpush1.xpose.msra.mxu0 0.0
      %1983 = vmatprep.subr.mxu0 0.0
      %1984 = vmatpush1.xpose.msra.mxu0 0.0
      %1985 = vmatprep.subr.mxu0 0.0
      %1986 = vmatpush1.xpose.msra.mxu0 0.0
      %1987 = vmatprep.subr.mxu0 0.0
      %1988 = vmatpush1.xpose.msra.mxu0 0.0
      %1989 = vmatprep.subr.mxu0 0.0
      %1990 = vmatpush1.xpose.msra.mxu0 0.0
      %1991 = vmatprep.subr.mxu0 0.0
      %1992 = vmatpush1.xpose.msra.mxu0 0.0
      %1993 = vmatprep.subr.mxu0 0.0
      %1994 = vmatpush1.xpose.msra.mxu0 0.0
      %1995 = vmatprep.subr.mxu0 0.0
      %1996 = vmatpush1.xpose.msra.mxu0 0.0
      %1997 = vmatprep.subr.mxu0 0.0
      %1998 = vmatpush1.xpose.msra.mxu0 0.0
      %1999 = vmatprep.subr.mxu0 0.0
      %2000 = vmatpush1.xpose.msra.mxu0 0.0
      %2001 = vmatprep.subr.mxu0 0.0
      %2002 = vmatpush1.xpose.msra.mxu0 0.0
      %2003 = vmatprep.subr.mxu0 0.0
      %2004 = vmatpush1.xpose.msra.mxu0 %v1971
      %2005 = vmatprep.subr.mxu0 0.0
      %2006 = vmatpush2.xpose.msra.mxu0 0.0
      %2007 = vmatprep.subr.mxu0 0.0
      %2008 = vmatpush2.xpose.msra.mxu0 0.0
      %2009 = vmatprep.subr.mxu0 0.0
      %2010 = vmatpush2.xpose.msra.mxu0 0.0
      %2011 = vmatprep.subr.mxu0 0.0
      %2012 = vmatpush2.xpose.msra.mxu0 0.0
      %2013 = vmatprep.subr.mxu0 0.0
      %2014 = vmatpush2.xpose.msra.mxu0 0.0
      %2015 = vmatprep.subr.mxu0 0.0
      %2016 = vmatpush2.xpose.msra.mxu0 0.0
      %2017 = vmatprep.subr.mxu0 0.0
      %2018 = vmatpush2.xpose.msra.mxu0 0.0
      %2019 = vmatprep.subr.mxu0 0.0
      %2020 = vmatpush2.xpose.msra.mxu0 0.0
      %2021 = vmatprep.subr.mxu0 0.0
      %2022 = vmatpush2.xpose.msra.mxu0 0.0
      %2023 = vmatprep.subr.mxu0 0.0
      %2024 = vmatpush2.xpose.msra.mxu0 0.0
      %2025 = vmatprep.subr.mxu0 0.0
      %2026 = vmatpush2.xpose.msra.mxu0 0.0
      %2027 = vmatprep.subr.mxu0 0.0
      %2028 = vmatpush2.xpose.msra.mxu0 0.0
      %2029 = vmatprep.subr.mxu0 0.0
      %2030 = vmatpush2.xpose.msra.mxu0 0.0
      %2031 = vmatprep.subr.mxu0 0.0
      %2032 = vmatpush2.xpose.msra.mxu0 0.0
      %2033 = vmatprep.subr.mxu0 0.0
      %2034 = vmatpush2.xpose.msra.mxu0 0.0
      %2035 = vmatprep.subr.mxu0 0.0
      %2036 = vmatpush2.xpose.msra.mxu0 0.0
      %2037 = vmatprep.mubr.f32.mxu0 0.0
      %2038 = vmatmul.mubr.f32.gmra.mxu0 %v1969
      %v2039 = vpop.f32.mrf.mxu0
      %v2040 = vadd.f32 0.0, %v2039
      %v2041 = vpop.f32.mrf.mxu0
      %2042 = vdwg.mxu0
      %v2043 = vmul.f32 %v1962, 0.35355338
      %v2044 = vmul.f32 %v2040, 0.35355338
      %v2045 = vadd.f32 %v2043, %v1012
      %v2046 = vadd.f32 %v2044, %v1016
      %v2047 = vsel %vm832, %v2045, -inf
      %2048 = vmax.xlane.f32.xlu0 %v2047
      %v2049 = vpop.xlane.xlu0 %2048
      %v2050 = vsel %vm832, %v2046, -inf
      %2051 = vmax.xlane.f32.xlu0 %v2050
      %v2052 = vpop.xlane.xlu0 %2051
      %v2053 = vsub.f32 %v2045, %v2049
      %v2054 = vsub.f32 %v2046, %v2052
      %v2055 = vmul.f32 %v2053, 1.442695
      %v2056 = vpow.pop %v2055
      %v2057 = vmul.f32 %v2054, 1.442695
      %v2058 = vpow.pop %v2057
      %v2059 = vsel %vm832, %v2056, 0.0
      %2060 = vadd.xlane.f32.xlu0 %v2059
      %v2061 = vpop.xlane.xlu0 %2060
      %v2062 = vsel %vm832, %v2058, 0.0
      %2063 = vadd.xlane.f32.xlu0 %v2062
      %v2064 = vpop.xlane.xlu0 %2063
      %v2065 = vrcp.pop %v2061
      %v2066 = vrcp.pop %v2064
      %v2067 = vmul.f32 %v2056, %v2065
      %v2068 = vmul.f32 %v2058, %v2066
      %2069 = vrot.lane.b32.xlu0 %v820, 40
      %v2070 = vpop.permute.xlu0 %2069
      %v2073 = vsel %vm832, %v2067, 0
      %2075 = vmatprep.subr.mxu0 0.0
      %2076 = vmatpush1.msra.mxu0 0.0
      %2077 = vmatprep.subr.mxu0 0.0
      %2078 = vmatpush1.msra.mxu0 0.0
      %2079 = vmatprep.subr.mxu0 0.0
      %2080 = vmatpush1.msra.mxu0 0.0
      %2081 = vmatprep.subr.mxu0 0.0
      %2082 = vmatpush1.msra.mxu0 0.0
      %2083 = vmatprep.subr.mxu0 0.0
      %2084 = vmatpush1.msra.mxu0 0.0
      %2085 = vmatprep.subr.mxu0 0.0
      %2086 = vmatpush1.msra.mxu0 0.0
      %2087 = vmatprep.subr.mxu0 0.0
      %2088 = vmatpush1.msra.mxu0 0.0
      %2089 = vmatprep.subr.mxu0 0.0
      %2090 = vmatpush1.msra.mxu0 0.0
      %2091 = vmatprep.subr.mxu0 0.0
      %2092 = vmatpush1.msra.mxu0 0.0
      %2093 = vmatprep.subr.mxu0 0.0
      %2094 = vmatpush1.msra.mxu0 0.0
      %2095 = vmatprep.subr.mxu0 0.0
      %2096 = vmatpush1.msra.mxu0 0.0
      %2097 = vmatprep.subr.mxu0 0.0
      %2098 = vmatpush1.msra.mxu0 0.0
      %2099 = vmatprep.subr.mxu0 0.0
      %2100 = vmatpush1.msra.mxu0 0.0
      %2101 = vmatprep.subr.mxu0 0.0
      %2102 = vmatpush1.msra.mxu0 0.0
      %2103 = vmatprep.subr.mxu0 0.0
      %2104 = vmatpush1.msra.mxu0 0.0
      %2105 = vmatprep.subr.mxu0 0.0
      %2106 = vmatpush1.msra.mxu0 %v2070
      %2107 = vmatprep.subr.mxu0 0.0
      %2108 = vmatpush2.msra.mxu0 0.0
      %2109 = vmatprep.subr.mxu0 0.0
      %2110 = vmatpush2.msra.mxu0 0.0
      %2111 = vmatprep.subr.mxu0 0.0
      %2112 = vmatpush2.msra.mxu0 0.0
      %2113 = vmatprep.subr.mxu0 0.0
      %2114 = vmatpush2.msra.mxu0 0.0
      %2115 = vmatprep.subr.mxu0 0.0
      %2116 = vmatpush2.msra.mxu0 0.0
      %2117 = vmatprep.subr.mxu0 0.0
      %2118 = vmatpush2.msra.mxu0 0.0
      %2119 = vmatprep.subr.mxu0 0.0
      %2120 = vmatpush2.msra.mxu0 0.0
      %2121 = vmatprep.subr.mxu0 0.0
      %2122 = vmatpush2.msra.mxu0 0.0
      %2123 = vmatprep.subr.mxu0 0.0
      %2124 = vmatpush2.msra.mxu0 0.0
      %2125 = vmatprep.subr.mxu0 0.0
      %2126 = vmatpush2.msra.mxu0 0.0
      %2127 = vmatprep.subr.mxu0 0.0
      %2128 = vmatpush2.msra.mxu0 0.0
      %2129 = vmatprep.subr.mxu0 0.0
      %2130 = vmatpush2.msra.mxu0 0.0
      %2131 = vmatprep.subr.mxu0 0.0
      %2132 = vmatpush2.msra.mxu0 0.0
      %2133 = vmatprep.subr.mxu0 0.0
      %2134 = vmatpush2.msra.mxu0 0.0
      %2135 = vmatprep.subr.mxu0 0.0
      %2136 = vmatpush2.msra.mxu0 0.0
      %2137 = vmatprep.subr.mxu0 0.0
      %2138 = vmatpush2.msra.mxu0 0.0
      %2139 = vmatprep.mubr.f32.mxu0 0.0
      %2140 = vmatmul.mubr.f32.gmra.mxu0 %v2073
      %v2141 = vpop.f32.mrf.mxu0
      %v2142 = vadd.f32 0.0, %v2141
      %v2143 = vpop.f32.mrf.mxu0
      %2144 = vdwg.mxu0
      %2145 = vrot.lane.b32.xlu0 %v825, 40
      %v2146 = vpop.permute.xlu0 %2145
      %v2149 = vsel %vm832, %v2068, 0
      %2151 = vmatprep.subr.mxu0 0.0
      %2152 = vmatpush1.msra.mxu0 0.0
      %2153 = vmatprep.subr.mxu0 0.0
      %2154 = vmatpush1.msra.mxu0 0.0
      %2155 = vmatprep.subr.mxu0 0.0
      %2156 = vmatpush1.msra.mxu0 0.0
      %2157 = vmatprep.subr.mxu0 0.0
      %2158 = vmatpush1.msra.mxu0 0.0
      %2159 = vmatprep.subr.mxu0 0.0
      %2160 = vmatpush1.msra.mxu0 0.0
      %2161 = vmatprep.subr.mxu0 0.0
      %2162 = vmatpush1.msra.mxu0 0.0
      %2163 = vmatprep.subr.mxu0 0.0
      %2164 = vmatpush1.msra.mxu0 0.0
      %2165 = vmatprep.subr.mxu0 0.0
      %2166 = vmatpush1.msra.mxu0 0.0
      %2167 = vmatprep.subr.mxu0 0.0
      %2168 = vmatpush1.msra.mxu0 0.0
      %2169 = vmatprep.subr.mxu0 0.0
      %2170 = vmatpush1.msra.mxu0 0.0
      %2171 = vmatprep.subr.mxu0 0.0
      %2172 = vmatpush1.msra.mxu0 0.0
      %2173 = vmatprep.subr.mxu0 0.0
      %2174 = vmatpush1.msra.mxu0 0.0
      %2175 = vmatprep.subr.mxu0 0.0
      %2176 = vmatpush1.msra.mxu0 0.0
      %2177 = vmatprep.subr.mxu0 0.0
      %2178 = vmatpush1.msra.mxu0 0.0
      %2179 = vmatprep.subr.mxu0 0.0
      %2180 = vmatpush1.msra.mxu0 0.0
      %2181 = vmatprep.subr.mxu0 0.0
      %2182 = vmatpush1.msra.mxu0 %v2146
      %2183 = vmatprep.subr.mxu0 0.0
      %2184 = vmatpush2.msra.mxu0 0.0
      %2185 = vmatprep.subr.mxu0 0.0
      %2186 = vmatpush2.msra.mxu0 0.0
      %2187 = vmatprep.subr.mxu0 0.0
      %2188 = vmatpush2.msra.mxu0 0.0
      %2189 = vmatprep.subr.mxu0 0.0
      %2190 = vmatpush2.msra.mxu0 0.0
      %2191 = vmatprep.subr.mxu0 0.0
      %2192 = vmatpush2.msra.mxu0 0.0
      %2193 = vmatprep.subr.mxu0 0.0
      %2194 = vmatpush2.msra.mxu0 0.0
      %2195 = vmatprep.subr.mxu0 0.0
      %2196 = vmatpush2.msra.mxu0 0.0
      %2197 = vmatprep.subr.mxu0 0.0
      %2198 = vmatpush2.msra.mxu0 0.0
      %2199 = vmatprep.subr.mxu0 0.0
      %2200 = vmatpush2.msra.mxu0 0.0
      %2201 = vmatprep.subr.mxu0 0.0
      %2202 = vmatpush2.msra.mxu0 0.0
      %2203 = vmatprep.subr.mxu0 0.0
      %2204 = vmatpush2.msra.mxu0 0.0
      %2205 = vmatprep.subr.mxu0 0.0
      %2206 = vmatpush2.msra.mxu0 0.0
      %2207 = vmatprep.subr.mxu0 0.0
      %2208 = vmatpush2.msra.mxu0 0.0
      %2209 = vmatprep.subr.mxu0 0.0
      %2210 = vmatpush2.msra.mxu0 0.0
      %2211 = vmatprep.subr.mxu0 0.0
      %2212 = vmatpush2.msra.mxu0 0.0
      %2213 = vmatprep.subr.mxu0 0.0
      %2214 = vmatpush2.msra.mxu0 0.0
      %2215 = vmatprep.mubr.f32.mxu0 0.0
      %2216 = vmatmul.mubr.f32.gmra.mxu0 %v2149
      %v2217 = vpop.f32.mrf.mxu0
      %v2218 = vadd.f32 0.0, %v2217
      %v2219 = vpop.f32.mrf.mxu0
      %2220 = vdwg.mxu0
      %2223 = vrot.lane.b32.xlu0 %v2142, 24
      %v2224 = vpop.permute.xlu0 %2223
      %2225 = vrot.lane.b32.xlu0 %v2218, 24
      %v2226 = vpop.permute.xlu0 %2225
      %vm2229 = vcmask 261312
      %2230 = vst.msk [vmem:[#allocation2] sm:$0xff] %vm2229, %v2224
      %2231 = vst.msk [vmem:[#allocation2 + $0x8] sm:$0xff] %vm2229, %v2226
      %v2232 = vld [vmem:[#allocation2] sm:$0xff]
      %v2233 = vld [vmem:[#allocation2 + $0x8] sm:$0xff]
      %v2234 = vld [vmem:[%s647] sm:$0xff]
      %v2235 = vld [vmem:[%s647 + $0x8] sm:$0xff]
      %v2236 = vld [vmem:[%s647 + $0x10] sm:$0xff]
      %v2237 = vld [vmem:[%s647 + $0x18] sm:$0xff]
      %v2238 = vld [vmem:[%s650] sm:$0x1]
      %v2240 = vlaneseq
      %v2241 = vshrl.u32 %v2240, 7
      %v2242 = vsub.s32 0, %v2241
      %v2243 = vrot.slane %v2238, %v2242
      %v2246 = vsel %vm746, %v2232, 0
      %v2249 = vsel %vm746, %v2233, 0
      %2251 = vmatprep.subr.mxu0 0.0
      %2252 = vmatpush1.msra.mxu0 0.0
      %2253 = vmatprep.subr.mxu0 0.0
      %2254 = vmatpush1.msra.mxu0 0.0
      %2255 = vmatprep.subr.mxu0 0.0
      %2256 = vmatpush1.msra.mxu0 0.0
      %2257 = vmatprep.subr.mxu0 0.0
      %2258 = vmatpush1.msra.mxu0 0.0
      %2259 = vmatprep.subr.mxu0 0.0
      %2260 = vmatpush1.msra.mxu0 0.0
      %2261 = vmatprep.subr.mxu0 0.0
      %2262 = vmatpush1.msra.mxu0 0.0
      %2263 = vmatprep.subr.mxu0 0.0
      %2264 = vmatpush1.msra.mxu0 0.0
      %2265 = vmatprep.subr.mxu0 0.0
      %2266 = vmatpush1.msra.mxu0 0.0
      %2267 = vmatprep.subr.mxu0 0.0
      %2268 = vmatpush1.msra.mxu0 0.0
      %2269 = vmatprep.subr.mxu0 0.0
      %2270 = vmatpush1.msra.mxu0 0.0
      %2271 = vmatprep.subr.mxu0 0.0
      %2272 = vmatpush1.msra.mxu0 0.0
      %2273 = vmatprep.subr.mxu0 0.0
      %2274 = vmatpush1.msra.mxu0 0.0
      %2275 = vmatprep.subr.mxu0 0.0
      %2276 = vmatpush1.msra.mxu0 %v2237
      %2277 = vmatprep.subr.mxu0 0.0
      %2278 = vmatpush1.msra.mxu0 %v2236
      %2279 = vmatprep.subr.mxu0 0.0
      %2280 = vmatpush1.msra.mxu0 %v2235
      %2281 = vmatprep.subr.mxu0 0.0
      %2282 = vmatpush1.msra.mxu0 %v2234
      %2283 = vmatprep.subr.mxu0 0.0
      %2284 = vmatpush2.msra.mxu0 0.0
      %2285 = vmatprep.subr.mxu0 0.0
      %2286 = vmatpush2.msra.mxu0 0.0
      %2287 = vmatprep.subr.mxu0 0.0
      %2288 = vmatpush2.msra.mxu0 0.0
      %2289 = vmatprep.subr.mxu0 0.0
      %2290 = vmatpush2.msra.mxu0 0.0
      %2291 = vmatprep.subr.mxu0 0.0
      %2292 = vmatpush2.msra.mxu0 0.0
      %2293 = vmatprep.subr.mxu0 0.0
      %2294 = vmatpush2.msra.mxu0 0.0
      %2295 = vmatprep.subr.mxu0 0.0
      %2296 = vmatpush2.msra.mxu0 0.0
      %2297 = vmatprep.subr.mxu0 0.0
      %2298 = vmatpush2.msra.mxu0 0.0
      %2299 = vmatprep.subr.mxu0 0.0
      %2300 = vmatpush2.msra.mxu0 0.0
      %2301 = vmatprep.subr.mxu0 0.0
      %2302 = vmatpush2.msra.mxu0 0.0
      %2303 = vmatprep.subr.mxu0 0.0
      %2304 = vmatpush2.msra.mxu0 0.0
      %2305 = vmatprep.subr.mxu0 0.0
      %2306 = vmatpush2.msra.mxu0 0.0
      %2307 = vmatprep.subr.mxu0 0.0
      %2308 = vmatpush2.msra.mxu0 0.0
      %2309 = vmatprep.subr.mxu0 0.0
      %2310 = vmatpush2.msra.mxu0 0.0
      %2311 = vmatprep.subr.mxu0 0.0
      %2312 = vmatpush2.msra.mxu0 0.0
      %2313 = vmatprep.subr.mxu0 0.0
      %2314 = vmatpush2.msra.mxu0 0.0
      %2315 = vmatprep.mubr.f32.mxu0 0.0
      %2316 = vmatmul.mubr.f32.gmra.mxu0 %v2246
      %v2317 = vpop.f32.mrf.mxu0
      %v2318 = vadd.f32 %v2243, %v2317
      %v2319 = vpop.f32.mrf.mxu0
      %2320 = vmatprep.mubr.f32.mxu0 0.0
      %2321 = vmatmul.mubr.f32.gmra.mxu0 %v2249
      %v2322 = vpop.f32.mrf.mxu0
      %v2323 = vadd.f32 %v2243, %v2322
      %v2324 = vpop.f32.mrf.mxu0
      %2325 = vdwg.mxu0
      %v2326 = vadd.f32 %v2318, %v733
      %v2327 = vadd.f32 %v2323, %v734
      %v2328 = vld [vmem:[%s653] sm:$0x1]
      %v2329 = vld [vmem:[%s656] sm:$0x1]
      %v2330 = vsel %vm746, %v2326, 0.0
      %2331 = vadd.xlane.f32.xlu0 %v2330
      %v2332 = vpop.xlane.xlu0 %2331
      %v2333 = vsel %vm746, %v2327, 0.0
      %2334 = vadd.xlane.f32.xlu0 %v2333
      %v2335 = vpop.xlane.xlu0 %2334
      %v2336 = vrcp.pop 32.0
      %v2337 = vmul.f32 %v2332, %v2336
      %v2338 = vmul.f32 %v2335, %v2336
      %v2339 = vsub.f32 %v2326, %v2337
      %v2340 = vsub.f32 %v2327, %v2338
      %v2341 = vmul.f32 %v2339, %v2339
      %v2342 = vmul.f32 %v2340, %v2340
      %v2343 = vsel %vm746, %v2341, 0.0
      %2344 = vadd.xlane.f32.xlu0 %v2343
      %v2345 = vpop.xlane.xlu0 %2344
      %v2346 = vsel %vm746, %v2342, 0.0
      %2347 = vadd.xlane.f32.xlu0 %v2346
      %v2348 = vpop.xlane.xlu0 %2347
      %v2349 = vmul.f32 %v2345, %v2336
      %v2350 = vmul.f32 %v2348, %v2336
      %v2351 = vadd.f32 %v2349, 1e-05
      %v2352 = vadd.f32 %v2350, 1e-05
      %v2353 = vrsqrt.pop %v2351
      %v2354 = vrsqrt.pop %v2352
      %v2355 = vmul.f32 %v2339, %v2353
      %v2356 = vmul.f32 %v2340, %v2354
      %v2358 = vlaneseq
      %v2359 = vshrl.u32 %v2358, 7
      %v2360 = vsub.s32 0, %v2359
      %v2361 = vrot.slane %v2328, %v2360
      %v2363 = vmul.f32 %v2355, %v2361
      %v2364 = vmul.f32 %v2356, %v2361
      %v2366 = vlaneseq
      %v2367 = vshrl.u32 %v2366, 7
      %v2368 = vsub.s32 0, %v2367
      %v2369 = vrot.slane %v2329, %v2368
      %v2371 = vadd.f32 %v2363, %v2369
      %v2372 = vadd.f32 %v2364, %v2369
      %v2373 = vld [vmem:[%s661] sm:$0xff]
      %v2374 = vld [vmem:[%s661 + $0x8] sm:$0xff]
      %v2375 = vld [vmem:[%s661 + $0x10] sm:$0xff]
      %v2376 = vld [vmem:[%s661 + $0x18] sm:$0xff]
      %v2377 = vld [vmem:[%s664] sm:$0x1]
      %v2379 = vlaneseq
      %v2380 = vshrl.u32 %v2379, 7
      %v2381 = vsub.s32 0, %v2380
      %v2382 = vrot.slane %v2377, %v2381
      %v2385 = vsel %vm746, %v2371, 0
      %v2388 = vsel %vm746, %v2372, 0
      %2390 = vmatprep.subr.mxu0 0.0
      %2391 = vmatpush1.msra.mxu0 0.0
      %2392 = vmatprep.subr.mxu0 0.0
      %2393 = vmatpush1.msra.mxu0 0.0
      %2394 = vmatprep.subr.mxu0 0.0
      %2395 = vmatpush1.msra.mxu0 0.0
      %2396 = vmatprep.subr.mxu0 0.0
      %2397 = vmatpush1.msra.mxu0 0.0
      %2398 = vmatprep.subr.mxu0 0.0
      %2399 = vmatpush1.msra.mxu0 0.0
      %2400 = vmatprep.subr.mxu0 0.0
      %2401 = vmatpush1.msra.mxu0 0.0
      %2402 = vmatprep.subr.mxu0 0.0
      %2403 = vmatpush1.msra.mxu0 0.0
      %2404 = vmatprep.subr.mxu0 0.0
      %2405 = vmatpush1.msra.mxu0 0.0
      %2406 = vmatprep.subr.mxu0 0.0
      %2407 = vmatpush1.msra.mxu0 0.0
      %2408 = vmatprep.subr.mxu0 0.0
      %2409 = vmatpush1.msra.mxu0 0.0
      %2410 = vmatprep.subr.mxu0 0.0
      %2411 = vmatpush1.msra.mxu0 0.0
      %2412 = vmatprep.subr.mxu0 0.0
      %2413 = vmatpush1.msra.mxu0 0.0
      %2414 = vmatprep.subr.mxu0 0.0
      %2415 = vmatpush1.msra.mxu0 %v2376
      %2416 = vmatprep.subr.mxu0 0.0
      %2417 = vmatpush1.msra.mxu0 %v2375
      %2418 = vmatprep.subr.mxu0 0.0
      %2419 = vmatpush1.msra.mxu0 %v2374
      %2420 = vmatprep.subr.mxu0 0.0
      %2421 = vmatpush1.msra.mxu0 %v2373
      %2422 = vmatprep.subr.mxu0 0.0
      %2423 = vmatpush2.msra.mxu0 0.0
      %2424 = vmatprep.subr.mxu0 0.0
      %2425 = vmatpush2.msra.mxu0 0.0
      %2426 = vmatprep.subr.mxu0 0.0
      %2427 = vmatpush2.msra.mxu0 0.0
      %2428 = vmatprep.subr.mxu0 0.0
      %2429 = vmatpush2.msra.mxu0 0.0
      %2430 = vmatprep.subr.mxu0 0.0
      %2431 = vmatpush2.msra.mxu0 0.0
      %2432 = vmatprep.subr.mxu0 0.0
      %2433 = vmatpush2.msra.mxu0 0.0
      %2434 = vmatprep.subr.mxu0 0.0
      %2435 = vmatpush2.msra.mxu0 0.0
      %2436 = vmatprep.subr.mxu0 0.0
      %2437 = vmatpush2.msra.mxu0 0.0
      %2438 = vmatprep.subr.mxu0 0.0
      %2439 = vmatpush2.msra.mxu0 0.0
      %2440 = vmatprep.subr.mxu0 0.0
      %2441 = vmatpush2.msra.mxu0 0.0
      %2442 = vmatprep.subr.mxu0 0.0
      %2443 = vmatpush2.msra.mxu0 0.0
      %2444 = vmatprep.subr.mxu0 0.0
      %2445 = vmatpush2.msra.mxu0 0.0
      %2446 = vmatprep.subr.mxu0 0.0
      %2447 = vmatpush2.msra.mxu0 0.0
      %2448 = vmatprep.subr.mxu0 0.0
      %2449 = vmatpush2.msra.mxu0 0.0
      %2450 = vmatprep.subr.mxu0 0.0
      %2451 = vmatpush2.msra.mxu0 0.0
      %2452 = vmatprep.subr.mxu0 0.0
      %2453 = vmatpush2.msra.mxu0 0.0
      %2454 = vmatprep.mubr.f32.mxu0 0.0
      %2455 = vmatmul.mubr.f32.gmra.mxu0 %v2385
      %v2456 = vpop.f32.mrf.mxu0
      %v2457 = vadd.f32 %v2382, %v2456
      %v2458 = vpop.f32.mrf.mxu0
      %2459 = vmatprep.mubr.f32.mxu0 0.0
      %2460 = vmatmul.mubr.f32.gmra.mxu0 %v2388
      %v2461 = vpop.f32.mrf.mxu0
      %v2462 = vadd.f32 %v2382, %v2461
      %v2463 = vpop.f32.mrf.mxu0
      %2464 = vdwg.mxu0
      %v2465 = vmul.f32 %v2457, 0.5
      %v2466 = vmul.f32 %v2462, 0.5
      %v2467 = vmul.f32 %v2457, 0.044715
      %v2468 = vmul.f32 %v2462, 0.044715
      %v2469 = vmul.f32 %v2467, %v2457
      %v2470 = vmul.f32 %v2468, %v2462
      %v2471 = vmul.f32 %v2469, %v2457
      %v2472 = vmul.f32 %v2470, %v2462
      %v2473 = vadd.f32 %v2457, %v2471
      %v2474 = vadd.f32 %v2462, %v2472
      %v2475 = vmul.f32 %v2473, 0.7978846
      %v2476 = vmul.f32 %v2474, 0.7978846
      %v2477 = vtanh.pop %v2475
      %v2478 = vtanh.pop %v2476
      %v2479 = vadd.f32 %v2477, 1.0
      %v2480 = vadd.f32 %v2478, 1.0
      %v2481 = vmul.f32 %v2465, %v2479
      %v2482 = vmul.f32 %v2466, %v2480
      %v2483 = vld [vmem:[%s669] sm:$0xff]
      %v2484 = vld [vmem:[%s669 + $0x8] sm:$0xff]
      %v2485 = vld [vmem:[%s669 + $0x10] sm:$0xff]
      %v2486 = vld [vmem:[%s669 + $0x18] sm:$0xff]
      %v2487 = vld [vmem:[%s669 + $0x20] sm:$0xff]
      %v2488 = vld [vmem:[%s669 + $0x28] sm:$0xff]
      %v2489 = vld [vmem:[%s669 + $0x30] sm:$0xff]
      %v2490 = vld [vmem:[%s669 + $0x38] sm:$0xff]
      %v2491 = vld [vmem:[%s672] sm:$0x1]
      %v2493 = vlaneseq
      %v2494 = vshrl.u32 %v2493, 7
      %v2495 = vsub.s32 0, %v2494
      %v2496 = vrot.slane %v2491, %v2495
      %vm2498 = vcmask 523264
      %v2500 = vsel %vm2498, %v2481, 0
      %v2503 = vsel %vm2498, %v2482, 0
      %2505 = vmatprep.subr.mxu0 0.0
      %2506 = vmatpush1.msra.mxu0 0.0
      %2507 = vmatprep.subr.mxu0 0.0
      %2508 = vmatpush1.msra.mxu0 0.0
      %2509 = vmatprep.subr.mxu0 0.0
      %2510 = vmatpush1.msra.mxu0 0.0
      %2511 = vmatprep.subr.mxu0 0.0
      %2512 = vmatpush1.msra.mxu0 0.0
      %2513 = vmatprep.subr.mxu0 0.0
      %2514 = vmatpush1.msra.mxu0 0.0
      %2515 = vmatprep.subr.mxu0 0.0
      %2516 = vmatpush1.msra.mxu0 0.0
      %2517 = vmatprep.subr.mxu0 0.0
      %2518 = vmatpush1.msra.mxu0 0.0
      %2519 = vmatprep.subr.mxu0 0.0
      %2520 = vmatpush1.msra.mxu0 0.0
      %2521 = vmatprep.subr.mxu0 0.0
      %2522 = vmatpush1.msra.mxu0 %v2490
      %2523 = vmatprep.subr.mxu0 0.0
      %2524 = vmatpush1.msra.mxu0 %v2489
      %2525 = vmatprep.subr.mxu0 0.0
      %2526 = vmatpush1.msra.mxu0 %v2488
      %2527 = vmatprep.subr.mxu0 0.0
      %2528 = vmatpush1.msra.mxu0 %v2487
      %2529 = vmatprep.subr.mxu0 0.0
      %2530 = vmatpush1.msra.mxu0 %v2486
      %2531 = vmatprep.subr.mxu0 0.0
      %2532 = vmatpush1.msra.mxu0 %v2485
      %2533 = vmatprep.subr.mxu0 0.0
      %2534 = vmatpush1.msra.mxu0 %v2484
      %2535 = vmatprep.subr.mxu0 0.0
      %2536 = vmatpush1.msra.mxu0 %v2483
      %2537 = vmatprep.subr.mxu0 0.0
      %2538 = vmatpush2.msra.mxu0 0.0
      %2539 = vmatprep.subr.mxu0 0.0
      %2540 = vmatpush2.msra.mxu0 0.0
      %2541 = vmatprep.subr.mxu0 0.0
      %2542 = vmatpush2.msra.mxu0 0.0
      %2543 = vmatprep.subr.mxu0 0.0
      %2544 = vmatpush2.msra.mxu0 0.0
      %2545 = vmatprep.subr.mxu0 0.0
      %2546 = vmatpush2.msra.mxu0 0.0
      %2547 = vmatprep.subr.mxu0 0.0
      %2548 = vmatpush2.msra.mxu0 0.0
      %2549 = vmatprep.subr.mxu0 0.0
      %2550 = vmatpush2.msra.mxu0 0.0
      %2551 = vmatprep.subr.mxu0 0.0
      %2552 = vmatpush2.msra.mxu0 0.0
      %2553 = vmatprep.subr.mxu0 0.0
      %2554 = vmatpush2.msra.mxu0 0.0
      %2555 = vmatprep.subr.mxu0 0.0
      %2556 = vmatpush2.msra.mxu0 0.0
      %2557 = vmatprep.subr.mxu0 0.0
      %2558 = vmatpush2.msra.mxu0 0.0
      %2559 = vmatprep.subr.mxu0 0.0
      %2560 = vmatpush2.msra.mxu0 0.0
      %2561 = vmatprep.subr.mxu0 0.0
      %2562 = vmatpush2.msra.mxu0 0.0
      %2563 = vmatprep.subr.mxu0 0.0
      %2564 = vmatpush2.msra.mxu0 0.0
      %2565 = vmatprep.subr.mxu0 0.0
      %2566 = vmatpush2.msra.mxu0 0.0
      %2567 = vmatprep.subr.mxu0 0.0
      %2568 = vmatpush2.msra.mxu0 0.0
      %2569 = vmatprep.mubr.f32.mxu0 0.0
      %2570 = vmatmul.mubr.f32.gmra.mxu0 %v2500
      %v2571 = vpop.f32.mrf.mxu0
      %v2572 = vadd.f32 %v2496, %v2571
      %v2573 = vpop.f32.mrf.mxu0
      %2574 = vmatprep.mubr.f32.mxu0 0.0
      %2575 = vmatmul.mubr.f32.gmra.mxu0 %v2503
      %v2576 = vpop.f32.mrf.mxu0
      %v2577 = vadd.f32 %v2496, %v2576
      %v2578 = vpop.f32.mrf.mxu0
      %2579 = vdwg.mxu0
      %v2580 = vadd.f32 %v2572, %v2371
      %v2581 = vadd.f32 %v2577, %v2372
      %v2582 = vld [vmem:[%s675] sm:$0x1]
      %v2583 = vld [vmem:[%s678] sm:$0x1]
      %v2584 = vsel %vm746, %v2580, 0.0
      %2585 = vadd.xlane.f32.xlu0 %v2584
      %v2586 = vpop.xlane.xlu0 %2585
      %v2587 = vsel %vm746, %v2581, 0.0
      %2588 = vadd.xlane.f32.xlu0 %v2587
      %v2589 = vpop.xlane.xlu0 %2588
      %v2590 = vmul.f32 %v2586, %v2336
      %v2591 = vmul.f32 %v2589, %v2336
      %v2592 = vsub.f32 %v2580, %v2590
      %v2593 = vsub.f32 %v2581, %v2591
      %v2594 = vmul.f32 %v2592, %v2592
      %v2595 = vmul.f32 %v2593, %v2593
      %v2596 = vsel %vm746, %v2594, 0.0
      %2597 = vadd.xlane.f32.xlu0 %v2596
      %v2598 = vpop.xlane.xlu0 %2597
      %v2599 = vsel %vm746, %v2595, 0.0
      %2600 = vadd.xlane.f32.xlu0 %v2599
      %v2601 = vpop.xlane.xlu0 %2600
      %v2602 = vmul.f32 %v2598, %v2336
      %v2603 = vmul.f32 %v2601, %v2336
      %v2604 = vadd.f32 %v2602, 1e-05
      %v2605 = vadd.f32 %v2603, 1e-05
      %v2606 = vrsqrt.pop %v2604
      %v2607 = vrsqrt.pop %v2605
      %v2608 = vmul.f32 %v2592, %v2606
      %v2609 = vmul.f32 %v2593, %v2607
      %v2611 = vlaneseq
      %v2612 = vshrl.u32 %v2611, 7
      %v2613 = vsub.s32 0, %v2612
      %v2614 = vrot.slane %v2582, %v2613
      %v2616 = vmul.f32 %v2608, %v2614
      %v2617 = vmul.f32 %v2609, %v2614
      %v2619 = vlaneseq
      %v2620 = vshrl.u32 %v2619, 7
      %v2621 = vsub.s32 0, %v2620
      %v2622 = vrot.slane %v2583, %v2621
      %v2624 = vadd.f32 %v2616, %v2622
      %v2625 = vadd.f32 %v2617, %v2622
      %2626 = vst.msk [vmem:[%s16] sm:$0xff] %vm746, %v2624
      %2627 = vst.msk [vmem:[%s16 + $0x8] sm:$0xff] %vm746, %v2625
      // Predicated region
      $region89: #{base_encoder_forward.1} parent=83 // pred_check
        %p2628 = pneg %p436
      $region90: #{base_encoder_forward.1} parent=83 // pred_check_branch
        %2630 = sbr.rel (%p2628) target = $region92
      $region91: #{base_encoder_forward.1} parent=83 // pred_region
        _
      $region92: #{base_encoder_forward.1} parent=83 // pred_fallthru
        _
      // Predicated region
      $region93: #{base_encoder_forward.1} parent=83 // pred_check
        %p2631 = pneg %p436
      $region94: #{base_encoder_forward.1} parent=83 // pred_check_branch
        %2633 = sbr.rel (%p2631) target = $region96
      $region95: #{base_encoder_forward.1} parent=83 // pred_region
        _
      $region96: #{base_encoder_forward.1} parent=83 // pred_fallthru
        _
    $region84: #{base_encoder_forward.1} parent=5 // pred_fallthru
      _
    %p2634 = scmp.le.s32.totalorder 2, %s22
    // Predicated region
    $region97: #{base_encoder_forward.1} parent=5 // pred_check
      %p2635 = pneg %p2634
    $region98: #{base_encoder_forward.1} parent=5 // pred_check_branch
      %2637 = sbr.rel (%p2635) target = $region100
    $region99: #{base_encoder_forward.1} parent=5 // pred_region
      %s2638 = ssub.s32 %s22, 2
    $region100: #{base_encoder_forward.1} parent=5 // pred_fallthru
      _
  $region6: #{base_encoder_forward.1} parent=0 // loop_footer
    %s26 = sadd.s32 1, %s22
  $region7: #{base_encoder_forward.1} parent=0 // loop_footer_branch
    %21 = sbr.rel target = $region3
  $region8: #{base_encoder_forward.1} parent=0 // loop_exit
    _

</llo_original>
